<compile_context>
chip_gen: v6e
topology: v6e:2x2x1
jax: 0.10.0
libtpu: 0.0.40
codegen_flags: <defaults>
</compile_context>

<pallas_src>
import numpy as np
import jax
import jax.numpy as jnp
from jax.experimental import pallas as pl
from jax.experimental.pallas import tpu as pltpu

# ----------------------------- configuration --------------------------------
H = 32                      # dim_hidden_features
N_NODES = 16
N_EDGES = 24                # per edge type
NB_ITER_MPNN = 2
EDGE_TYPES = ("temporal", "social", "view")
LANE = 128

F32 = jnp.float32
BF16 = jnp.bfloat16

# weight-slab row offsets (bf16, 32 columns)
_W1N = 0                          # (4H,H): x / temporal / social / view chunks
_W2N = 4 * H                      # 128
_EDGE_BASE = 5 * H                # 160; per edge type stride = 4H (src,dst,e,W2)
_WTS_ROWS = _EDGE_BASE + 3 * 4 * H  # 544

_OUT_ROWS = N_NODES + 3 * N_EDGES   # 88 (= 24 state rows + 64 head rows)


def _vmem():
    return pl.BlockSpec(memory_space=pltpu.MemorySpace.VMEM)


# ------------------------------- fused kernel --------------------------------
def _fused_forward_kernel(feat_ref, gath_ref, scat_ref, wts_ref, whead_ref,
                          bias_ref, out_ref):
    n, e_cnt, h = N_NODES, N_EDGES, H

    def mm(a_bf, w_bf):  # bf16 MXU inputs, f32 accumulation
        return jnp.dot(a_bf, w_bf, preferred_element_type=F32)

    # ---------------- unpack inputs (static slices, aligned) ----------------
    x = feat_ref[0:n, :]                                              # (16,32) f32
    e = [feat_ref[n + i * e_cnt:n + (i + 1) * e_cnt, :] for i in range(3)]

    gath = gath_ref[...]                                              # (144,16) bf16
    bias = bias_ref[...]                                              # (9,128) f32

    b_head = bias[0:1, :]                                             # (1,128)
    b1n = bias[1:2, 0:h]
    b2n = bias[2:3, 0:h]
    b1e = [bias[3 + 2 * i:4 + 2 * i, 0:h] for i in range(3)]
    b2e = [bias[4 + 2 * i:5 + 2 * i, 0:h] for i in range(3)]

    # node MLP weight chunks: [x, temporal, social, view] then layer-2
    w1n = [wts_ref[_W1N + i * h:_W1N + (i + 1) * h, :] for i in range(4)]
    w2n = wts_ref[_W2N:_W2N + h, :]
    # edge MLP weight chunks per type: [src, dst, e] then layer-2
    w1e, w2e = [], []
    for i in range(3):
        base = _EDGE_BASE + i * 4 * h
        w1e.append([wts_ref[base + j * h:base + (j + 1) * h, :] for j in range(3)])
        w2e.append(wts_ref[base + 3 * h:base + 4 * h, :])

    # ---------------------- MPNN iterations (unrolled) ----------------------
    for _ in range(NB_ITER_MPNN):
        xb = x.astype(BF16)                       # cast once, reuse everywhere
        eb = [e[i].astype(BF16) for i in range(3)]

        # SimpleMPNN node update (split-W1 accumulate form, no concats):
        #   h1 = relu(x@W1x + sum_i (A_i @ e_i) @ W1_i + b1)
        pre = mm(xb, w1n[0])
        for i in range(3):
            agg = mm(scat_ref[i], eb[i])                              # (N,H) scatter-add
            pre = pre + mm(agg.astype(BF16), w1n[1 + i])
        h1 = jnp.maximum(pre + b1n, 0.0)
        new_x = x + mm(h1.astype(BF16), w2n) + b2n                    # residual node update

        # SimpleEdgeUpdate (uses PRE-update x, matching the reference control flow)
        sd = mm(gath, xb)                                             # (6E,H) src/dst gathers
        new_e = []
        for i in range(3):
            src_i = sd[2 * i * e_cnt:(2 * i + 1) * e_cnt].astype(BF16)
            dst_i = sd[(2 * i + 1) * e_cnt:(2 * i + 2) * e_cnt].astype(BF16)
            pre_e = mm(src_i, w1e[i][0]) + mm(dst_i, w1e[i][1]) + mm(eb[i], w1e[i][2])
            h1e = jnp.maximum(pre_e + b1e[i], 0.0)
            new_e.append(e[i] + mm(h1e.astype(BF16), w2e[i]) + b2e[i])  # residual edge update

        x = new_x
        e = new_e

    # ------------------- lane-dense packed output (epilogue) -----------------
    # state rows 0:24 of out: | e_t | e_s | e_v | x (zero-padded to 24 rows) |
    x_pad = jnp.concatenate([x, jnp.zeros((e_cnt - n, h), F32)], axis=0)
    state_block = jnp.concatenate([e[0], e[1], e[2], x_pad], axis=1)   # (24,128)
    out_ref[0:e_cnt, :] = state_block

    # fused prediction heads: temporal (lane 0), view (lane 1), node (lane 2),
    # one shared MXU chain in split-K form (no lane concats).
    xb = x.astype(BF16)
    sd = mm(gath, xb)                                                  # (6E,H) final-x gathers
    src_t, dst_t = sd[0:e_cnt], sd[e_cnt:2 * e_cnt]
    src_v, dst_v = sd[4 * e_cnt:5 * e_cnt], sd[5 * e_cnt:6 * e_cnt]
    zeros_n = jnp.zeros((n, h), F32)
    s_in = jnp.concatenate([src_t, src_v, x], axis=0).astype(BF16)     # (64,32)
    d_in = jnp.concatenate([dst_t, dst_v, zeros_n], axis=0).astype(BF16)
    e_in = jnp.concatenate([e[0], e[2], zeros_n], axis=0).astype(BF16)
    pred = (mm(s_in, whead_ref[0:h, :])
            + mm(d_in, whead_ref[h:2 * h, :])
            + mm(e_in, whead_ref[2 * h:3 * h, :])
            + b_head)                                                  # (64,128)
    out_ref[e_cnt:e_cnt + 2 * e_cnt + n, :] = pred                     # rows 24:88


# ------------------------------ parameters ------------------------------------
def _lin(key, din, dout):
    kw, kb = jax.random.split(key)
    w = jax.random.normal(kw, (din, dout), jnp.float32) / jnp.sqrt(jnp.float32(din))
    b = jax.random.normal(kb, (1, dout), jnp.float32) * 0.01
    return w, b


def init_params(key):
    keys = jax.random.split(key, 16)
    params = {}
    # SimpleMPNN node MLP (nb_layers_mlp_node = 2): 4H -> H -> H
    w1, b1 = _lin(keys[0], 4 * H, H)
    w2, b2 = _lin(keys[1], H, H)
    params["mpnn"] = {"w1": w1, "b1": b1, "w2": w2, "b2": b2}
    # SimpleEdgeUpdate per edge type (nb_layers_mlp_edge = 2): 3H -> H -> H
    params["edge"] = {}
    for i, et in enumerate(EDGE_TYPES):
        w1, b1 = _lin(keys[2 + 2 * i], 3 * H, H)
        w2, b2 = _lin(keys[3 + 2 * i], H, H)
        params["edge"][et] = {"w1": w1, "b1": b1, "w2": w2, "b2": b2}
    # output transforms
    params["out_node"] = _lin(keys[10], H, 1)           # Linear(nhidden, 1)
    params["out_edge_t"] = _lin(keys[11], 3 * H, 1)     # Linear(3*nhidden, 1)
    params["out_edge_v"] = _lin(keys[12], 3 * H, 1)     # Linear(3*nhidden, 1)
    return params


# ----------------------- one-time static packing ------------------------------
def _prepare_static(params, edge_index):
    """Hoisted out of the per-call path: graph one-hots + packed weights/biases."""
    n, e_cnt, h = N_NODES, N_EDGES, H

    g = np.zeros((6 * e_cnt, n), np.float32)        # per type: [src ; dst] gather one-hot
    s = np.zeros((3, n, e_cnt), np.float32)         # per type: scatter-to-dst one-hot
    for i, et in enumerate(EDGE_TYPES):
        src = np.asarray(edge_index[et][0])
        dst = np.asarray(edge_index[et][1])
        g[2 * i * e_cnt + np.arange(e_cnt), src] = 1.0
        g[(2 * i + 1) * e_cnt + np.arange(e_cnt), dst] = 1.0
        s[i, dst, np.arange(e_cnt)] = 1.0

    mp = params["mpnn"]
    blocks = [np.asarray(mp["w1"]), np.asarray(mp["w2"])]
    for et in EDGE_TYPES:
        p = params["edge"][et]
        blocks += [np.asarray(p["w1"]), np.asarray(p["w2"])]
    wts = np.concatenate(blocks, axis=0)            # (544, 32)
    assert wts.shape == (_WTS_ROWS, h)

    wn, bn = (np.asarray(a) for a in params["out_node"])       # (32,1), (1,1)
    wt, bt = (np.asarray(a) for a in params["out_edge_t"])     # (96,1), (1,1)
    wv, bv = (np.asarray(a) for a in params["out_edge_v"])
    whead = np.zeros((3 * h, LANE), np.float32)
    whead[:, 0] = wt[:, 0]                           # temporal head -> lane 0
    whead[:, 1] = wv[:, 0]                           # view head     -> lane 1
    whead[0:h, 2] = wn[:, 0]                         # node head     -> lane 2 (src chunk only)

    bias = np.zeros((9, LANE), np.float32)
    bias[0, 0] = bt[0, 0]; bias[0, 1] = bv[0, 0]; bias[0, 2] = bn[0, 0]
    bias[1, 0:h] = np.asarray(mp["b1"])[0]
    bias[2, 0:h] = np.asarray(mp["b2"])[0]
    for i, et in enumerate(EDGE_TYPES):
        p = params["edge"][et]
        bias[3 + 2 * i, 0:h] = np.asarray(p["b1"])[0]
        bias[4 + 2 * i, 0:h] = np.asarray(p["b2"])[0]

    return {
        "gath": jnp.asarray(g, BF16),
        "scat": jnp.asarray(s, BF16),
        "wts": jnp.asarray(wts, BF16),
        "whead": jnp.asarray(whead, BF16),
        "bias": jnp.asarray(bias, jnp.float32),
    }


# ------------------------------- forward --------------------------------------
def forward(static, x, edge_attr):
    n, e_cnt = N_NODES, N_EDGES
    feat = jnp.concatenate(
        [x, edge_attr["temporal"], edge_attr["social"], edge_attr["view"]], axis=0)  # (88,32)

    out = pl.pallas_call(
        _fused_forward_kernel,
        out_shape=jax.ShapeDtypeStruct((_OUT_ROWS, LANE), jnp.float32),
        in_specs=[_vmem()] * 6,
        out_specs=_vmem(),
    )(feat, static["gath"], static["scat"], static["wts"], static["whead"],
      static["bias"])

    state = out[0:e_cnt, :]          # (24,128): e_t | e_s | e_v | x
    pred = out[e_cnt:, :]            # (64,128): temporal | view | node rows
    return {
        "x": state[0:n, 96:128],
        "edge_attr": {
            "temporal": state[:, 0:32],
            "social": state[:, 32:64],
            "view": state[:, 64:96],
        },
        "pred": pred[2 * e_cnt:2 * e_cnt + n, 2:3],
        "edge_pred_temporal": pred[0:e_cnt, 0:1],
        "edge_pred_view": pred[e_cnt:2 * e_cnt, 1:2],
    }


# ------------------------- pure-JAX f32 reference -----------------------------
def reference_forward(params, x, edge_index, edge_attr):
    n = x.shape[0]
    edge_attr = dict(edge_attr)
    for _ in range(NB_ITER_MPNN):
        aggs = []
        for et in EDGE_TYPES:
            dst = edge_index[et][1]
            aggs.append(jnp.zeros((n, H), jnp.float32).at[dst].add(edge_attr[et]))
        mp = params["mpnn"]
        h_in = jnp.concatenate([x] + aggs, axis=1)
        h1 = jax.nn.relu(h_in @ mp["w1"] + mp["b1"])
        new_x = x + h1 @ mp["w2"] + mp["b2"]
        new_e = {}
        for et in EDGE_TYPES:
            src, dst = edge_index[et]
            p = params["edge"][et]
            ein = jnp.concatenate([x[src], x[dst], edge_attr[et]], axis=1)
            h1e = jax.nn.relu(ein @ p["w1"] + p["b1"])
            new_e[et] = edge_attr[et] + h1e @ p["w2"] + p["b2"]
        x = new_x
        edge_attr = new_e
    wn, bn = params["out_node"]

    def ep(et, wb):
        src, dst = edge_index[et]
        w, b = wb
        return jnp.concatenate([x[src], x[dst], edge_attr[et]], axis=1) @ w + b

    return {
        "x": x,
        "edge_attr": edge_attr,
        "pred": x @ wn + bn,
        "edge_pred_temporal": ep("temporal", params["out_edge_t"]),
        "edge_pred_view": ep("view", params["out_edge_v"]),
    }


# --------------------------------- main ----------------------------------------
if __name__ == "__main__":
    key = jax.random.PRNGKey(0)
    k_param, k_x, *k_e = jax.random.split(key, 2 + 2 * len(EDGE_TYPES))

    params = init_params(k_param)
    x = jax.random.normal(k_x, (N_NODES, H), jnp.float32)

    edge_index = {}
    edge_attr = {}
    for i, et in enumerate(EDGE_TYPES):
        edge_index[et] = jax.random.randint(k_e[2 * i], (2, N_EDGES), 0, N_NODES)
        edge_attr[et] = jax.random.normal(k_e[2 * i + 1], (N_EDGES, H), jnp.float32)

    # One-time preprocessing (graph structure and weights are fixed across calls).
    static = _prepare_static(params, edge_index)

    fwd = jax.jit(forward)
    out = fwd(static, x, edge_attr)
    jax.block_until_ready(out)

    assert out["pred"].shape == (N_NODES, 1)
    assert out["edge_pred_temporal"].shape == (N_EDGES, 1)
    assert out["edge_pred_view"].shape == (N_EDGES, 1)
    assert out["x"].shape == (N_NODES, H)
    assert out["edge_attr"]["temporal"].shape == (N_EDGES, H)

    # Check vs. f32 reference (kernel runs bf16 MXU inputs with f32 accumulation,
    # so gathers/aggregations are bf16-rounded; tolerance sized for that).
    ref = jax.jit(reference_forward)(params, x, edge_index, edge_attr)
    pairs = [
        (out["x"], ref["x"]),
        (out["pred"], ref["pred"]),
        (out["edge_pred_temporal"], ref["edge_pred_temporal"]),
        (out["edge_pred_view"], ref["edge_pred_view"]),
        (out["edge_attr"]["temporal"], ref["edge_attr"]["temporal"]),
        (out["edge_attr"]["social"], ref["edge_attr"]["social"]),
        (out["edge_attr"]["view"], ref["edge_attr"]["view"]),
    ]
    for got, want in pairs:
        err = float(jnp.max(jnp.abs(got - want)))
        tol = 0.1 + 0.05 * float(jnp.max(jnp.abs(want)))
        assert err < tol, (err, tol)

    print("KERNEL_OK")
</pallas_src>

<mosaic_0001>
module attributes {stable_mosaic.version = 11 : i64} {
  func.func @_fused_forward_kernel(%arg0: memref<88x32xf32, #tpu.memory_space<vmem>>, %arg1: memref<144x16xbf16, #tpu.memory_space<vmem>>, %arg2: memref<3x16x24xbf16, #tpu.memory_space<vmem>>, %arg3: memref<544x32xbf16, #tpu.memory_space<vmem>>, %arg4: memref<96x128xbf16, #tpu.memory_space<vmem>>, %arg5: memref<9x128xf32, #tpu.memory_space<vmem>>, %arg6: memref<88x128xf32, #tpu.memory_space<vmem>>) attributes {dimension_semantics = [], scalar_prefetch = 0 : i64, scratch_operands = 0 : i64, tpu.core_type = #tpu.core_type<tc>} {
    %c0 = arith.constant 0 : index
    %c0_0 = arith.constant 0 : index
    %0 = vector.load %arg0[%c0, %c0_0] : memref<88x32xf32, #tpu.memory_space<vmem>>, vector<16x32xf32>
    %c16 = arith.constant 16 : index
    %c0_1 = arith.constant 0 : index
    %1 = vector.load %arg0[%c16, %c0_1] : memref<88x32xf32, #tpu.memory_space<vmem>>, vector<24x32xf32>
    %c40 = arith.constant 40 : index
    %c0_2 = arith.constant 0 : index
    %2 = vector.load %arg0[%c40, %c0_2] : memref<88x32xf32, #tpu.memory_space<vmem>>, vector<24x32xf32>
    %c64 = arith.constant 64 : index
    %c0_3 = arith.constant 0 : index
    %3 = vector.load %arg0[%c64, %c0_3] : memref<88x32xf32, #tpu.memory_space<vmem>>, vector<24x32xf32>
    %c0_4 = arith.constant 0 : index
    %c0_5 = arith.constant 0 : index
    %4 = vector.load %arg1[%c0_4, %c0_5] : memref<144x16xbf16, #tpu.memory_space<vmem>>, vector<144x16xbf16>
    %c0_6 = arith.constant 0 : index
    %c0_7 = arith.constant 0 : index
    %5 = vector.load %arg5[%c0_6, %c0_7] : memref<9x128xf32, #tpu.memory_space<vmem>>, vector<9x128xf32>
    %6 = vector.extract_strided_slice %5 {offsets = [0, 0], sizes = [1, 128], strides = [1, 1]} : vector<9x128xf32> to vector<1x128xf32>
    %7 = vector.extract_strided_slice %5 {offsets = [1, 0], sizes = [1, 32], strides = [1, 1]} : vector<9x128xf32> to vector<1x32xf32>
    %8 = vector.extract_strided_slice %5 {offsets = [2, 0], sizes = [1, 32], strides = [1, 1]} : vector<9x128xf32> to vector<1x32xf32>
    %9 = vector.extract_strided_slice %5 {offsets = [3, 0], sizes = [1, 32], strides = [1, 1]} : vector<9x128xf32> to vector<1x32xf32>
    %10 = vector.extract_strided_slice %5 {offsets = [5, 0], sizes = [1, 32], strides = [1, 1]} : vector<9x128xf32> to vector<1x32xf32>
    %11 = vector.extract_strided_slice %5 {offsets = [7, 0], sizes = [1, 32], strides = [1, 1]} : vector<9x128xf32> to vector<1x32xf32>
    %12 = vector.extract_strided_slice %5 {offsets = [4, 0], sizes = [1, 32], strides = [1, 1]} : vector<9x128xf32> to vector<1x32xf32>
    %13 = vector.extract_strided_slice %5 {offsets = [6, 0], sizes = [1, 32], strides = [1, 1]} : vector<9x128xf32> to vector<1x32xf32>
    %14 = vector.extract_strided_slice %5 {offsets = [8, 0], sizes = [1, 32], strides = [1, 1]} : vector<9x128xf32> to vector<1x32xf32>
    %c0_8 = arith.constant 0 : index
    %c0_9 = arith.constant 0 : index
    %15 = vector.load %arg3[%c0_8, %c0_9] : memref<544x32xbf16, #tpu.memory_space<vmem>>, vector<32x32xbf16>
    %c32 = arith.constant 32 : index
    %c0_10 = arith.constant 0 : index
    %16 = vector.load %arg3[%c32, %c0_10] : memref<544x32xbf16, #tpu.memory_space<vmem>>, vector<32x32xbf16>
    %c64_11 = arith.constant 64 : index
    %c0_12 = arith.constant 0 : index
    %17 = vector.load %arg3[%c64_11, %c0_12] : memref<544x32xbf16, #tpu.memory_space<vmem>>, vector<32x32xbf16>
    %c96 = arith.constant 96 : index
    %c0_13 = arith.constant 0 : index
    %18 = vector.load %arg3[%c96, %c0_13] : memref<544x32xbf16, #tpu.memory_space<vmem>>, vector<32x32xbf16>
    %c128 = arith.constant 128 : index
    %c0_14 = arith.constant 0 : index
    %19 = vector.load %arg3[%c128, %c0_14] : memref<544x32xbf16, #tpu.memory_space<vmem>>, vector<32x32xbf16>
    %c160 = arith.constant 160 : index
    %c0_15 = arith.constant 0 : index
    %20 = vector.load %arg3[%c160, %c0_15] : memref<544x32xbf16, #tpu.memory_space<vmem>>, vector<32x32xbf16>
    %c192 = arith.constant 192 : index
    %c0_16 = arith.constant 0 : index
    %21 = vector.load %arg3[%c192, %c0_16] : memref<544x32xbf16, #tpu.memory_space<vmem>>, vector<32x32xbf16>
    %c224 = arith.constant 224 : index
    %c0_17 = arith.constant 0 : index
    %22 = vector.load %arg3[%c224, %c0_17] : memref<544x32xbf16, #tpu.memory_space<vmem>>, vector<32x32xbf16>
    %c256 = arith.constant 256 : index
    %c0_18 = arith.constant 0 : index
    %23 = vector.load %arg3[%c256, %c0_18] : memref<544x32xbf16, #tpu.memory_space<vmem>>, vector<32x32xbf16>
    %c288 = arith.constant 288 : index
    %c0_19 = arith.constant 0 : index
    %24 = vector.load %arg3[%c288, %c0_19] : memref<544x32xbf16, #tpu.memory_space<vmem>>, vector<32x32xbf16>
    %c320 = arith.constant 320 : index
    %c0_20 = arith.constant 0 : index
    %25 = vector.load %arg3[%c320, %c0_20] : memref<544x32xbf16, #tpu.memory_space<vmem>>, vector<32x32xbf16>
    %c352 = arith.constant 352 : index
    %c0_21 = arith.constant 0 : index
    %26 = vector.load %arg3[%c352, %c0_21] : memref<544x32xbf16, #tpu.memory_space<vmem>>, vector<32x32xbf16>
    %c384 = arith.constant 384 : index
    %c0_22 = arith.constant 0 : index
    %27 = vector.load %arg3[%c384, %c0_22] : memref<544x32xbf16, #tpu.memory_space<vmem>>, vector<32x32xbf16>
    %c416 = arith.constant 416 : index
    %c0_23 = arith.constant 0 : index
    %28 = vector.load %arg3[%c416, %c0_23] : memref<544x32xbf16, #tpu.memory_space<vmem>>, vector<32x32xbf16>
    %c448 = arith.constant 448 : index
    %c0_24 = arith.constant 0 : index
    %29 = vector.load %arg3[%c448, %c0_24] : memref<544x32xbf16, #tpu.memory_space<vmem>>, vector<32x32xbf16>
    %c480 = arith.constant 480 : index
    %c0_25 = arith.constant 0 : index
    %30 = vector.load %arg3[%c480, %c0_25] : memref<544x32xbf16, #tpu.memory_space<vmem>>, vector<32x32xbf16>
    %c512 = arith.constant 512 : index
    %c0_26 = arith.constant 0 : index
    %31 = vector.load %arg3[%c512, %c0_26] : memref<544x32xbf16, #tpu.memory_space<vmem>>, vector<32x32xbf16>
    %32 = arith.truncf %0 : vector<16x32xf32> to vector<16x32xbf16>
    %33 = arith.truncf %1 : vector<24x32xf32> to vector<24x32xbf16>
    %34 = arith.truncf %2 : vector<24x32xf32> to vector<24x32xbf16>
    %35 = arith.truncf %3 : vector<24x32xf32> to vector<24x32xbf16>
    %cst = arith.constant dense<0.000000e+00> : vector<16x32xf32>
    %36 = tpu.matmul %32, %15, %cst {dimension_numbers = #tpu.dot_dimension_numbers<[1], [0], [0], [1], [0, 0, 1, 1], [], []>} : vector<16x32xbf16>, vector<32x32xbf16>, vector<16x32xf32> -> vector<16x32xf32>
    %c0_27 = arith.constant 0 : index
    %c0_28 = arith.constant 0 : index
    %c0_29 = arith.constant 0 : index
    %37 = vector.load %arg2[%c0_27, %c0_28, %c0_29] : memref<3x16x24xbf16, #tpu.memory_space<vmem>>, vector<1x16x24xbf16>
    %38 = vector.shape_cast %37 : vector<1x16x24xbf16> to vector<16x24xbf16>
    %cst_30 = arith.constant dense<0.000000e+00> : vector<16x32xf32>
    %39 = tpu.matmul %38, %33, %cst_30 {dimension_numbers = #tpu.dot_dimension_numbers<[1], [0], [0], [1], [0, 0, 1, 1], [], []>} : vector<16x24xbf16>, vector<24x32xbf16>, vector<16x32xf32> -> vector<16x32xf32>
    %40 = arith.truncf %39 : vector<16x32xf32> to vector<16x32xbf16>
    %cst_31 = arith.constant dense<0.000000e+00> : vector<16x32xf32>
    %41 = tpu.matmul %40, %16, %cst_31 {dimension_numbers = #tpu.dot_dimension_numbers<[1], [0], [0], [1], [0, 0, 1, 1], [], []>} : vector<16x32xbf16>, vector<32x32xbf16>, vector<16x32xf32> -> vector<16x32xf32>
    %42 = arith.addf %36, %41 : vector<16x32xf32>
    %c1 = arith.constant 1 : index
    %c0_32 = arith.constant 0 : index
    %c0_33 = arith.constant 0 : index
    %43 = vector.load %arg2[%c1, %c0_32, %c0_33] : memref<3x16x24xbf16, #tpu.memory_space<vmem>>, vector<1x16x24xbf16>
    %44 = vector.shape_cast %43 : vector<1x16x24xbf16> to vector<16x24xbf16>
    %cst_34 = arith.constant dense<0.000000e+00> : vector<16x32xf32>
    %45 = tpu.matmul %44, %34, %cst_34 {dimension_numbers = #tpu.dot_dimension_numbers<[1], [0], [0], [1], [0, 0, 1, 1], [], []>} : vector<16x24xbf16>, vector<24x32xbf16>, vector<16x32xf32> -> vector<16x32xf32>
    %46 = arith.truncf %45 : vector<16x32xf32> to vector<16x32xbf16>
    %cst_35 = arith.constant dense<0.000000e+00> : vector<16x32xf32>
    %47 = tpu.matmul %46, %17, %cst_35 {dimension_numbers = #tpu.dot_dimension_numbers<[1], [0], [0], [1], [0, 0, 1, 1], [], []>} : vector<16x32xbf16>, vector<32x32xbf16>, vector<16x32xf32> -> vector<16x32xf32>
    %48 = arith.addf %42, %47 : vector<16x32xf32>
    %c2 = arith.constant 2 : index
    %c0_36 = arith.constant 0 : index
    %c0_37 = arith.constant 0 : index
    %49 = vector.load %arg2[%c2, %c0_36, %c0_37] : memref<3x16x24xbf16, #tpu.memory_space<vmem>>, vector<1x16x24xbf16>
    %50 = vector.shape_cast %49 : vector<1x16x24xbf16> to vector<16x24xbf16>
    %cst_38 = arith.constant dense<0.000000e+00> : vector<16x32xf32>
    %51 = tpu.matmul %50, %35, %cst_38 {dimension_numbers = #tpu.dot_dimension_numbers<[1], [0], [0], [1], [0, 0, 1, 1], [], []>} : vector<16x24xbf16>, vector<24x32xbf16>, vector<16x32xf32> -> vector<16x32xf32>
    %52 = arith.truncf %51 : vector<16x32xf32> to vector<16x32xbf16>
    %cst_39 = arith.constant dense<0.000000e+00> : vector<16x32xf32>
    %53 = tpu.matmul %52, %18, %cst_39 {dimension_numbers = #tpu.dot_dimension_numbers<[1], [0], [0], [1], [0, 0, 1, 1], [], []>} : vector<16x32xbf16>, vector<32x32xbf16>, vector<16x32xf32> -> vector<16x32xf32>
    %54 = arith.addf %48, %53 : vector<16x32xf32>
    %55 = vector.broadcast %7 : vector<1x32xf32> to vector<16x32xf32>
    %56 = arith.addf %54, %55 : vector<16x32xf32>
    %cst_40 = arith.constant 0.000000e+00 : f32
    %57 = vector.broadcast %cst_40 : f32 to vector<16x32xf32>
    %58 = arith.maximumf %56, %57 : vector<16x32xf32>
    %59 = arith.truncf %58 : vector<16x32xf32> to vector<16x32xbf16>
    %cst_41 = arith.constant dense<0.000000e+00> : vector<16x32xf32>
    %60 = tpu.matmul %59, %19, %cst_41 {dimension_numbers = #tpu.dot_dimension_numbers<[1], [0], [0], [1], [0, 0, 1, 1], [], []>} : vector<16x32xbf16>, vector<32x32xbf16>, vector<16x32xf32> -> vector<16x32xf32>
    %61 = arith.addf %0, %60 : vector<16x32xf32>
    %62 = vector.broadcast %8 : vector<1x32xf32> to vector<16x32xf32>
    %63 = arith.addf %61, %62 : vector<16x32xf32>
    %cst_42 = arith.constant dense<0.000000e+00> : vector<144x32xf32>
    %64 = tpu.matmul %4, %32, %cst_42 {dimension_numbers = #tpu.dot_dimension_numbers<[1], [0], [0], [1], [0, 0, 1, 1], [], []>} : vector<144x16xbf16>, vector<16x32xbf16>, vector<144x32xf32> -> vector<144x32xf32>
    %65 = vector.extract_strided_slice %64 {offsets = [0, 0], sizes = [24, 32], strides = [1, 1]} : vector<144x32xf32> to vector<24x32xf32>
    %66 = arith.truncf %65 : vector<24x32xf32> to vector<24x32xbf16>
    %67 = vector.extract_strided_slice %64 {offsets = [24, 0], sizes = [24, 32], strides = [1, 1]} : vector<144x32xf32> to vector<24x32xf32>
    %68 = arith.truncf %67 : vector<24x32xf32> to vector<24x32xbf16>
    %cst_43 = arith.constant dense<0.000000e+00> : vector<24x32xf32>
    %69 = tpu.matmul %66, %20, %cst_43 {dimension_numbers = #tpu.dot_dimension_numbers<[1], [0], [0], [1], [0, 0, 1, 1], [], []>} : vector<24x32xbf16>, vector<32x32xbf16>, vector<24x32xf32> -> vector<24x32xf32>
    %cst_44 = arith.constant dense<0.000000e+00> : vector<24x32xf32>
    %70 = tpu.matmul %68, %21, %cst_44 {dimension_numbers = #tpu.dot_dimension_numbers<[1], [0], [0], [1], [0, 0, 1, 1], [], []>} : vector<24x32xbf16>, vector<32x32xbf16>, vector<24x32xf32> -> vector<24x32xf32>
    %71 = arith.addf %69, %70 : vector<24x32xf32>
    %cst_45 = arith.constant dense<0.000000e+00> : vector<24x32xf32>
    %72 = tpu.matmul %33, %22, %cst_45 {dimension_numbers = #tpu.dot_dimension_numbers<[1], [0], [0], [1], [0, 0, 1, 1], [], []>} : vector<24x32xbf16>, vector<32x32xbf16>, vector<24x32xf32> -> vector<24x32xf32>
    %73 = arith.addf %71, %72 : vector<24x32xf32>
    %74 = vector.broadcast %9 : vector<1x32xf32> to vector<24x32xf32>
    %75 = arith.addf %73, %74 : vector<24x32xf32>
    %cst_46 = arith.constant 0.000000e+00 : f32
    %76 = vector.broadcast %cst_46 : f32 to vector<24x32xf32>
    %77 = arith.maximumf %75, %76 : vector<24x32xf32>
    %78 = arith.truncf %77 : vector<24x32xf32> to vector<24x32xbf16>
    %cst_47 = arith.constant dense<0.000000e+00> : vector<24x32xf32>
    %79 = tpu.matmul %78, %23, %cst_47 {dimension_numbers = #tpu.dot_dimension_numbers<[1], [0], [0], [1], [0, 0, 1, 1], [], []>} : vector<24x32xbf16>, vector<32x32xbf16>, vector<24x32xf32> -> vector<24x32xf32>
    %80 = arith.addf %1, %79 : vector<24x32xf32>
    %81 = vector.broadcast %12 : vector<1x32xf32> to vector<24x32xf32>
    %82 = arith.addf %80, %81 : vector<24x32xf32>
    %83 = vector.extract_strided_slice %64 {offsets = [48, 0], sizes = [24, 32], strides = [1, 1]} : vector<144x32xf32> to vector<24x32xf32>
    %84 = arith.truncf %83 : vector<24x32xf32> to vector<24x32xbf16>
    %85 = vector.extract_strided_slice %64 {offsets = [72, 0], sizes = [24, 32], strides = [1, 1]} : vector<144x32xf32> to vector<24x32xf32>
    %86 = arith.truncf %85 : vector<24x32xf32> to vector<24x32xbf16>
    %cst_48 = arith.constant dense<0.000000e+00> : vector<24x32xf32>
    %87 = tpu.matmul %84, %24, %cst_48 {dimension_numbers = #tpu.dot_dimension_numbers<[1], [0], [0], [1], [0, 0, 1, 1], [], []>} : vector<24x32xbf16>, vector<32x32xbf16>, vector<24x32xf32> -> vector<24x32xf32>
    %cst_49 = arith.constant dense<0.000000e+00> : vector<24x32xf32>
    %88 = tpu.matmul %86, %25, %cst_49 {dimension_numbers = #tpu.dot_dimension_numbers<[1], [0], [0], [1], [0, 0, 1, 1], [], []>} : vector<24x32xbf16>, vector<32x32xbf16>, vector<24x32xf32> -> vector<24x32xf32>
    %89 = arith.addf %87, %88 : vector<24x32xf32>
    %cst_50 = arith.constant dense<0.000000e+00> : vector<24x32xf32>
    %90 = tpu.matmul %34, %26, %cst_50 {dimension_numbers = #tpu.dot_dimension_numbers<[1], [0], [0], [1], [0, 0, 1, 1], [], []>} : vector<24x32xbf16>, vector<32x32xbf16>, vector<24x32xf32> -> vector<24x32xf32>
    %91 = arith.addf %89, %90 : vector<24x32xf32>
    %92 = vector.broadcast %10 : vector<1x32xf32> to vector<24x32xf32>
    %93 = arith.addf %91, %92 : vector<24x32xf32>
    %cst_51 = arith.constant 0.000000e+00 : f32
    %94 = vector.broadcast %cst_51 : f32 to vector<24x32xf32>
    %95 = arith.maximumf %93, %94 : vector<24x32xf32>
    %96 = arith.truncf %95 : vector<24x32xf32> to vector<24x32xbf16>
    %cst_52 = arith.constant dense<0.000000e+00> : vector<24x32xf32>
    %97 = tpu.matmul %96, %27, %cst_52 {dimension_numbers = #tpu.dot_dimension_numbers<[1], [0], [0], [1], [0, 0, 1, 1], [], []>} : vector<24x32xbf16>, vector<32x32xbf16>, vector<24x32xf32> -> vector<24x32xf32>
    %98 = arith.addf %2, %97 : vector<24x32xf32>
    %99 = vector.broadcast %13 : vector<1x32xf32> to vector<24x32xf32>
    %100 = arith.addf %98, %99 : vector<24x32xf32>
    %101 = vector.extract_strided_slice %64 {offsets = [96, 0], sizes = [24, 32], strides = [1, 1]} : vector<144x32xf32> to vector<24x32xf32>
    %102 = arith.truncf %101 : vector<24x32xf32> to vector<24x32xbf16>
    %103 = vector.extract_strided_slice %64 {offsets = [120, 0], sizes = [24, 32], strides = [1, 1]} : vector<144x32xf32> to vector<24x32xf32>
    %104 = arith.truncf %103 : vector<24x32xf32> to vector<24x32xbf16>
    %cst_53 = arith.constant dense<0.000000e+00> : vector<24x32xf32>
    %105 = tpu.matmul %102, %28, %cst_53 {dimension_numbers = #tpu.dot_dimension_numbers<[1], [0], [0], [1], [0, 0, 1, 1], [], []>} : vector<24x32xbf16>, vector<32x32xbf16>, vector<24x32xf32> -> vector<24x32xf32>
    %cst_54 = arith.constant dense<0.000000e+00> : vector<24x32xf32>
    %106 = tpu.matmul %104, %29, %cst_54 {dimension_numbers = #tpu.dot_dimension_numbers<[1], [0], [0], [1], [0, 0, 1, 1], [], []>} : vector<24x32xbf16>, vector<32x32xbf16>, vector<24x32xf32> -> vector<24x32xf32>
    %107 = arith.addf %105, %106 : vector<24x32xf32>
    %cst_55 = arith.constant dense<0.000000e+00> : vector<24x32xf32>
    %108 = tpu.matmul %35, %30, %cst_55 {dimension_numbers = #tpu.dot_dimension_numbers<[1], [0], [0], [1], [0, 0, 1, 1], [], []>} : vector<24x32xbf16>, vector<32x32xbf16>, vector<24x32xf32> -> vector<24x32xf32>
    %109 = arith.addf %107, %108 : vector<24x32xf32>
    %110 = vector.broadcast %11 : vector<1x32xf32> to vector<24x32xf32>
    %111 = arith.addf %109, %110 : vector<24x32xf32>
    %cst_56 = arith.constant 0.000000e+00 : f32
    %112 = vector.broadcast %cst_56 : f32 to vector<24x32xf32>
    %113 = arith.maximumf %111, %112 : vector<24x32xf32>
    %114 = arith.truncf %113 : vector<24x32xf32> to vector<24x32xbf16>
    %cst_57 = arith.constant dense<0.000000e+00> : vector<24x32xf32>
    %115 = tpu.matmul %114, %31, %cst_57 {dimension_numbers = #tpu.dot_dimension_numbers<[1], [0], [0], [1], [0, 0, 1, 1], [], []>} : vector<24x32xbf16>, vector<32x32xbf16>, vector<24x32xf32> -> vector<24x32xf32>
    %116 = arith.addf %3, %115 : vector<24x32xf32>
    %117 = vector.broadcast %14 : vector<1x32xf32> to vector<24x32xf32>
    %118 = arith.addf %116, %117 : vector<24x32xf32>
    %119 = arith.truncf %63 : vector<16x32xf32> to vector<16x32xbf16>
    %120 = arith.truncf %82 : vector<24x32xf32> to vector<24x32xbf16>
    %121 = arith.truncf %100 : vector<24x32xf32> to vector<24x32xbf16>
    %122 = arith.truncf %118 : vector<24x32xf32> to vector<24x32xbf16>
    %cst_58 = arith.constant dense<0.000000e+00> : vector<16x32xf32>
    %123 = tpu.matmul %119, %15, %cst_58 {dimension_numbers = #tpu.dot_dimension_numbers<[1], [0], [0], [1], [0, 0, 1, 1], [], []>} : vector<16x32xbf16>, vector<32x32xbf16>, vector<16x32xf32> -> vector<16x32xf32>
    %c0_59 = arith.constant 0 : index
    %c0_60 = arith.constant 0 : index
    %c0_61 = arith.constant 0 : index
    %124 = vector.load %arg2[%c0_59, %c0_60, %c0_61] : memref<3x16x24xbf16, #tpu.memory_space<vmem>>, vector<1x16x24xbf16>
    %125 = vector.shape_cast %124 : vector<1x16x24xbf16> to vector<16x24xbf16>
    %cst_62 = arith.constant dense<0.000000e+00> : vector<16x32xf32>
    %126 = tpu.matmul %125, %120, %cst_62 {dimension_numbers = #tpu.dot_dimension_numbers<[1], [0], [0], [1], [0, 0, 1, 1], [], []>} : vector<16x24xbf16>, vector<24x32xbf16>, vector<16x32xf32> -> vector<16x32xf32>
    %127 = arith.truncf %126 : vector<16x32xf32> to vector<16x32xbf16>
    %cst_63 = arith.constant dense<0.000000e+00> : vector<16x32xf32>
    %128 = tpu.matmul %127, %16, %cst_63 {dimension_numbers = #tpu.dot_dimension_numbers<[1], [0], [0], [1], [0, 0, 1, 1], [], []>} : vector<16x32xbf16>, vector<32x32xbf16>, vector<16x32xf32> -> vector<16x32xf32>
    %129 = arith.addf %123, %128 : vector<16x32xf32>
    %c1_64 = arith.constant 1 : index
    %c0_65 = arith.constant 0 : index
    %c0_66 = arith.constant 0 : index
    %130 = vector.load %arg2[%c1_64, %c0_65, %c0_66] : memref<3x16x24xbf16, #tpu.memory_space<vmem>>, vector<1x16x24xbf16>
    %131 = vector.shape_cast %130 : vector<1x16x24xbf16> to vector<16x24xbf16>
    %cst_67 = arith.constant dense<0.000000e+00> : vector<16x32xf32>
    %132 = tpu.matmul %131, %121, %cst_67 {dimension_numbers = #tpu.dot_dimension_numbers<[1], [0], [0], [1], [0, 0, 1, 1], [], []>} : vector<16x24xbf16>, vector<24x32xbf16>, vector<16x32xf32> -> vector<16x32xf32>
    %133 = arith.truncf %132 : vector<16x32xf32> to vector<16x32xbf16>
    %cst_68 = arith.constant dense<0.000000e+00> : vector<16x32xf32>
    %134 = tpu.matmul %133, %17, %cst_68 {dimension_numbers = #tpu.dot_dimension_numbers<[1], [0], [0], [1], [0, 0, 1, 1], [], []>} : vector<16x32xbf16>, vector<32x32xbf16>, vector<16x32xf32> -> vector<16x32xf32>
    %135 = arith.addf %129, %134 : vector<16x32xf32>
    %c2_69 = arith.constant 2 : index
    %c0_70 = arith.constant 0 : index
    %c0_71 = arith.constant 0 : index
    %136 = vector.load %arg2[%c2_69, %c0_70, %c0_71] : memref<3x16x24xbf16, #tpu.memory_space<vmem>>, vector<1x16x24xbf16>
    %137 = vector.shape_cast %136 : vector<1x16x24xbf16> to vector<16x24xbf16>
    %cst_72 = arith.constant dense<0.000000e+00> : vector<16x32xf32>
    %138 = tpu.matmul %137, %122, %cst_72 {dimension_numbers = #tpu.dot_dimension_numbers<[1], [0], [0], [1], [0, 0, 1, 1], [], []>} : vector<16x24xbf16>, vector<24x32xbf16>, vector<16x32xf32> -> vector<16x32xf32>
    %139 = arith.truncf %138 : vector<16x32xf32> to vector<16x32xbf16>
    %cst_73 = arith.constant dense<0.000000e+00> : vector<16x32xf32>
    %140 = tpu.matmul %139, %18, %cst_73 {dimension_numbers = #tpu.dot_dimension_numbers<[1], [0], [0], [1], [0, 0, 1, 1], [], []>} : vector<16x32xbf16>, vector<32x32xbf16>, vector<16x32xf32> -> vector<16x32xf32>
    %141 = arith.addf %135, %140 : vector<16x32xf32>
    %142 = vector.broadcast %7 : vector<1x32xf32> to vector<16x32xf32>
    %143 = arith.addf %141, %142 : vector<16x32xf32>
    %cst_74 = arith.constant 0.000000e+00 : f32
    %144 = vector.broadcast %cst_74 : f32 to vector<16x32xf32>
    %145 = arith.maximumf %143, %144 : vector<16x32xf32>
    %146 = arith.truncf %145 : vector<16x32xf32> to vector<16x32xbf16>
    %cst_75 = arith.constant dense<0.000000e+00> : vector<16x32xf32>
    %147 = tpu.matmul %146, %19, %cst_75 {dimension_numbers = #tpu.dot_dimension_numbers<[1], [0], [0], [1], [0, 0, 1, 1], [], []>} : vector<16x32xbf16>, vector<32x32xbf16>, vector<16x32xf32> -> vector<16x32xf32>
    %148 = arith.addf %63, %147 : vector<16x32xf32>
    %149 = vector.broadcast %8 : vector<1x32xf32> to vector<16x32xf32>
    %150 = arith.addf %148, %149 : vector<16x32xf32>
    %cst_76 = arith.constant dense<0.000000e+00> : vector<144x32xf32>
    %151 = tpu.matmul %4, %119, %cst_76 {dimension_numbers = #tpu.dot_dimension_numbers<[1], [0], [0], [1], [0, 0, 1, 1], [], []>} : vector<144x16xbf16>, vector<16x32xbf16>, vector<144x32xf32> -> vector<144x32xf32>
    %152 = vector.extract_strided_slice %151 {offsets = [0, 0], sizes = [24, 32], strides = [1, 1]} : vector<144x32xf32> to vector<24x32xf32>
    %153 = arith.truncf %152 : vector<24x32xf32> to vector<24x32xbf16>
    %154 = vector.extract_strided_slice %151 {offsets = [24, 0], sizes = [24, 32], strides = [1, 1]} : vector<144x32xf32> to vector<24x32xf32>
    %155 = arith.truncf %154 : vector<24x32xf32> to vector<24x32xbf16>
    %cst_77 = arith.constant dense<0.000000e+00> : vector<24x32xf32>
    %156 = tpu.matmul %153, %20, %cst_77 {dimension_numbers = #tpu.dot_dimension_numbers<[1], [0], [0], [1], [0, 0, 1, 1], [], []>} : vector<24x32xbf16>, vector<32x32xbf16>, vector<24x32xf32> -> vector<24x32xf32>
    %cst_78 = arith.constant dense<0.000000e+00> : vector<24x32xf32>
    %157 = tpu.matmul %155, %21, %cst_78 {dimension_numbers = #tpu.dot_dimension_numbers<[1], [0], [0], [1], [0, 0, 1, 1], [], []>} : vector<24x32xbf16>, vector<32x32xbf16>, vector<24x32xf32> -> vector<24x32xf32>
    %158 = arith.addf %156, %157 : vector<24x32xf32>
    %cst_79 = arith.constant dense<0.000000e+00> : vector<24x32xf32>
    %159 = tpu.matmul %120, %22, %cst_79 {dimension_numbers = #tpu.dot_dimension_numbers<[1], [0], [0], [1], [0, 0, 1, 1], [], []>} : vector<24x32xbf16>, vector<32x32xbf16>, vector<24x32xf32> -> vector<24x32xf32>
    %160 = arith.addf %158, %159 : vector<24x32xf32>
    %161 = vector.broadcast %9 : vector<1x32xf32> to vector<24x32xf32>
    %162 = arith.addf %160, %161 : vector<24x32xf32>
    %cst_80 = arith.constant 0.000000e+00 : f32
    %163 = vector.broadcast %cst_80 : f32 to vector<24x32xf32>
    %164 = arith.maximumf %162, %163 : vector<24x32xf32>
    %165 = arith.truncf %164 : vector<24x32xf32> to vector<24x32xbf16>
    %cst_81 = arith.constant dense<0.000000e+00> : vector<24x32xf32>
    %166 = tpu.matmul %165, %23, %cst_81 {dimension_numbers = #tpu.dot_dimension_numbers<[1], [0], [0], [1], [0, 0, 1, 1], [], []>} : vector<24x32xbf16>, vector<32x32xbf16>, vector<24x32xf32> -> vector<24x32xf32>
    %167 = arith.addf %82, %166 : vector<24x32xf32>
    %168 = vector.broadcast %12 : vector<1x32xf32> to vector<24x32xf32>
    %169 = arith.addf %167, %168 : vector<24x32xf32>
    %170 = vector.extract_strided_slice %151 {offsets = [48, 0], sizes = [24, 32], strides = [1, 1]} : vector<144x32xf32> to vector<24x32xf32>
    %171 = arith.truncf %170 : vector<24x32xf32> to vector<24x32xbf16>
    %172 = vector.extract_strided_slice %151 {offsets = [72, 0], sizes = [24, 32], strides = [1, 1]} : vector<144x32xf32> to vector<24x32xf32>
    %173 = arith.truncf %172 : vector<24x32xf32> to vector<24x32xbf16>
    %cst_82 = arith.constant dense<0.000000e+00> : vector<24x32xf32>
    %174 = tpu.matmul %171, %24, %cst_82 {dimension_numbers = #tpu.dot_dimension_numbers<[1], [0], [0], [1], [0, 0, 1, 1], [], []>} : vector<24x32xbf16>, vector<32x32xbf16>, vector<24x32xf32> -> vector<24x32xf32>
    %cst_83 = arith.constant dense<0.000000e+00> : vector<24x32xf32>
    %175 = tpu.matmul %173, %25, %cst_83 {dimension_numbers = #tpu.dot_dimension_numbers<[1], [0], [0], [1], [0, 0, 1, 1], [], []>} : vector<24x32xbf16>, vector<32x32xbf16>, vector<24x32xf32> -> vector<24x32xf32>
    %176 = arith.addf %174, %175 : vector<24x32xf32>
    %cst_84 = arith.constant dense<0.000000e+00> : vector<24x32xf32>
    %177 = tpu.matmul %121, %26, %cst_84 {dimension_numbers = #tpu.dot_dimension_numbers<[1], [0], [0], [1], [0, 0, 1, 1], [], []>} : vector<24x32xbf16>, vector<32x32xbf16>, vector<24x32xf32> -> vector<24x32xf32>
    %178 = arith.addf %176, %177 : vector<24x32xf32>
    %179 = vector.broadcast %10 : vector<1x32xf32> to vector<24x32xf32>
    %180 = arith.addf %178, %179 : vector<24x32xf32>
    %cst_85 = arith.constant 0.000000e+00 : f32
    %181 = vector.broadcast %cst_85 : f32 to vector<24x32xf32>
    %182 = arith.maximumf %180, %181 : vector<24x32xf32>
    %183 = arith.truncf %182 : vector<24x32xf32> to vector<24x32xbf16>
    %cst_86 = arith.constant dense<0.000000e+00> : vector<24x32xf32>
    %184 = tpu.matmul %183, %27, %cst_86 {dimension_numbers = #tpu.dot_dimension_numbers<[1], [0], [0], [1], [0, 0, 1, 1], [], []>} : vector<24x32xbf16>, vector<32x32xbf16>, vector<24x32xf32> -> vector<24x32xf32>
    %185 = arith.addf %100, %184 : vector<24x32xf32>
    %186 = vector.broadcast %13 : vector<1x32xf32> to vector<24x32xf32>
    %187 = arith.addf %185, %186 : vector<24x32xf32>
    %188 = vector.extract_strided_slice %151 {offsets = [96, 0], sizes = [24, 32], strides = [1, 1]} : vector<144x32xf32> to vector<24x32xf32>
    %189 = arith.truncf %188 : vector<24x32xf32> to vector<24x32xbf16>
    %190 = vector.extract_strided_slice %151 {offsets = [120, 0], sizes = [24, 32], strides = [1, 1]} : vector<144x32xf32> to vector<24x32xf32>
    %191 = arith.truncf %190 : vector<24x32xf32> to vector<24x32xbf16>
    %cst_87 = arith.constant dense<0.000000e+00> : vector<24x32xf32>
    %192 = tpu.matmul %189, %28, %cst_87 {dimension_numbers = #tpu.dot_dimension_numbers<[1], [0], [0], [1], [0, 0, 1, 1], [], []>} : vector<24x32xbf16>, vector<32x32xbf16>, vector<24x32xf32> -> vector<24x32xf32>
    %cst_88 = arith.constant dense<0.000000e+00> : vector<24x32xf32>
    %193 = tpu.matmul %191, %29, %cst_88 {dimension_numbers = #tpu.dot_dimension_numbers<[1], [0], [0], [1], [0, 0, 1, 1], [], []>} : vector<24x32xbf16>, vector<32x32xbf16>, vector<24x32xf32> -> vector<24x32xf32>
    %194 = arith.addf %192, %193 : vector<24x32xf32>
    %cst_89 = arith.constant dense<0.000000e+00> : vector<24x32xf32>
    %195 = tpu.matmul %122, %30, %cst_89 {dimension_numbers = #tpu.dot_dimension_numbers<[1], [0], [0], [1], [0, 0, 1, 1], [], []>} : vector<24x32xbf16>, vector<32x32xbf16>, vector<24x32xf32> -> vector<24x32xf32>
    %196 = arith.addf %194, %195 : vector<24x32xf32>
    %197 = vector.broadcast %11 : vector<1x32xf32> to vector<24x32xf32>
    %198 = arith.addf %196, %197 : vector<24x32xf32>
    %cst_90 = arith.constant 0.000000e+00 : f32
    %199 = vector.broadcast %cst_90 : f32 to vector<24x32xf32>
    %200 = arith.maximumf %198, %199 : vector<24x32xf32>
    %201 = arith.truncf %200 : vector<24x32xf32> to vector<24x32xbf16>
    %cst_91 = arith.constant dense<0.000000e+00> : vector<24x32xf32>
    %202 = tpu.matmul %201, %31, %cst_91 {dimension_numbers = #tpu.dot_dimension_numbers<[1], [0], [0], [1], [0, 0, 1, 1], [], []>} : vector<24x32xbf16>, vector<32x32xbf16>, vector<24x32xf32> -> vector<24x32xf32>
    %203 = arith.addf %118, %202 : vector<24x32xf32>
    %204 = vector.broadcast %14 : vector<1x32xf32> to vector<24x32xf32>
    %205 = arith.addf %203, %204 : vector<24x32xf32>
    %cst_92 = arith.constant 0.000000e+00 : f32
    %206 = vector.broadcast %cst_92 : f32 to vector<8x32xf32>
    %207 = tpu.concatenate %150, %206 in 0 : vector<16x32xf32>, vector<8x32xf32> -> vector<24x32xf32>
    %208 = tpu.concatenate %169, %187, %205, %207 in 1 : vector<24x32xf32>, vector<24x32xf32>, vector<24x32xf32>, vector<24x32xf32> -> vector<24x128xf32>
    %c0_93 = arith.constant 0 : index
    %c0_94 = arith.constant 0 : index
    %209 = vector.load %arg6[%c0_93, %c0_94] : memref<88x128xf32, #tpu.memory_space<vmem>>, vector<24x128xf32>
    tpu.vector_store %arg6[%c0_93, %c0_94], %208 {strides = array<i32>} : memref<88x128xf32, #tpu.memory_space<vmem>>, vector<24x128xf32>,
    %210 = arith.truncf %150 : vector<16x32xf32> to vector<16x32xbf16>
    %cst_95 = arith.constant dense<0.000000e+00> : vector<144x32xf32>
    %211 = tpu.matmul %4, %210, %cst_95 {dimension_numbers = #tpu.dot_dimension_numbers<[1], [0], [0], [1], [0, 0, 1, 1], [], []>} : vector<144x16xbf16>, vector<16x32xbf16>, vector<144x32xf32> -> vector<144x32xf32>
    %212 = vector.extract_strided_slice %211 {offsets = [0, 0], sizes = [24, 32], strides = [1, 1]} : vector<144x32xf32> to vector<24x32xf32>
    %213 = vector.extract_strided_slice %211 {offsets = [24, 0], sizes = [24, 32], strides = [1, 1]} : vector<144x32xf32> to vector<24x32xf32>
    %214 = vector.extract_strided_slice %211 {offsets = [96, 0], sizes = [24, 32], strides = [1, 1]} : vector<144x32xf32> to vector<24x32xf32>
    %215 = vector.extract_strided_slice %211 {offsets = [120, 0], sizes = [24, 32], strides = [1, 1]} : vector<144x32xf32> to vector<24x32xf32>
    %cst_96 = arith.constant 0.000000e+00 : f32
    %216 = vector.broadcast %cst_96 : f32 to vector<16x32xf32>
    %217 = tpu.concatenate %212, %214, %150 in 0 : vector<24x32xf32>, vector<24x32xf32>, vector<16x32xf32> -> vector<64x32xf32>
    %218 = arith.truncf %217 : vector<64x32xf32> to vector<64x32xbf16>
    %219 = tpu.concatenate %213, %215, %216 in 0 : vector<24x32xf32>, vector<24x32xf32>, vector<16x32xf32> -> vector<64x32xf32>
    %220 = arith.truncf %219 : vector<64x32xf32> to vector<64x32xbf16>
    %221 = tpu.concatenate %169, %205, %216 in 0 : vector<24x32xf32>, vector<24x32xf32>, vector<16x32xf32> -> vector<64x32xf32>
    %222 = arith.truncf %221 : vector<64x32xf32> to vector<64x32xbf16>
    %c0_97 = arith.constant 0 : index
    %c0_98 = arith.constant 0 : index
    %223 = vector.load %arg4[%c0_97, %c0_98] : memref<96x128xbf16, #tpu.memory_space<vmem>>, vector<32x128xbf16>
    %cst_99 = arith.constant dense<0.000000e+00> : vector<64x128xf32>
    %224 = tpu.matmul %218, %223, %cst_99 {dimension_numbers = #tpu.dot_dimension_numbers<[1], [0], [0], [1], [0, 0, 1, 1], [], []>} : vector<64x32xbf16>, vector<32x128xbf16>, vector<64x128xf32> -> vector<64x128xf32>
    %c32_100 = arith.constant 32 : index
    %c0_101 = arith.constant 0 : index
    %225 = vector.load %arg4[%c32_100, %c0_101] : memref<96x128xbf16, #tpu.memory_space<vmem>>, vector<32x128xbf16>
    %cst_102 = arith.constant dense<0.000000e+00> : vector<64x128xf32>
    %226 = tpu.matmul %220, %225, %cst_102 {dimension_numbers = #tpu.dot_dimension_numbers<[1], [0], [0], [1], [0, 0, 1, 1], [], []>} : vector<64x32xbf16>, vector<32x128xbf16>, vector<64x128xf32> -> vector<64x128xf32>
    %227 = arith.addf %224, %226 : vector<64x128xf32>
    %c64_103 = arith.constant 64 : index
    %c0_104 = arith.constant 0 : index
    %228 = vector.load %arg4[%c64_103, %c0_104] : memref<96x128xbf16, #tpu.memory_space<vmem>>, vector<32x128xbf16>
    %cst_105 = arith.constant dense<0.000000e+00> : vector<64x128xf32>
    %229 = tpu.matmul %222, %228, %cst_105 {dimension_numbers = #tpu.dot_dimension_numbers<[1], [0], [0], [1], [0, 0, 1, 1], [], []>} : vector<64x32xbf16>, vector<32x128xbf16>, vector<64x128xf32> -> vector<64x128xf32>
    %230 = arith.addf %227, %229 : vector<64x128xf32>
    %231 = vector.broadcast %6 : vector<1x128xf32> to vector<64x128xf32>
    %232 = arith.addf %230, %231 : vector<64x128xf32>
    %c24 = arith.constant 24 : index
    %c0_106 = arith.constant 0 : index
    %233 = vector.load %arg6[%c24, %c0_106] : memref<88x128xf32, #tpu.memory_space<vmem>>, vector<64x128xf32>
    tpu.vector_store %arg6[%c24, %c0_106], %232 {strides = array<i32>} : memref<88x128xf32, #tpu.memory_space<vmem>>, vector<64x128xf32>,
    return
  }
}

</mosaic_0001>

<llo_original>
// kernel: forward.1
$region0: #{forward.1}
  #allocation0 [shape = 'u32[]', space=smem, size = 0x4, offset = 0x4, fixed_abs, tag = 'smem constant byte address 0x4 - core index']
  #allocation1 [shape = 'u32[144,128]{1,0:T(1,128)}', space=vmem, size = 0x12000, scoped, tag = 'internal scratch']
  %s0 = inlined_call_operand.vmem [shape: f32[88,32], index: 0, kind: input, shape index: {}]
  %s1 = inlined_call_operand.vmem [shape: bf16[144,16], index: 1, kind: input, shape index: {}]
  %s2 = inlined_call_operand.vmem [shape: bf16[3,16,24], index: 2, kind: input, shape index: {}]
  %s3 = inlined_call_operand.vmem [shape: bf16[544,32], index: 3, kind: input, shape index: {}]
  %s4 = inlined_call_operand.vmem [shape: bf16[96,128], index: 4, kind: input, shape index: {}]
  %s5 = inlined_call_operand.vmem [shape: f32[9,128], index: 5, kind: input, shape index: {}]
  %s6 = inlined_call_operand.vmem [shape: f32[88,128], index: 6, kind: output, shape index: {}]
  %s7 = sld [smem:[#allocation0]]
  $region34: #{forward.1} parent=0
    _
  %s9 = ssub.s32 1, %s7
  %s10 = scalar_select 0, %s9, %s7
  // Predicated region
  $region2: #{forward.1} parent=0 // pred_check
    _
  $region3: #{forward.1} parent=0 // pred_check_branch
    %12 = sbr.rel (0) target = $region5
  $region4: #{forward.1} parent=0 // pred_region
    _
  $region5: #{forward.1} parent=0 // pred_fallthru
    _
  // Predicated region
  $region6: #{forward.1} parent=0 // pred_check
    _
  $region7: #{forward.1} parent=0 // pred_check_branch
    %14 = sbr.rel (0) target = $region9
  $region8: #{forward.1} parent=0 // pred_region
    _
  $region9: #{forward.1} parent=0 // pred_fallthru
    _
  // Predicated region
  $region10: #{forward.1} parent=0 // pred_check
    _
  $region11: #{forward.1} parent=0 // pred_check_branch
    %16 = sbr.rel (0) target = $region13
  $region12: #{forward.1} parent=0 // pred_region
    _
  $region13: #{forward.1} parent=0 // pred_fallthru
    _
  // Predicated region
  $region14: #{forward.1} parent=0 // pred_check
    _
  $region15: #{forward.1} parent=0 // pred_check_branch
    %18 = sbr.rel (0) target = $region17
  $region16: #{forward.1} parent=0 // pred_region
    _
  $region17: #{forward.1} parent=0 // pred_fallthru
    _
  // Predicated region
  $region18: #{forward.1} parent=0 // pred_check
    _
  $region19: #{forward.1} parent=0 // pred_check_branch
    %20 = sbr.rel (0) target = $region21
  $region20: #{forward.1} parent=0 // pred_region
    _
  $region21: #{forward.1} parent=0 // pred_fallthru
    _
  // Predicated region
  $region22: #{forward.1} parent=0 // pred_check
    _
  $region23: #{forward.1} parent=0 // pred_check_branch
    %22 = sbr.rel (0) target = $region25
  $region24: #{forward.1} parent=0 // pred_region
    _
  $region25: #{forward.1} parent=0 // pred_fallthru
    _
  %v24 = vld [vmem:[%s0] sm:$0xff]
  %v25 = vld [vmem:[%s0 + $0x8] sm:$0xff]
  %v26 = vld [vmem:[%s0 + $0x10] sm:$0xff]
  %v27 = vld [vmem:[%s0 + $0x18] sm:$0xff]
  %v28 = vld [vmem:[%s0 + $0x20] sm:$0xff]
  %v29 = vld [vmem:[%s0 + $0x28] sm:$0xff]
  %v30 = vld [vmem:[%s0 + $0x30] sm:$0xff]
  %v31 = vld [vmem:[%s0 + $0x38] sm:$0xff]
  %v32 = vld [vmem:[%s0 + $0x40] sm:$0xff]
  %v33 = vld [vmem:[%s0 + $0x48] sm:$0xff]
  %v34 = vld [vmem:[%s0 + $0x50] sm:$0xff]
  %v35 = vld [vmem:[%s1] sm:$0xf]
  %v36 = vld [vmem:[%s1 + $0x4] sm:$0xf]
  %v37 = vld [vmem:[%s1 + $0x8] sm:$0xf]
  %v38 = vld [vmem:[%s1 + $0xc] sm:$0xf]
  %v39 = vld [vmem:[%s1 + $0x10] sm:$0xf]
  %v40 = vld [vmem:[%s1 + $0x14] sm:$0xf]
  %v41 = vld [vmem:[%s1 + $0x18] sm:$0xf]
  %v42 = vld [vmem:[%s1 + $0x1c] sm:$0xf]
  %v43 = vld [vmem:[%s1 + $0x20] sm:$0xf]
  %v44 = vld [vmem:[%s1 + $0x24] sm:$0xf]
  %v45 = vld [vmem:[%s1 + $0x28] sm:$0xf]
  %v46 = vld [vmem:[%s1 + $0x2c] sm:$0xf]
  %v47 = vld [vmem:[%s1 + $0x30] sm:$0xf]
  %v48 = vld [vmem:[%s1 + $0x34] sm:$0xf]
  %v49 = vld [vmem:[%s1 + $0x38] sm:$0xf]
  %v50 = vld [vmem:[%s1 + $0x3c] sm:$0xf]
  %v51 = vld [vmem:[%s1 + $0x40] sm:$0xf]
  %v52 = vld [vmem:[%s1 + $0x44] sm:$0xf]
  %v53 = vld [vmem:[%s5] sm:$0xff]
  %v54 = vld [vmem:[%s5 + $0x8] sm:$0x1]
  %v55 = vld [vmem:[%s3] sm:$0xf]
  %v56 = vld [vmem:[%s3 + $0x4] sm:$0xf]
  %v57 = vld [vmem:[%s3 + $0x8] sm:$0xf]
  %v58 = vld [vmem:[%s3 + $0xc] sm:$0xf]
  %v59 = vld [vmem:[%s3 + $0x10] sm:$0xf]
  %v60 = vld [vmem:[%s3 + $0x14] sm:$0xf]
  %v61 = vld [vmem:[%s3 + $0x18] sm:$0xf]
  %v62 = vld [vmem:[%s3 + $0x1c] sm:$0xf]
  %v63 = vld [vmem:[%s3 + $0x20] sm:$0xf]
  %v64 = vld [vmem:[%s3 + $0x24] sm:$0xf]
  %v65 = vld [vmem:[%s3 + $0x28] sm:$0xf]
  %v66 = vld [vmem:[%s3 + $0x2c] sm:$0xf]
  %v67 = vld [vmem:[%s3 + $0x30] sm:$0xf]
  %v68 = vld [vmem:[%s3 + $0x34] sm:$0xf]
  %v69 = vld [vmem:[%s3 + $0x38] sm:$0xf]
  %v70 = vld [vmem:[%s3 + $0x3c] sm:$0xf]
  %v71 = vld [vmem:[%s3 + $0x40] sm:$0xf]
  %v72 = vld [vmem:[%s3 + $0x44] sm:$0xf]
  %v73 = vld [vmem:[%s3 + $0x48] sm:$0xf]
  %v74 = vld [vmem:[%s3 + $0x4c] sm:$0xf]
  %v75 = vld [vmem:[%s3 + $0x50] sm:$0xf]
  %v76 = vld [vmem:[%s3 + $0x54] sm:$0xf]
  %v77 = vld [vmem:[%s3 + $0x58] sm:$0xf]
  %v78 = vld [vmem:[%s3 + $0x5c] sm:$0xf]
  %v79 = vld [vmem:[%s3 + $0x60] sm:$0xf]
  %v80 = vld [vmem:[%s3 + $0x64] sm:$0xf]
  %v81 = vld [vmem:[%s3 + $0x68] sm:$0xf]
  %v82 = vld [vmem:[%s3 + $0x6c] sm:$0xf]
  %v83 = vld [vmem:[%s3 + $0x70] sm:$0xf]
  %v84 = vld [vmem:[%s3 + $0x74] sm:$0xf]
  %v85 = vld [vmem:[%s3 + $0x78] sm:$0xf]
  %v86 = vld [vmem:[%s3 + $0x7c] sm:$0xf]
  %v87 = vld [vmem:[%s3 + $0x80] sm:$0xf]
  %v88 = vld [vmem:[%s3 + $0x84] sm:$0xf]
  %v89 = vld [vmem:[%s3 + $0x88] sm:$0xf]
  %v90 = vld [vmem:[%s3 + $0x8c] sm:$0xf]
  %v91 = vld [vmem:[%s3 + $0x90] sm:$0xf]
  %v92 = vld [vmem:[%s3 + $0x94] sm:$0xf]
  %v93 = vld [vmem:[%s3 + $0x98] sm:$0xf]
  %v94 = vld [vmem:[%s3 + $0x9c] sm:$0xf]
  %v95 = vld [vmem:[%s3 + $0xa0] sm:$0xf]
  %v96 = vld [vmem:[%s3 + $0xa4] sm:$0xf]
  %v97 = vld [vmem:[%s3 + $0xa8] sm:$0xf]
  %v98 = vld [vmem:[%s3 + $0xac] sm:$0xf]
  %v99 = vld [vmem:[%s3 + $0xb0] sm:$0xf]
  %v100 = vld [vmem:[%s3 + $0xb4] sm:$0xf]
  %v101 = vld [vmem:[%s3 + $0xb8] sm:$0xf]
  %v102 = vld [vmem:[%s3 + $0xbc] sm:$0xf]
  %v103 = vld [vmem:[%s3 + $0xc0] sm:$0xf]
  %v104 = vld [vmem:[%s3 + $0xc4] sm:$0xf]
  %v105 = vld [vmem:[%s3 + $0xc8] sm:$0xf]
  %v106 = vld [vmem:[%s3 + $0xcc] sm:$0xf]
  %v107 = vld [vmem:[%s3 + $0xd0] sm:$0xf]
  %v108 = vld [vmem:[%s3 + $0xd4] sm:$0xf]
  %v109 = vld [vmem:[%s3 + $0xd8] sm:$0xf]
  %v110 = vld [vmem:[%s3 + $0xdc] sm:$0xf]
  %v111 = vld [vmem:[%s3 + $0xe0] sm:$0xf]
  %v112 = vld [vmem:[%s3 + $0xe4] sm:$0xf]
  %v113 = vld [vmem:[%s3 + $0xe8] sm:$0xf]
  %v114 = vld [vmem:[%s3 + $0xec] sm:$0xf]
  %v115 = vld [vmem:[%s3 + $0xf0] sm:$0xf]
  %v116 = vld [vmem:[%s3 + $0xf4] sm:$0xf]
  %v117 = vld [vmem:[%s3 + $0xf8] sm:$0xf]
  %v118 = vld [vmem:[%s3 + $0xfc] sm:$0xf]
  %v119 = vld [vmem:[%s3 + $0x100] sm:$0xf]
  %v120 = vld [vmem:[%s3 + $0x104] sm:$0xf]
  %v121 = vld [vmem:[%s3 + $0x108] sm:$0xf]
  %v122 = vld [vmem:[%s3 + $0x10c] sm:$0xf]
  %v123 = vpack.c.bf16 %v25, %v24
  %v124 = vpack.c.bf16 %v27, %v26
  %v125 = vpack.c.bf16 %v28, %v28
  %v126 = vpack.c.bf16 %v30, %v29
  %v127 = vpack.c.bf16 %v31, %v31
  %v128 = vpack.c.bf16 %v33, %v32
  %v129 = vpack.c.bf16 %v34, %v34
  %v130 = vld [vmem:[%s2] sm:$0xf]
  %v131 = vld [vmem:[%s2 + $0x4] sm:$0xf]
  %v134 = vunpack.c.l.b16 %v130
  %v135 = vunpack.c.l.b16 %v131
  %v136 = vpack.c.b16 %v135, %v134
  %vm137 = vcmask 195584
  %v139 = vsel %vm137, %v136, 0
  %vm141 = vcmask 1043456
  %v143 = vsel %vm141, %v125, 0
  %145 = vmatprep.subr.bf16.mxu0 0
  %146 = vmatpush1.bf16.msra.mxu0 0
  %147 = vmatprep.subr.bf16.mxu0 0
  %148 = vmatpush1.bf16.msra.mxu0 0
  %149 = vmatprep.subr.bf16.mxu0 0
  %150 = vmatpush1.bf16.msra.mxu0 0
  %151 = vmatprep.subr.bf16.mxu0 0
  %152 = vmatpush1.bf16.msra.mxu0 0
  %153 = vmatprep.subr.bf16.mxu0 0
  %154 = vmatpush1.bf16.msra.mxu0 0
  %155 = vmatprep.subr.bf16.mxu0 0
  %156 = vmatpush1.bf16.msra.mxu0 0
  %157 = vmatprep.subr.bf16.mxu0 0
  %158 = vmatpush1.bf16.msra.mxu0 %v143
  %159 = vmatprep.subr.bf16.mxu0 0
  %160 = vmatpush1.bf16.msra.mxu0 %v124
  %161 = vmatprep.subr.bf16.mxu0 0
  %162 = vmatpush2.bf16.msra.mxu0 0
  %163 = vmatprep.subr.bf16.mxu0 0
  %164 = vmatpush2.bf16.msra.mxu0 0
  %165 = vmatprep.subr.bf16.mxu0 0
  %166 = vmatpush2.bf16.msra.mxu0 0
  %167 = vmatprep.subr.bf16.mxu0 0
  %168 = vmatpush2.bf16.msra.mxu0 0
  %169 = vmatprep.subr.bf16.mxu0 0
  %170 = vmatpush2.bf16.msra.mxu0 0
  %171 = vmatprep.subr.bf16.mxu0 0
  %172 = vmatpush2.bf16.msra.mxu0 0
  %173 = vmatprep.subr.bf16.mxu0 0
  %174 = vmatpush2.bf16.msra.mxu0 0
  %175 = vmatprep.subr.bf16.mxu0 0
  %176 = vmatpush2.bf16.msra.mxu0 0
  %177 = vmatprep.mubr.bf16.mxu0 0
  %178 = vmatmul.mubr.bf16.gmra.mxu0 %v139
  %v179 = vpop.f32.mrf.mxu0
  %v180 = vadd.f32 0.0, %v179
  %v181 = vpop.f32.mrf.mxu0
  %v182 = vpop.f32.mrf.mxu0
  %v183 = vadd.f32 0.0, %v182
  %v184 = vpop.f32.mrf.mxu0
  %185 = vdwg.mxu0
  %v186 = vpack.c.bf16 %v183, %v180
  %v191 = vunpack.c.l.b16 %v59
  %v192 = vunpack.c.l.b16 %v60
  %v193 = vunpack.c.l.b16 %v61
  %v194 = vunpack.c.l.b16 %v62
  %v195 = vpack.c.b16 %v192, %v191
  %v196 = vpack.c.b16 %v194, %v193
  %vm199 = vcmask 261120
  %v201 = vsel %vm199, %v186, 0
  %203 = vmatprep.subr.bf16.mxu0 0
  %204 = vmatpush1.bf16.msra.mxu0 0
  %205 = vmatprep.subr.bf16.mxu0 0
  %206 = vmatpush1.bf16.msra.mxu0 0
  %207 = vmatprep.subr.bf16.mxu0 0
  %208 = vmatpush1.bf16.msra.mxu0 0
  %209 = vmatprep.subr.bf16.mxu0 0
  %210 = vmatpush1.bf16.msra.mxu0 0
  %211 = vmatprep.subr.bf16.mxu0 0
  %212 = vmatpush1.bf16.msra.mxu0 0
  %213 = vmatprep.subr.bf16.mxu0 0
  %214 = vmatpush1.bf16.msra.mxu0 0
  %215 = vmatprep.subr.bf16.mxu0 0
  %216 = vmatpush1.bf16.msra.mxu0 %v196
  %217 = vmatprep.subr.bf16.mxu0 0
  %218 = vmatpush1.bf16.msra.mxu0 %v195
  %219 = vmatprep.subr.bf16.mxu0 0
  %220 = vmatpush2.bf16.msra.mxu0 0
  %221 = vmatprep.subr.bf16.mxu0 0
  %222 = vmatpush2.bf16.msra.mxu0 0
  %223 = vmatprep.subr.bf16.mxu0 0
  %224 = vmatpush2.bf16.msra.mxu0 0
  %225 = vmatprep.subr.bf16.mxu0 0
  %226 = vmatpush2.bf16.msra.mxu0 0
  %227 = vmatprep.subr.bf16.mxu0 0
  %228 = vmatpush2.bf16.msra.mxu0 0
  %229 = vmatprep.subr.bf16.mxu0 0
  %230 = vmatpush2.bf16.msra.mxu0 0
  %231 = vmatprep.subr.bf16.mxu0 0
  %232 = vmatpush2.bf16.msra.mxu0 0
  %233 = vmatprep.subr.bf16.mxu0 0
  %234 = vmatpush2.bf16.msra.mxu0 0
  %235 = vmatprep.mubr.bf16.mxu0 0
  %236 = vmatmul.mubr.bf16.gmra.mxu0 %v201
  %v237 = vpop.f32.mrf.mxu0
  %v238 = vadd.f32 0.0, %v237
  %v239 = vpop.f32.mrf.mxu0
  %v240 = vpop.f32.mrf.mxu0
  %v241 = vadd.f32 0.0, %v240
  %v242 = vpop.f32.mrf.mxu0
  %243 = vdwg.mxu0
  %v248 = vunpack.c.l.b16 %v55
  %v249 = vunpack.c.l.b16 %v56
  %v250 = vunpack.c.l.b16 %v57
  %v251 = vunpack.c.l.b16 %v58
  %v252 = vpack.c.b16 %v249, %v248
  %v253 = vpack.c.b16 %v251, %v250
  %v257 = vsel %vm199, %v123, 0
  %259 = vmatprep.subr.bf16.mxu0 0
  %260 = vmatpush1.bf16.msra.mxu0 0
  %261 = vmatprep.subr.bf16.mxu0 0
  %262 = vmatpush1.bf16.msra.mxu0 0
  %263 = vmatprep.subr.bf16.mxu0 0
  %264 = vmatpush1.bf16.msra.mxu0 0
  %265 = vmatprep.subr.bf16.mxu0 0
  %266 = vmatpush1.bf16.msra.mxu0 0
  %267 = vmatprep.subr.bf16.mxu0 0
  %268 = vmatpush1.bf16.msra.mxu0 0
  %269 = vmatprep.subr.bf16.mxu0 0
  %270 = vmatpush1.bf16.msra.mxu0 0
  %271 = vmatprep.subr.bf16.mxu0 0
  %272 = vmatpush1.bf16.msra.mxu0 %v253
  %273 = vmatprep.subr.bf16.mxu0 0
  %274 = vmatpush1.bf16.msra.mxu0 %v252
  %275 = vmatprep.subr.bf16.mxu0 0
  %276 = vmatpush2.bf16.msra.mxu0 0
  %277 = vmatprep.subr.bf16.mxu0 0
  %278 = vmatpush2.bf16.msra.mxu0 0
  %279 = vmatprep.subr.bf16.mxu0 0
  %280 = vmatpush2.bf16.msra.mxu0 0
  %281 = vmatprep.subr.bf16.mxu0 0
  %282 = vmatpush2.bf16.msra.mxu0 0
  %283 = vmatprep.subr.bf16.mxu0 0
  %284 = vmatpush2.bf16.msra.mxu0 0
  %285 = vmatprep.subr.bf16.mxu0 0
  %286 = vmatpush2.bf16.msra.mxu0 0
  %287 = vmatprep.subr.bf16.mxu0 0
  %288 = vmatpush2.bf16.msra.mxu0 0
  %289 = vmatprep.subr.bf16.mxu0 0
  %290 = vmatpush2.bf16.msra.mxu0 0
  %291 = vmatprep.mubr.bf16.mxu0 0
  %292 = vmatmul.mubr.bf16.gmra.mxu0 %v257
  %v293 = vpop.f32.mrf.mxu0
  %v294 = vadd.f32 %v238, %v293
  %v295 = vpop.f32.mrf.mxu0
  %v296 = vpop.f32.mrf.mxu0
  %v297 = vadd.f32 %v241, %v296
  %v298 = vpop.f32.mrf.mxu0
  %299 = vdwg.mxu0
  %s300 = scalar_lea.vmem %s2, 8
  %v301 = vld [vmem:[%s300] sm:$0xf]
  %v302 = vld [vmem:[%s300 + $0x4] sm:$0xf]
  %v305 = vunpack.c.l.b16 %v301
  %v306 = vunpack.c.l.b16 %v302
  %v307 = vpack.c.b16 %v306, %v305
  %v309 = vsel %vm137, %v307, 0
  %v312 = vsel %vm141, %v127, 0
  %314 = vmatprep.subr.bf16.mxu0 0
  %315 = vmatpush1.bf16.msra.mxu0 0
  %316 = vmatprep.subr.bf16.mxu0 0
  %317 = vmatpush1.bf16.msra.mxu0 0
  %318 = vmatprep.subr.bf16.mxu0 0
  %319 = vmatpush1.bf16.msra.mxu0 0
  %320 = vmatprep.subr.bf16.mxu0 0
  %321 = vmatpush1.bf16.msra.mxu0 0
  %322 = vmatprep.subr.bf16.mxu0 0
  %323 = vmatpush1.bf16.msra.mxu0 0
  %324 = vmatprep.subr.bf16.mxu0 0
  %325 = vmatpush1.bf16.msra.mxu0 0
  %326 = vmatprep.subr.bf16.mxu0 0
  %327 = vmatpush1.bf16.msra.mxu0 %v312
  %328 = vmatprep.subr.bf16.mxu0 0
  %329 = vmatpush1.bf16.msra.mxu0 %v126
  %330 = vmatprep.subr.bf16.mxu0 0
  %331 = vmatpush2.bf16.msra.mxu0 0
  %332 = vmatprep.subr.bf16.mxu0 0
  %333 = vmatpush2.bf16.msra.mxu0 0
  %334 = vmatprep.subr.bf16.mxu0 0
  %335 = vmatpush2.bf16.msra.mxu0 0
  %336 = vmatprep.subr.bf16.mxu0 0
  %337 = vmatpush2.bf16.msra.mxu0 0
  %338 = vmatprep.subr.bf16.mxu0 0
  %339 = vmatpush2.bf16.msra.mxu0 0
  %340 = vmatprep.subr.bf16.mxu0 0
  %341 = vmatpush2.bf16.msra.mxu0 0
  %342 = vmatprep.subr.bf16.mxu0 0
  %343 = vmatpush2.bf16.msra.mxu0 0
  %344 = vmatprep.subr.bf16.mxu0 0
  %345 = vmatpush2.bf16.msra.mxu0 0
  %346 = vmatprep.mubr.bf16.mxu0 0
  %347 = vmatmul.mubr.bf16.gmra.mxu0 %v309
  %v348 = vpop.f32.mrf.mxu0
  %v349 = vadd.f32 0.0, %v348
  %v350 = vpop.f32.mrf.mxu0
  %v351 = vpop.f32.mrf.mxu0
  %v352 = vadd.f32 0.0, %v351
  %v353 = vpop.f32.mrf.mxu0
  %354 = vdwg.mxu0
  %v355 = vpack.c.bf16 %v352, %v349
  %v360 = vunpack.c.l.b16 %v63
  %v361 = vunpack.c.l.b16 %v64
  %v362 = vunpack.c.l.b16 %v65
  %v363 = vunpack.c.l.b16 %v66
  %v364 = vpack.c.b16 %v361, %v360
  %v365 = vpack.c.b16 %v363, %v362
  %v369 = vsel %vm199, %v355, 0
  %371 = vmatprep.subr.bf16.mxu0 0
  %372 = vmatpush1.bf16.msra.mxu0 0
  %373 = vmatprep.subr.bf16.mxu0 0
  %374 = vmatpush1.bf16.msra.mxu0 0
  %375 = vmatprep.subr.bf16.mxu0 0
  %376 = vmatpush1.bf16.msra.mxu0 0
  %377 = vmatprep.subr.bf16.mxu0 0
  %378 = vmatpush1.bf16.msra.mxu0 0
  %379 = vmatprep.subr.bf16.mxu0 0
  %380 = vmatpush1.bf16.msra.mxu0 0
  %381 = vmatprep.subr.bf16.mxu0 0
  %382 = vmatpush1.bf16.msra.mxu0 0
  %383 = vmatprep.subr.bf16.mxu0 0
  %384 = vmatpush1.bf16.msra.mxu0 %v365
  %385 = vmatprep.subr.bf16.mxu0 0
  %386 = vmatpush1.bf16.msra.mxu0 %v364
  %387 = vmatprep.subr.bf16.mxu0 0
  %388 = vmatpush2.bf16.msra.mxu0 0
  %389 = vmatprep.subr.bf16.mxu0 0
  %390 = vmatpush2.bf16.msra.mxu0 0
  %391 = vmatprep.subr.bf16.mxu0 0
  %392 = vmatpush2.bf16.msra.mxu0 0
  %393 = vmatprep.subr.bf16.mxu0 0
  %394 = vmatpush2.bf16.msra.mxu0 0
  %395 = vmatprep.subr.bf16.mxu0 0
  %396 = vmatpush2.bf16.msra.mxu0 0
  %397 = vmatprep.subr.bf16.mxu0 0
  %398 = vmatpush2.bf16.msra.mxu0 0
  %399 = vmatprep.subr.bf16.mxu0 0
  %400 = vmatpush2.bf16.msra.mxu0 0
  %401 = vmatprep.subr.bf16.mxu0 0
  %402 = vmatpush2.bf16.msra.mxu0 0
  %403 = vmatprep.mubr.bf16.mxu0 0
  %404 = vmatmul.mubr.bf16.gmra.mxu0 %v369
  %v405 = vpop.f32.mrf.mxu0
  %v406 = vadd.f32 0.0, %v405
  %v407 = vpop.f32.mrf.mxu0
  %v408 = vpop.f32.mrf.mxu0
  %v409 = vadd.f32 0.0, %v408
  %v410 = vpop.f32.mrf.mxu0
  %411 = vdwg.mxu0
  %v412 = vadd.f32 %v294, %v406
  %v413 = vadd.f32 %v297, %v409
  %s414 = scalar_lea.vmem %s2, 16
  %v415 = vld [vmem:[%s414] sm:$0xf]
  %v416 = vld [vmem:[%s414 + $0x4] sm:$0xf]
  %v419 = vunpack.c.l.b16 %v415
  %v420 = vunpack.c.l.b16 %v416
  %v421 = vpack.c.b16 %v420, %v419
  %v423 = vsel %vm137, %v421, 0
  %v426 = vsel %vm141, %v129, 0
  %428 = vmatprep.subr.bf16.mxu0 0
  %429 = vmatpush1.bf16.msra.mxu0 0
  %430 = vmatprep.subr.bf16.mxu0 0
  %431 = vmatpush1.bf16.msra.mxu0 0
  %432 = vmatprep.subr.bf16.mxu0 0
  %433 = vmatpush1.bf16.msra.mxu0 0
  %434 = vmatprep.subr.bf16.mxu0 0
  %435 = vmatpush1.bf16.msra.mxu0 0
  %436 = vmatprep.subr.bf16.mxu0 0
  %437 = vmatpush1.bf16.msra.mxu0 0
  %438 = vmatprep.subr.bf16.mxu0 0
  %439 = vmatpush1.bf16.msra.mxu0 0
  %440 = vmatprep.subr.bf16.mxu0 0
  %441 = vmatpush1.bf16.msra.mxu0 %v426
  %442 = vmatprep.subr.bf16.mxu0 0
  %443 = vmatpush1.bf16.msra.mxu0 %v128
  %444 = vmatprep.subr.bf16.mxu0 0
  %445 = vmatpush2.bf16.msra.mxu0 0
  %446 = vmatprep.subr.bf16.mxu0 0
  %447 = vmatpush2.bf16.msra.mxu0 0
  %448 = vmatprep.subr.bf16.mxu0 0
  %449 = vmatpush2.bf16.msra.mxu0 0
  %450 = vmatprep.subr.bf16.mxu0 0
  %451 = vmatpush2.bf16.msra.mxu0 0
  %452 = vmatprep.subr.bf16.mxu0 0
  %453 = vmatpush2.bf16.msra.mxu0 0
  %454 = vmatprep.subr.bf16.mxu0 0
  %455 = vmatpush2.bf16.msra.mxu0 0
  %456 = vmatprep.subr.bf16.mxu0 0
  %457 = vmatpush2.bf16.msra.mxu0 0
  %458 = vmatprep.subr.bf16.mxu0 0
  %459 = vmatpush2.bf16.msra.mxu0 0
  %460 = vmatprep.mubr.bf16.mxu0 0
  %461 = vmatmul.mubr.bf16.gmra.mxu0 %v423
  %v462 = vpop.f32.mrf.mxu0
  %v463 = vadd.f32 0.0, %v462
  %v464 = vpop.f32.mrf.mxu0
  %v465 = vpop.f32.mrf.mxu0
  %v466 = vadd.f32 0.0, %v465
  %v467 = vpop.f32.mrf.mxu0
  %468 = vdwg.mxu0
  %v469 = vpack.c.bf16 %v466, %v463
  %v474 = vunpack.c.l.b16 %v67
  %v475 = vunpack.c.l.b16 %v68
  %v476 = vunpack.c.l.b16 %v69
  %v477 = vunpack.c.l.b16 %v70
  %v478 = vpack.c.b16 %v475, %v474
  %v479 = vpack.c.b16 %v477, %v476
  %v483 = vsel %vm199, %v469, 0
  %485 = vmatprep.subr.bf16.mxu0 0
  %486 = vmatpush1.bf16.msra.mxu0 0
  %487 = vmatprep.subr.bf16.mxu0 0
  %488 = vmatpush1.bf16.msra.mxu0 0
  %489 = vmatprep.subr.bf16.mxu0 0
  %490 = vmatpush1.bf16.msra.mxu0 0
  %491 = vmatprep.subr.bf16.mxu0 0
  %492 = vmatpush1.bf16.msra.mxu0 0
  %493 = vmatprep.subr.bf16.mxu0 0
  %494 = vmatpush1.bf16.msra.mxu0 0
  %495 = vmatprep.subr.bf16.mxu0 0
  %496 = vmatpush1.bf16.msra.mxu0 0
  %497 = vmatprep.subr.bf16.mxu0 0
  %498 = vmatpush1.bf16.msra.mxu0 %v479
  %499 = vmatprep.subr.bf16.mxu0 0
  %500 = vmatpush1.bf16.msra.mxu0 %v478
  %501 = vmatprep.subr.bf16.mxu0 0
  %502 = vmatpush2.bf16.msra.mxu0 0
  %503 = vmatprep.subr.bf16.mxu0 0
  %504 = vmatpush2.bf16.msra.mxu0 0
  %505 = vmatprep.subr.bf16.mxu0 0
  %506 = vmatpush2.bf16.msra.mxu0 0
  %507 = vmatprep.subr.bf16.mxu0 0
  %508 = vmatpush2.bf16.msra.mxu0 0
  %509 = vmatprep.subr.bf16.mxu0 0
  %510 = vmatpush2.bf16.msra.mxu0 0
  %511 = vmatprep.subr.bf16.mxu0 0
  %512 = vmatpush2.bf16.msra.mxu0 0
  %513 = vmatprep.subr.bf16.mxu0 0
  %514 = vmatpush2.bf16.msra.mxu0 0
  %515 = vmatprep.subr.bf16.mxu0 0
  %516 = vmatpush2.bf16.msra.mxu0 0
  %517 = vmatprep.mubr.bf16.mxu0 0
  %518 = vmatmul.mubr.bf16.gmra.mxu0 %v483
  %v519 = vpop.f32.mrf.mxu0
  %v520 = vadd.f32 0.0, %v519
  %v521 = vpop.f32.mrf.mxu0
  %v522 = vpop.f32.mrf.mxu0
  %v523 = vadd.f32 0.0, %v522
  %v524 = vpop.f32.mrf.mxu0
  %525 = vdwg.mxu0
  %v526 = vadd.f32 %v412, %v520
  %v527 = vadd.f32 %v413, %v523
  %v528 = vlaneseq
  %v529 = vshrl.u32 %v528, 7
  %v530 = vsub.s32 1, %v529
  %v531 = vrot.slane %v53, %v530
  %v532 = vadd.f32 %v526, %v531
  %v533 = vadd.f32 %v527, %v531
  %v534 = vmax.f32 %v532, 0.0
  %v535 = vmax.f32 %v533, 0.0
  %v536 = vpack.c.bf16 %v535, %v534
  %v541 = vunpack.c.l.b16 %v71
  %v542 = vunpack.c.l.b16 %v72
  %v543 = vunpack.c.l.b16 %v73
  %v544 = vunpack.c.l.b16 %v74
  %v545 = vpack.c.b16 %v542, %v541
  %v546 = vpack.c.b16 %v544, %v543
  %v550 = vsel %vm199, %v536, 0
  %552 = vmatprep.subr.bf16.mxu0 0
  %553 = vmatpush1.bf16.msra.mxu0 0
  %554 = vmatprep.subr.bf16.mxu0 0
  %555 = vmatpush1.bf16.msra.mxu0 0
  %556 = vmatprep.subr.bf16.mxu0 0
  %557 = vmatpush1.bf16.msra.mxu0 0
  %558 = vmatprep.subr.bf16.mxu0 0
  %559 = vmatpush1.bf16.msra.mxu0 0
  %560 = vmatprep.subr.bf16.mxu0 0
  %561 = vmatpush1.bf16.msra.mxu0 0
  %562 = vmatprep.subr.bf16.mxu0 0
  %563 = vmatpush1.bf16.msra.mxu0 0
  %564 = vmatprep.subr.bf16.mxu0 0
  %565 = vmatpush1.bf16.msra.mxu0 %v546
  %566 = vmatprep.subr.bf16.mxu0 0
  %567 = vmatpush1.bf16.msra.mxu0 %v545
  %568 = vmatprep.subr.bf16.mxu0 0
  %569 = vmatpush2.bf16.msra.mxu0 0
  %570 = vmatprep.subr.bf16.mxu0 0
  %571 = vmatpush2.bf16.msra.mxu0 0
  %572 = vmatprep.subr.bf16.mxu0 0
  %573 = vmatpush2.bf16.msra.mxu0 0
  %574 = vmatprep.subr.bf16.mxu0 0
  %575 = vmatpush2.bf16.msra.mxu0 0
  %576 = vmatprep.subr.bf16.mxu0 0
  %577 = vmatpush2.bf16.msra.mxu0 0
  %578 = vmatprep.subr.bf16.mxu0 0
  %579 = vmatpush2.bf16.msra.mxu0 0
  %580 = vmatprep.subr.bf16.mxu0 0
  %581 = vmatpush2.bf16.msra.mxu0 0
  %582 = vmatprep.subr.bf16.mxu0 0
  %583 = vmatpush2.bf16.msra.mxu0 0
  %584 = vmatprep.mubr.bf16.mxu0 0
  %585 = vmatmul.mubr.bf16.gmra.mxu0 %v550
  %v586 = vpop.f32.mrf.mxu0
  %v587 = vadd.f32 0.0, %v586
  %v588 = vpop.f32.mrf.mxu0
  %v589 = vpop.f32.mrf.mxu0
  %v590 = vadd.f32 0.0, %v589
  %v591 = vpop.f32.mrf.mxu0
  %592 = vdwg.mxu0
  %v593 = vadd.f32 %v24, %v587
  %v594 = vadd.f32 %v25, %v590
  %v595 = vlaneseq
  %v596 = vshrl.u32 %v595, 7
  %v597 = vsub.s32 2, %v596
  %v598 = vrot.slane %v53, %v597
  %v599 = vadd.f32 %v593, %v598
  %v600 = vadd.f32 %v594, %v598
  %v619 = vunpack.c.l.b16 %v35
  %v620 = vunpack.c.l.b16 %v36
  %v621 = vunpack.c.l.b16 %v37
  %v622 = vunpack.c.l.b16 %v38
  %v623 = vunpack.c.l.b16 %v39
  %v624 = vunpack.c.l.b16 %v40
  %v625 = vunpack.c.l.b16 %v41
  %v626 = vunpack.c.l.b16 %v42
  %v627 = vunpack.c.l.b16 %v43
  %v628 = vunpack.c.l.b16 %v44
  %v629 = vunpack.c.l.b16 %v45
  %v630 = vunpack.c.l.b16 %v46
  %v631 = vunpack.c.l.b16 %v47
  %v632 = vunpack.c.l.b16 %v48
  %v633 = vunpack.c.l.b16 %v49
  %v634 = vunpack.c.l.b16 %v50
  %v635 = vunpack.c.l.b16 %v51
  %v636 = vunpack.c.l.b16 %v52
  %v637 = vpack.c.b16 %v620, %v619
  %v638 = vpack.c.b16 %v622, %v621
  %v639 = vpack.c.b16 %v624, %v623
  %v640 = vpack.c.b16 %v626, %v625
  %v641 = vpack.c.b16 %v628, %v627
  %v642 = vpack.c.b16 %v630, %v629
  %v643 = vpack.c.b16 %v632, %v631
  %v644 = vpack.c.b16 %v634, %v633
  %v645 = vpack.c.b16 %v636, %v635
  %vm646 = vcmask 130048
  %v648 = vsel %vm646, %v637, 0
  %v651 = vsel %vm646, %v638, 0
  %v654 = vsel %vm646, %v639, 0
  %v657 = vsel %vm646, %v640, 0
  %v660 = vsel %vm646, %v641, 0
  %v663 = vsel %vm646, %v642, 0
  %v666 = vsel %vm646, %v643, 0
  %v669 = vsel %vm646, %v644, 0
  %v672 = vsel %vm646, %v645, 0
  %674 = vmatprep.subr.bf16.mxu0 0
  %675 = vmatpush1.bf16.msra.mxu0 0
  %676 = vmatprep.subr.bf16.mxu0 0
  %677 = vmatpush1.bf16.msra.mxu0 0
  %678 = vmatprep.subr.bf16.mxu0 0
  %679 = vmatpush1.bf16.msra.mxu0 0
  %680 = vmatprep.subr.bf16.mxu0 0
  %681 = vmatpush1.bf16.msra.mxu0 0
  %682 = vmatprep.subr.bf16.mxu0 0
  %683 = vmatpush1.bf16.msra.mxu0 0
  %684 = vmatprep.subr.bf16.mxu0 0
  %685 = vmatpush1.bf16.msra.mxu0 0
  %686 = vmatprep.subr.bf16.mxu0 0
  %687 = vmatpush1.bf16.msra.mxu0 0
  %688 = vmatprep.subr.bf16.mxu0 0
  %689 = vmatpush1.bf16.msra.mxu0 %v123
  %690 = vmatprep.subr.bf16.mxu0 0
  %691 = vmatpush2.bf16.msra.mxu0 0
  %692 = vmatprep.subr.bf16.mxu0 0
  %693 = vmatpush2.bf16.msra.mxu0 0
  %694 = vmatprep.subr.bf16.mxu0 0
  %695 = vmatpush2.bf16.msra.mxu0 0
  %696 = vmatprep.subr.bf16.mxu0 0
  %697 = vmatpush2.bf16.msra.mxu0 0
  %698 = vmatprep.subr.bf16.mxu0 0
  %699 = vmatpush2.bf16.msra.mxu0 0
  %700 = vmatprep.subr.bf16.mxu0 0
  %701 = vmatpush2.bf16.msra.mxu0 0
  %702 = vmatprep.subr.bf16.mxu0 0
  %703 = vmatpush2.bf16.msra.mxu0 0
  %704 = vmatprep.subr.bf16.mxu0 0
  %705 = vmatpush2.bf16.msra.mxu0 0
  %706 = vmatprep.mubr.bf16.mxu0 0
  %707 = vmatmul.mubr.bf16.gmra.mxu0 %v648
  %v708 = vpop.f32.mrf.mxu0
  %v709 = vadd.f32 0.0, %v708
  %v710 = vpop.f32.mrf.mxu0
  %v711 = vpop.f32.mrf.mxu0
  %v712 = vadd.f32 0.0, %v711
  %v713 = vpop.f32.mrf.mxu0
  %714 = vmatprep.mubr.bf16.mxu0 0
  %715 = vmatmul.mubr.bf16.gmra.mxu0 %v651
  %v716 = vpop.f32.mrf.mxu0
  %v717 = vadd.f32 0.0, %v716
  %v718 = vpop.f32.mrf.mxu0
  %v719 = vpop.f32.mrf.mxu0
  %v720 = vadd.f32 0.0, %v719
  %v721 = vpop.f32.mrf.mxu0
  %722 = vmatprep.mubr.bf16.mxu0 0
  %723 = vmatmul.mubr.bf16.gmra.mxu0 %v654
  %v724 = vpop.f32.mrf.mxu0
  %v725 = vadd.f32 0.0, %v724
  %v726 = vpop.f32.mrf.mxu0
  %v727 = vpop.f32.mrf.mxu0
  %v728 = vadd.f32 0.0, %v727
  %v729 = vpop.f32.mrf.mxu0
  %730 = vmatprep.mubr.bf16.mxu0 0
  %731 = vmatmul.mubr.bf16.gmra.mxu0 %v657
  %v732 = vpop.f32.mrf.mxu0
  %v733 = vadd.f32 0.0, %v732
  %v734 = vpop.f32.mrf.mxu0
  %v735 = vpop.f32.mrf.mxu0
  %v736 = vadd.f32 0.0, %v735
  %v737 = vpop.f32.mrf.mxu0
  %738 = vmatprep.mubr.bf16.mxu0 0
  %739 = vmatmul.mubr.bf16.gmra.mxu0 %v660
  %v740 = vpop.f32.mrf.mxu0
  %v741 = vadd.f32 0.0, %v740
  %v742 = vpop.f32.mrf.mxu0
  %v743 = vpop.f32.mrf.mxu0
  %v744 = vadd.f32 0.0, %v743
  %v745 = vpop.f32.mrf.mxu0
  %746 = vmatprep.mubr.bf16.mxu0 0
  %747 = vmatmul.mubr.bf16.gmra.mxu0 %v663
  %v748 = vpop.f32.mrf.mxu0
  %v749 = vadd.f32 0.0, %v748
  %v750 = vpop.f32.mrf.mxu0
  %v751 = vpop.f32.mrf.mxu0
  %v752 = vadd.f32 0.0, %v751
  %v753 = vpop.f32.mrf.mxu0
  %754 = vmatprep.mubr.bf16.mxu0 0
  %755 = vmatmul.mubr.bf16.gmra.mxu0 %v666
  %v756 = vpop.f32.mrf.mxu0
  %v757 = vadd.f32 0.0, %v756
  %v758 = vpop.f32.mrf.mxu0
  %v759 = vpop.f32.mrf.mxu0
  %v760 = vadd.f32 0.0, %v759
  %v761 = vpop.f32.mrf.mxu0
  %762 = vmatprep.mubr.bf16.mxu0 0
  %763 = vmatmul.mubr.bf16.gmra.mxu0 %v669
  %v764 = vpop.f32.mrf.mxu0
  %v765 = vadd.f32 0.0, %v764
  %v766 = vpop.f32.mrf.mxu0
  %v767 = vpop.f32.mrf.mxu0
  %v768 = vadd.f32 0.0, %v767
  %v769 = vpop.f32.mrf.mxu0
  %770 = vmatprep.mubr.bf16.mxu0 0
  %771 = vmatmul.mubr.bf16.gmra.mxu0 %v672
  %v772 = vpop.f32.mrf.mxu0
  %v773 = vadd.f32 0.0, %v772
  %v774 = vpop.f32.mrf.mxu0
  %v775 = vpop.f32.mrf.mxu0
  %v776 = vadd.f32 0.0, %v775
  %v777 = vpop.f32.mrf.mxu0
  %778 = vdwg.mxu0
  %v779 = vpack.c.bf16 %v712, %v709
  %v780 = vpack.c.bf16 %v717, %v717
  %v781 = vpack.c.bf16 %v725, %v720
  %v782 = vpack.c.bf16 %v728, %v728
  %v787 = vunpack.c.l.b16 %v79
  %v788 = vunpack.c.l.b16 %v80
  %v789 = vunpack.c.l.b16 %v81
  %v790 = vunpack.c.l.b16 %v82
  %v791 = vpack.c.b16 %v788, %v787
  %v792 = vpack.c.b16 %v790, %v789
  %v796 = vsel %vm199, %v781, 0
  %v799 = vsel %vm199, %v782, 0
  %801 = vmatprep.subr.bf16.mxu0 0
  %802 = vmatpush1.bf16.msra.mxu0 0
  %803 = vmatprep.subr.bf16.mxu0 0
  %804 = vmatpush1.bf16.msra.mxu0 0
  %805 = vmatprep.subr.bf16.mxu0 0
  %806 = vmatpush1.bf16.msra.mxu0 0
  %807 = vmatprep.subr.bf16.mxu0 0
  %808 = vmatpush1.bf16.msra.mxu0 0
  %809 = vmatprep.subr.bf16.mxu0 0
  %810 = vmatpush1.bf16.msra.mxu0 0
  %811 = vmatprep.subr.bf16.mxu0 0
  %812 = vmatpush1.bf16.msra.mxu0 0
  %813 = vmatprep.subr.bf16.mxu0 0
  %814 = vmatpush1.bf16.msra.mxu0 %v792
  %815 = vmatprep.subr.bf16.mxu0 0
  %816 = vmatpush1.bf16.msra.mxu0 %v791
  %817 = vmatprep.subr.bf16.mxu0 0
  %818 = vmatpush2.bf16.msra.mxu0 0
  %819 = vmatprep.subr.bf16.mxu0 0
  %820 = vmatpush2.bf16.msra.mxu0 0
  %821 = vmatprep.subr.bf16.mxu0 0
  %822 = vmatpush2.bf16.msra.mxu0 0
  %823 = vmatprep.subr.bf16.mxu0 0
  %824 = vmatpush2.bf16.msra.mxu0 0
  %825 = vmatprep.subr.bf16.mxu0 0
  %826 = vmatpush2.bf16.msra.mxu0 0
  %827 = vmatprep.subr.bf16.mxu0 0
  %828 = vmatpush2.bf16.msra.mxu0 0
  %829 = vmatprep.subr.bf16.mxu0 0
  %830 = vmatpush2.bf16.msra.mxu0 0
  %831 = vmatprep.subr.bf16.mxu0 0
  %832 = vmatpush2.bf16.msra.mxu0 0
  %833 = vmatprep.mubr.bf16.mxu0 0
  %834 = vmatmul.mubr.bf16.gmra.mxu0 %v796
  %v835 = vpop.f32.mrf.mxu0
  %v836 = vadd.f32 0.0, %v835
  %v837 = vpop.f32.mrf.mxu0
  %v838 = vpop.f32.mrf.mxu0
  %v839 = vadd.f32 0.0, %v838
  %v840 = vpop.f32.mrf.mxu0
  %841 = vmatprep.mubr.bf16.mxu0 0
  %842 = vmatmul.mubr.bf16.gmra.mxu0 %v799
  %v843 = vpop.f32.mrf.mxu0
  %v844 = vadd.f32 0.0, %v843
  %v845 = vpop.f32.mrf.mxu0
  %v846 = vpop.f32.mrf.mxu0
  %v847 = vpop.f32.mrf.mxu0
  %848 = vdwg.mxu0
  %v853 = vunpack.c.l.b16 %v75
  %v854 = vunpack.c.l.b16 %v76
  %v855 = vunpack.c.l.b16 %v77
  %v856 = vunpack.c.l.b16 %v78
  %v857 = vpack.c.b16 %v854, %v853
  %v858 = vpack.c.b16 %v856, %v855
  %v862 = vsel %vm199, %v779, 0
  %v865 = vsel %vm199, %v780, 0
  %867 = vmatprep.subr.bf16.mxu0 0
  %868 = vmatpush1.bf16.msra.mxu0 0
  %869 = vmatprep.subr.bf16.mxu0 0
  %870 = vmatpush1.bf16.msra.mxu0 0
  %871 = vmatprep.subr.bf16.mxu0 0
  %872 = vmatpush1.bf16.msra.mxu0 0
  %873 = vmatprep.subr.bf16.mxu0 0
  %874 = vmatpush1.bf16.msra.mxu0 0
  %875 = vmatprep.subr.bf16.mxu0 0
  %876 = vmatpush1.bf16.msra.mxu0 0
  %877 = vmatprep.subr.bf16.mxu0 0
  %878 = vmatpush1.bf16.msra.mxu0 0
  %879 = vmatprep.subr.bf16.mxu0 0
  %880 = vmatpush1.bf16.msra.mxu0 %v858
  %881 = vmatprep.subr.bf16.mxu0 0
  %882 = vmatpush1.bf16.msra.mxu0 %v857
  %883 = vmatprep.subr.bf16.mxu0 0
  %884 = vmatpush2.bf16.msra.mxu0 0
  %885 = vmatprep.subr.bf16.mxu0 0
  %886 = vmatpush2.bf16.msra.mxu0 0
  %887 = vmatprep.subr.bf16.mxu0 0
  %888 = vmatpush2.bf16.msra.mxu0 0
  %889 = vmatprep.subr.bf16.mxu0 0
  %890 = vmatpush2.bf16.msra.mxu0 0
  %891 = vmatprep.subr.bf16.mxu0 0
  %892 = vmatpush2.bf16.msra.mxu0 0
  %893 = vmatprep.subr.bf16.mxu0 0
  %894 = vmatpush2.bf16.msra.mxu0 0
  %895 = vmatprep.subr.bf16.mxu0 0
  %896 = vmatpush2.bf16.msra.mxu0 0
  %897 = vmatprep.subr.bf16.mxu0 0
  %898 = vmatpush2.bf16.msra.mxu0 0
  %899 = vmatprep.mubr.bf16.mxu0 0
  %900 = vmatmul.mubr.bf16.gmra.mxu0 %v862
  %v901 = vpop.f32.mrf.mxu0
  %v902 = vadd.f32 %v836, %v901
  %v903 = vpop.f32.mrf.mxu0
  %v904 = vpop.f32.mrf.mxu0
  %v905 = vadd.f32 %v839, %v904
  %v906 = vpop.f32.mrf.mxu0
  %907 = vmatprep.mubr.bf16.mxu0 0
  %908 = vmatmul.mubr.bf16.gmra.mxu0 %v865
  %v909 = vpop.f32.mrf.mxu0
  %v910 = vadd.f32 %v844, %v909
  %v911 = vpop.f32.mrf.mxu0
  %v912 = vpop.f32.mrf.mxu0
  %v913 = vpop.f32.mrf.mxu0
  %914 = vdwg.mxu0
  %v919 = vunpack.c.l.b16 %v83
  %v920 = vunpack.c.l.b16 %v84
  %v921 = vunpack.c.l.b16 %v85
  %v922 = vunpack.c.l.b16 %v86
  %v923 = vpack.c.b16 %v920, %v919
  %v924 = vpack.c.b16 %v922, %v921
  %v928 = vsel %vm199, %v124, 0
  %v930 = vsel %vm199, %v125, 0
  %932 = vmatprep.subr.bf16.mxu0 0
  %933 = vmatpush1.bf16.msra.mxu0 0
  %934 = vmatprep.subr.bf16.mxu0 0
  %935 = vmatpush1.bf16.msra.mxu0 0
  %936 = vmatprep.subr.bf16.mxu0 0
  %937 = vmatpush1.bf16.msra.mxu0 0
  %938 = vmatprep.subr.bf16.mxu0 0
  %939 = vmatpush1.bf16.msra.mxu0 0
  %940 = vmatprep.subr.bf16.mxu0 0
  %941 = vmatpush1.bf16.msra.mxu0 0
  %942 = vmatprep.subr.bf16.mxu0 0
  %943 = vmatpush1.bf16.msra.mxu0 0
  %944 = vmatprep.subr.bf16.mxu0 0
  %945 = vmatpush1.bf16.msra.mxu0 %v924
  %946 = vmatprep.subr.bf16.mxu0 0
  %947 = vmatpush1.bf16.msra.mxu0 %v923
  %948 = vmatprep.subr.bf16.mxu0 0
  %949 = vmatpush2.bf16.msra.mxu0 0
  %950 = vmatprep.subr.bf16.mxu0 0
  %951 = vmatpush2.bf16.msra.mxu0 0
  %952 = vmatprep.subr.bf16.mxu0 0
  %953 = vmatpush2.bf16.msra.mxu0 0
  %954 = vmatprep.subr.bf16.mxu0 0
  %955 = vmatpush2.bf16.msra.mxu0 0
  %956 = vmatprep.subr.bf16.mxu0 0
  %957 = vmatpush2.bf16.msra.mxu0 0
  %958 = vmatprep.subr.bf16.mxu0 0
  %959 = vmatpush2.bf16.msra.mxu0 0
  %960 = vmatprep.subr.bf16.mxu0 0
  %961 = vmatpush2.bf16.msra.mxu0 0
  %962 = vmatprep.subr.bf16.mxu0 0
  %963 = vmatpush2.bf16.msra.mxu0 0
  %964 = vmatprep.mubr.bf16.mxu0 0
  %965 = vmatmul.mubr.bf16.gmra.mxu0 %v928
  %v966 = vpop.f32.mrf.mxu0
  %v967 = vadd.f32 0.0, %v966
  %v968 = vpop.f32.mrf.mxu0
  %v969 = vpop.f32.mrf.mxu0
  %v970 = vadd.f32 0.0, %v969
  %v971 = vpop.f32.mrf.mxu0
  %972 = vmatprep.mubr.bf16.mxu0 0
  %973 = vmatmul.mubr.bf16.gmra.mxu0 %v930
  %v974 = vpop.f32.mrf.mxu0
  %v975 = vadd.f32 0.0, %v974
  %v976 = vpop.f32.mrf.mxu0
  %v977 = vpop.f32.mrf.mxu0
  %v978 = vpop.f32.mrf.mxu0
  %979 = vdwg.mxu0
  %v980 = vadd.f32 %v902, %v967
  %v981 = vadd.f32 %v905, %v970
  %v982 = vadd.f32 %v910, %v975
  %v983 = vlaneseq
  %v984 = vshrl.u32 %v983, 7
  %v985 = vsub.s32 3, %v984
  %v986 = vrot.slane %v53, %v985
  %v987 = vadd.f32 %v980, %v986
  %v988 = vadd.f32 %v981, %v986
  %v989 = vadd.f32 %v982, %v986
  %v990 = vmax.f32 %v987, 0.0
  %v991 = vmax.f32 %v988, 0.0
  %v992 = vmax.f32 %v989, 0.0
  %v993 = vpack.c.bf16 %v991, %v990
  %v994 = vpack.c.bf16 %v992, %v992
  %v999 = vunpack.c.l.b16 %v87
  %v1000 = vunpack.c.l.b16 %v88
  %v1001 = vunpack.c.l.b16 %v89
  %v1002 = vunpack.c.l.b16 %v90
  %v1003 = vpack.c.b16 %v1000, %v999
  %v1004 = vpack.c.b16 %v1002, %v1001
  %v1008 = vsel %vm199, %v993, 0
  %v1011 = vsel %vm199, %v994, 0
  %1013 = vmatprep.subr.bf16.mxu0 0
  %1014 = vmatpush1.bf16.msra.mxu0 0
  %1015 = vmatprep.subr.bf16.mxu0 0
  %1016 = vmatpush1.bf16.msra.mxu0 0
  %1017 = vmatprep.subr.bf16.mxu0 0
  %1018 = vmatpush1.bf16.msra.mxu0 0
  %1019 = vmatprep.subr.bf16.mxu0 0
  %1020 = vmatpush1.bf16.msra.mxu0 0
  %1021 = vmatprep.subr.bf16.mxu0 0
  %1022 = vmatpush1.bf16.msra.mxu0 0
  %1023 = vmatprep.subr.bf16.mxu0 0
  %1024 = vmatpush1.bf16.msra.mxu0 0
  %1025 = vmatprep.subr.bf16.mxu0 0
  %1026 = vmatpush1.bf16.msra.mxu0 %v1004
  %1027 = vmatprep.subr.bf16.mxu0 0
  %1028 = vmatpush1.bf16.msra.mxu0 %v1003
  %1029 = vmatprep.subr.bf16.mxu0 0
  %1030 = vmatpush2.bf16.msra.mxu0 0
  %1031 = vmatprep.subr.bf16.mxu0 0
  %1032 = vmatpush2.bf16.msra.mxu0 0
  %1033 = vmatprep.subr.bf16.mxu0 0
  %1034 = vmatpush2.bf16.msra.mxu0 0
  %1035 = vmatprep.subr.bf16.mxu0 0
  %1036 = vmatpush2.bf16.msra.mxu0 0
  %1037 = vmatprep.subr.bf16.mxu0 0
  %1038 = vmatpush2.bf16.msra.mxu0 0
  %1039 = vmatprep.subr.bf16.mxu0 0
  %1040 = vmatpush2.bf16.msra.mxu0 0
  %1041 = vmatprep.subr.bf16.mxu0 0
  %1042 = vmatpush2.bf16.msra.mxu0 0
  %1043 = vmatprep.subr.bf16.mxu0 0
  %1044 = vmatpush2.bf16.msra.mxu0 0
  %1045 = vmatprep.mubr.bf16.mxu0 0
  %1046 = vmatmul.mubr.bf16.gmra.mxu0 %v1008
  %v1047 = vpop.f32.mrf.mxu0
  %v1048 = vadd.f32 0.0, %v1047
  %v1049 = vpop.f32.mrf.mxu0
  %v1050 = vpop.f32.mrf.mxu0
  %v1051 = vadd.f32 0.0, %v1050
  %v1052 = vpop.f32.mrf.mxu0
  %1053 = vmatprep.mubr.bf16.mxu0 0
  %1054 = vmatmul.mubr.bf16.gmra.mxu0 %v1011
  %v1055 = vpop.f32.mrf.mxu0
  %v1056 = vadd.f32 0.0, %v1055
  %v1057 = vpop.f32.mrf.mxu0
  %v1058 = vpop.f32.mrf.mxu0
  %v1059 = vpop.f32.mrf.mxu0
  %1060 = vdwg.mxu0
  %v1061 = vadd.f32 %v26, %v1048
  %v1062 = vadd.f32 %v27, %v1051
  %v1063 = vadd.f32 %v28, %v1056
  %v1064 = vlaneseq
  %v1065 = vshrl.u32 %v1064, 7
  %v1066 = vsub.s32 4, %v1065
  %v1067 = vrot.slane %v53, %v1066
  %v1068 = vadd.f32 %v1061, %v1067
  %v1069 = vadd.f32 %v1062, %v1067
  %v1070 = vadd.f32 %v1063, %v1067
  %v1071 = vpack.c.bf16 %v736, %v733
  %v1072 = vpack.c.bf16 %v741, %v741
  %v1073 = vpack.c.bf16 %v749, %v744
  %v1074 = vpack.c.bf16 %v752, %v752
  %v1079 = vunpack.c.l.b16 %v95
  %v1080 = vunpack.c.l.b16 %v96
  %v1081 = vunpack.c.l.b16 %v97
  %v1082 = vunpack.c.l.b16 %v98
  %v1083 = vpack.c.b16 %v1080, %v1079
  %v1084 = vpack.c.b16 %v1082, %v1081
  %v1088 = vsel %vm199, %v1073, 0
  %v1091 = vsel %vm199, %v1074, 0
  %1093 = vmatprep.subr.bf16.mxu0 0
  %1094 = vmatpush1.bf16.msra.mxu0 0
  %1095 = vmatprep.subr.bf16.mxu0 0
  %1096 = vmatpush1.bf16.msra.mxu0 0
  %1097 = vmatprep.subr.bf16.mxu0 0
  %1098 = vmatpush1.bf16.msra.mxu0 0
  %1099 = vmatprep.subr.bf16.mxu0 0
  %1100 = vmatpush1.bf16.msra.mxu0 0
  %1101 = vmatprep.subr.bf16.mxu0 0
  %1102 = vmatpush1.bf16.msra.mxu0 0
  %1103 = vmatprep.subr.bf16.mxu0 0
  %1104 = vmatpush1.bf16.msra.mxu0 0
  %1105 = vmatprep.subr.bf16.mxu0 0
  %1106 = vmatpush1.bf16.msra.mxu0 %v1084
  %1107 = vmatprep.subr.bf16.mxu0 0
  %1108 = vmatpush1.bf16.msra.mxu0 %v1083
  %1109 = vmatprep.subr.bf16.mxu0 0
  %1110 = vmatpush2.bf16.msra.mxu0 0
  %1111 = vmatprep.subr.bf16.mxu0 0
  %1112 = vmatpush2.bf16.msra.mxu0 0
  %1113 = vmatprep.subr.bf16.mxu0 0
  %1114 = vmatpush2.bf16.msra.mxu0 0
  %1115 = vmatprep.subr.bf16.mxu0 0
  %1116 = vmatpush2.bf16.msra.mxu0 0
  %1117 = vmatprep.subr.bf16.mxu0 0
  %1118 = vmatpush2.bf16.msra.mxu0 0
  %1119 = vmatprep.subr.bf16.mxu0 0
  %1120 = vmatpush2.bf16.msra.mxu0 0
  %1121 = vmatprep.subr.bf16.mxu0 0
  %1122 = vmatpush2.bf16.msra.mxu0 0
  %1123 = vmatprep.subr.bf16.mxu0 0
  %1124 = vmatpush2.bf16.msra.mxu0 0
  %1125 = vmatprep.mubr.bf16.mxu0 0
  %1126 = vmatmul.mubr.bf16.gmra.mxu0 %v1088
  %v1127 = vpop.f32.mrf.mxu0
  %v1128 = vadd.f32 0.0, %v1127
  %v1129 = vpop.f32.mrf.mxu0
  %v1130 = vpop.f32.mrf.mxu0
  %v1131 = vadd.f32 0.0, %v1130
  %v1132 = vpop.f32.mrf.mxu0
  %1133 = vmatprep.mubr.bf16.mxu0 0
  %1134 = vmatmul.mubr.bf16.gmra.mxu0 %v1091
  %v1135 = vpop.f32.mrf.mxu0
  %v1136 = vadd.f32 0.0, %v1135
  %v1137 = vpop.f32.mrf.mxu0
  %v1138 = vpop.f32.mrf.mxu0
  %v1139 = vpop.f32.mrf.mxu0
  %1140 = vdwg.mxu0
  %v1145 = vunpack.c.l.b16 %v91
  %v1146 = vunpack.c.l.b16 %v92
  %v1147 = vunpack.c.l.b16 %v93
  %v1148 = vunpack.c.l.b16 %v94
  %v1149 = vpack.c.b16 %v1146, %v1145
  %v1150 = vpack.c.b16 %v1148, %v1147
  %v1154 = vsel %vm199, %v1071, 0
  %v1157 = vsel %vm199, %v1072, 0
  %1159 = vmatprep.subr.bf16.mxu0 0
  %1160 = vmatpush1.bf16.msra.mxu0 0
  %1161 = vmatprep.subr.bf16.mxu0 0
  %1162 = vmatpush1.bf16.msra.mxu0 0
  %1163 = vmatprep.subr.bf16.mxu0 0
  %1164 = vmatpush1.bf16.msra.mxu0 0
  %1165 = vmatprep.subr.bf16.mxu0 0
  %1166 = vmatpush1.bf16.msra.mxu0 0
  %1167 = vmatprep.subr.bf16.mxu0 0
  %1168 = vmatpush1.bf16.msra.mxu0 0
  %1169 = vmatprep.subr.bf16.mxu0 0
  %1170 = vmatpush1.bf16.msra.mxu0 0
  %1171 = vmatprep.subr.bf16.mxu0 0
  %1172 = vmatpush1.bf16.msra.mxu0 %v1150
  %1173 = vmatprep.subr.bf16.mxu0 0
  %1174 = vmatpush1.bf16.msra.mxu0 %v1149
  %1175 = vmatprep.subr.bf16.mxu0 0
  %1176 = vmatpush2.bf16.msra.mxu0 0
  %1177 = vmatprep.subr.bf16.mxu0 0
  %1178 = vmatpush2.bf16.msra.mxu0 0
  %1179 = vmatprep.subr.bf16.mxu0 0
  %1180 = vmatpush2.bf16.msra.mxu0 0
  %1181 = vmatprep.subr.bf16.mxu0 0
  %1182 = vmatpush2.bf16.msra.mxu0 0
  %1183 = vmatprep.subr.bf16.mxu0 0
  %1184 = vmatpush2.bf16.msra.mxu0 0
  %1185 = vmatprep.subr.bf16.mxu0 0
  %1186 = vmatpush2.bf16.msra.mxu0 0
  %1187 = vmatprep.subr.bf16.mxu0 0
  %1188 = vmatpush2.bf16.msra.mxu0 0
  %1189 = vmatprep.subr.bf16.mxu0 0
  %1190 = vmatpush2.bf16.msra.mxu0 0
  %1191 = vmatprep.mubr.bf16.mxu0 0
  %1192 = vmatmul.mubr.bf16.gmra.mxu0 %v1154
  %v1193 = vpop.f32.mrf.mxu0
  %v1194 = vadd.f32 %v1128, %v1193
  %v1195 = vpop.f32.mrf.mxu0
  %v1196 = vpop.f32.mrf.mxu0
  %v1197 = vadd.f32 %v1131, %v1196
  %v1198 = vpop.f32.mrf.mxu0
  %1199 = vmatprep.mubr.bf16.mxu0 0
  %1200 = vmatmul.mubr.bf16.gmra.mxu0 %v1157
  %v1201 = vpop.f32.mrf.mxu0
  %v1202 = vadd.f32 %v1136, %v1201
  %v1203 = vpop.f32.mrf.mxu0
  %v1204 = vpop.f32.mrf.mxu0
  %v1205 = vpop.f32.mrf.mxu0
  %1206 = vdwg.mxu0
  %v1211 = vunpack.c.l.b16 %v99
  %v1212 = vunpack.c.l.b16 %v100
  %v1213 = vunpack.c.l.b16 %v101
  %v1214 = vunpack.c.l.b16 %v102
  %v1215 = vpack.c.b16 %v1212, %v1211
  %v1216 = vpack.c.b16 %v1214, %v1213
  %v1220 = vsel %vm199, %v126, 0
  %v1222 = vsel %vm199, %v127, 0
  %1224 = vmatprep.subr.bf16.mxu0 0
  %1225 = vmatpush1.bf16.msra.mxu0 0
  %1226 = vmatprep.subr.bf16.mxu0 0
  %1227 = vmatpush1.bf16.msra.mxu0 0
  %1228 = vmatprep.subr.bf16.mxu0 0
  %1229 = vmatpush1.bf16.msra.mxu0 0
  %1230 = vmatprep.subr.bf16.mxu0 0
  %1231 = vmatpush1.bf16.msra.mxu0 0
  %1232 = vmatprep.subr.bf16.mxu0 0
  %1233 = vmatpush1.bf16.msra.mxu0 0
  %1234 = vmatprep.subr.bf16.mxu0 0
  %1235 = vmatpush1.bf16.msra.mxu0 0
  %1236 = vmatprep.subr.bf16.mxu0 0
  %1237 = vmatpush1.bf16.msra.mxu0 %v1216
  %1238 = vmatprep.subr.bf16.mxu0 0
  %1239 = vmatpush1.bf16.msra.mxu0 %v1215
  %1240 = vmatprep.subr.bf16.mxu0 0
  %1241 = vmatpush2.bf16.msra.mxu0 0
  %1242 = vmatprep.subr.bf16.mxu0 0
  %1243 = vmatpush2.bf16.msra.mxu0 0
  %1244 = vmatprep.subr.bf16.mxu0 0
  %1245 = vmatpush2.bf16.msra.mxu0 0
  %1246 = vmatprep.subr.bf16.mxu0 0
  %1247 = vmatpush2.bf16.msra.mxu0 0
  %1248 = vmatprep.subr.bf16.mxu0 0
  %1249 = vmatpush2.bf16.msra.mxu0 0
  %1250 = vmatprep.subr.bf16.mxu0 0
  %1251 = vmatpush2.bf16.msra.mxu0 0
  %1252 = vmatprep.subr.bf16.mxu0 0
  %1253 = vmatpush2.bf16.msra.mxu0 0
  %1254 = vmatprep.subr.bf16.mxu0 0
  %1255 = vmatpush2.bf16.msra.mxu0 0
  %1256 = vmatprep.mubr.bf16.mxu0 0
  %1257 = vmatmul.mubr.bf16.gmra.mxu0 %v1220
  %v1258 = vpop.f32.mrf.mxu0
  %v1259 = vadd.f32 0.0, %v1258
  %v1260 = vpop.f32.mrf.mxu0
  %v1261 = vpop.f32.mrf.mxu0
  %v1262 = vadd.f32 0.0, %v1261
  %v1263 = vpop.f32.mrf.mxu0
  %1264 = vmatprep.mubr.bf16.mxu0 0
  %1265 = vmatmul.mubr.bf16.gmra.mxu0 %v1222
  %v1266 = vpop.f32.mrf.mxu0
  %v1267 = vadd.f32 0.0, %v1266
  %v1268 = vpop.f32.mrf.mxu0
  %v1269 = vpop.f32.mrf.mxu0
  %v1270 = vpop.f32.mrf.mxu0
  %1271 = vdwg.mxu0
  %v1272 = vadd.f32 %v1194, %v1259
  %v1273 = vadd.f32 %v1197, %v1262
  %v1274 = vadd.f32 %v1202, %v1267
  %v1275 = vlaneseq
  %v1276 = vshrl.u32 %v1275, 7
  %v1277 = vsub.s32 5, %v1276
  %v1278 = vrot.slane %v53, %v1277
  %v1279 = vadd.f32 %v1272, %v1278
  %v1280 = vadd.f32 %v1273, %v1278
  %v1281 = vadd.f32 %v1274, %v1278
  %v1282 = vmax.f32 %v1279, 0.0
  %v1283 = vmax.f32 %v1280, 0.0
  %v1284 = vmax.f32 %v1281, 0.0
  %v1285 = vpack.c.bf16 %v1283, %v1282
  %v1286 = vpack.c.bf16 %v1284, %v1284
  %v1291 = vunpack.c.l.b16 %v103
  %v1292 = vunpack.c.l.b16 %v104
  %v1293 = vunpack.c.l.b16 %v105
  %v1294 = vunpack.c.l.b16 %v106
  %v1295 = vpack.c.b16 %v1292, %v1291
  %v1296 = vpack.c.b16 %v1294, %v1293
  %v1300 = vsel %vm199, %v1285, 0
  %v1303 = vsel %vm199, %v1286, 0
  %1305 = vmatprep.subr.bf16.mxu0 0
  %1306 = vmatpush1.bf16.msra.mxu0 0
  %1307 = vmatprep.subr.bf16.mxu0 0
  %1308 = vmatpush1.bf16.msra.mxu0 0
  %1309 = vmatprep.subr.bf16.mxu0 0
  %1310 = vmatpush1.bf16.msra.mxu0 0
  %1311 = vmatprep.subr.bf16.mxu0 0
  %1312 = vmatpush1.bf16.msra.mxu0 0
  %1313 = vmatprep.subr.bf16.mxu0 0
  %1314 = vmatpush1.bf16.msra.mxu0 0
  %1315 = vmatprep.subr.bf16.mxu0 0
  %1316 = vmatpush1.bf16.msra.mxu0 0
  %1317 = vmatprep.subr.bf16.mxu0 0
  %1318 = vmatpush1.bf16.msra.mxu0 %v1296
  %1319 = vmatprep.subr.bf16.mxu0 0
  %1320 = vmatpush1.bf16.msra.mxu0 %v1295
  %1321 = vmatprep.subr.bf16.mxu0 0
  %1322 = vmatpush2.bf16.msra.mxu0 0
  %1323 = vmatprep.subr.bf16.mxu0 0
  %1324 = vmatpush2.bf16.msra.mxu0 0
  %1325 = vmatprep.subr.bf16.mxu0 0
  %1326 = vmatpush2.bf16.msra.mxu0 0
  %1327 = vmatprep.subr.bf16.mxu0 0
  %1328 = vmatpush2.bf16.msra.mxu0 0
  %1329 = vmatprep.subr.bf16.mxu0 0
  %1330 = vmatpush2.bf16.msra.mxu0 0
  %1331 = vmatprep.subr.bf16.mxu0 0
  %1332 = vmatpush2.bf16.msra.mxu0 0
  %1333 = vmatprep.subr.bf16.mxu0 0
  %1334 = vmatpush2.bf16.msra.mxu0 0
  %1335 = vmatprep.subr.bf16.mxu0 0
  %1336 = vmatpush2.bf16.msra.mxu0 0
  %1337 = vmatprep.mubr.bf16.mxu0 0
  %1338 = vmatmul.mubr.bf16.gmra.mxu0 %v1300
  %v1339 = vpop.f32.mrf.mxu0
  %v1340 = vadd.f32 0.0, %v1339
  %v1341 = vpop.f32.mrf.mxu0
  %v1342 = vpop.f32.mrf.mxu0
  %v1343 = vadd.f32 0.0, %v1342
  %v1344 = vpop.f32.mrf.mxu0
  %1345 = vmatprep.mubr.bf16.mxu0 0
  %1346 = vmatmul.mubr.bf16.gmra.mxu0 %v1303
  %v1347 = vpop.f32.mrf.mxu0
  %v1348 = vadd.f32 0.0, %v1347
  %v1349 = vpop.f32.mrf.mxu0
  %v1350 = vpop.f32.mrf.mxu0
  %v1351 = vpop.f32.mrf.mxu0
  %1352 = vdwg.mxu0
  %v1353 = vadd.f32 %v29, %v1340
  %v1354 = vadd.f32 %v30, %v1343
  %v1355 = vadd.f32 %v31, %v1348
  %v1356 = vlaneseq
  %v1357 = vshrl.u32 %v1356, 7
  %v1358 = vsub.s32 6, %v1357
  %v1359 = vrot.slane %v53, %v1358
  %v1360 = vadd.f32 %v1353, %v1359
  %v1361 = vadd.f32 %v1354, %v1359
  %v1362 = vadd.f32 %v1355, %v1359
  %v1363 = vpack.c.bf16 %v760, %v757
  %v1364 = vpack.c.bf16 %v765, %v765
  %v1365 = vpack.c.bf16 %v773, %v768
  %v1366 = vpack.c.bf16 %v776, %v776
  %v1371 = vunpack.c.l.b16 %v111
  %v1372 = vunpack.c.l.b16 %v112
  %v1373 = vunpack.c.l.b16 %v113
  %v1374 = vunpack.c.l.b16 %v114
  %v1375 = vpack.c.b16 %v1372, %v1371
  %v1376 = vpack.c.b16 %v1374, %v1373
  %v1380 = vsel %vm199, %v1365, 0
  %v1383 = vsel %vm199, %v1366, 0
  %1385 = vmatprep.subr.bf16.mxu0 0
  %1386 = vmatpush1.bf16.msra.mxu0 0
  %1387 = vmatprep.subr.bf16.mxu0 0
  %1388 = vmatpush1.bf16.msra.mxu0 0
  %1389 = vmatprep.subr.bf16.mxu0 0
  %1390 = vmatpush1.bf16.msra.mxu0 0
  %1391 = vmatprep.subr.bf16.mxu0 0
  %1392 = vmatpush1.bf16.msra.mxu0 0
  %1393 = vmatprep.subr.bf16.mxu0 0
  %1394 = vmatpush1.bf16.msra.mxu0 0
  %1395 = vmatprep.subr.bf16.mxu0 0
  %1396 = vmatpush1.bf16.msra.mxu0 0
  %1397 = vmatprep.subr.bf16.mxu0 0
  %1398 = vmatpush1.bf16.msra.mxu0 %v1376
  %1399 = vmatprep.subr.bf16.mxu0 0
  %1400 = vmatpush1.bf16.msra.mxu0 %v1375
  %1401 = vmatprep.subr.bf16.mxu0 0
  %1402 = vmatpush2.bf16.msra.mxu0 0
  %1403 = vmatprep.subr.bf16.mxu0 0
  %1404 = vmatpush2.bf16.msra.mxu0 0
  %1405 = vmatprep.subr.bf16.mxu0 0
  %1406 = vmatpush2.bf16.msra.mxu0 0
  %1407 = vmatprep.subr.bf16.mxu0 0
  %1408 = vmatpush2.bf16.msra.mxu0 0
  %1409 = vmatprep.subr.bf16.mxu0 0
  %1410 = vmatpush2.bf16.msra.mxu0 0
  %1411 = vmatprep.subr.bf16.mxu0 0
  %1412 = vmatpush2.bf16.msra.mxu0 0
  %1413 = vmatprep.subr.bf16.mxu0 0
  %1414 = vmatpush2.bf16.msra.mxu0 0
  %1415 = vmatprep.subr.bf16.mxu0 0
  %1416 = vmatpush2.bf16.msra.mxu0 0
  %1417 = vmatprep.mubr.bf16.mxu0 0
  %1418 = vmatmul.mubr.bf16.gmra.mxu0 %v1380
  %v1419 = vpop.f32.mrf.mxu0
  %v1420 = vadd.f32 0.0, %v1419
  %v1421 = vpop.f32.mrf.mxu0
  %v1422 = vpop.f32.mrf.mxu0
  %v1423 = vadd.f32 0.0, %v1422
  %v1424 = vpop.f32.mrf.mxu0
  %1425 = vmatprep.mubr.bf16.mxu0 0
  %1426 = vmatmul.mubr.bf16.gmra.mxu0 %v1383
  %v1427 = vpop.f32.mrf.mxu0
  %v1428 = vadd.f32 0.0, %v1427
  %v1429 = vpop.f32.mrf.mxu0
  %v1430 = vpop.f32.mrf.mxu0
  %v1431 = vpop.f32.mrf.mxu0
  %1432 = vdwg.mxu0
  %v1437 = vunpack.c.l.b16 %v107
  %v1438 = vunpack.c.l.b16 %v108
  %v1439 = vunpack.c.l.b16 %v109
  %v1440 = vunpack.c.l.b16 %v110
  %v1441 = vpack.c.b16 %v1438, %v1437
  %v1442 = vpack.c.b16 %v1440, %v1439
  %v1446 = vsel %vm199, %v1363, 0
  %v1449 = vsel %vm199, %v1364, 0
  %1451 = vmatprep.subr.bf16.mxu0 0
  %1452 = vmatpush1.bf16.msra.mxu0 0
  %1453 = vmatprep.subr.bf16.mxu0 0
  %1454 = vmatpush1.bf16.msra.mxu0 0
  %1455 = vmatprep.subr.bf16.mxu0 0
  %1456 = vmatpush1.bf16.msra.mxu0 0
  %1457 = vmatprep.subr.bf16.mxu0 0
  %1458 = vmatpush1.bf16.msra.mxu0 0
  %1459 = vmatprep.subr.bf16.mxu0 0
  %1460 = vmatpush1.bf16.msra.mxu0 0
  %1461 = vmatprep.subr.bf16.mxu0 0
  %1462 = vmatpush1.bf16.msra.mxu0 0
  %1463 = vmatprep.subr.bf16.mxu0 0
  %1464 = vmatpush1.bf16.msra.mxu0 %v1442
  %1465 = vmatprep.subr.bf16.mxu0 0
  %1466 = vmatpush1.bf16.msra.mxu0 %v1441
  %1467 = vmatprep.subr.bf16.mxu0 0
  %1468 = vmatpush2.bf16.msra.mxu0 0
  %1469 = vmatprep.subr.bf16.mxu0 0
  %1470 = vmatpush2.bf16.msra.mxu0 0
  %1471 = vmatprep.subr.bf16.mxu0 0
  %1472 = vmatpush2.bf16.msra.mxu0 0
  %1473 = vmatprep.subr.bf16.mxu0 0
  %1474 = vmatpush2.bf16.msra.mxu0 0
  %1475 = vmatprep.subr.bf16.mxu0 0
  %1476 = vmatpush2.bf16.msra.mxu0 0
  %1477 = vmatprep.subr.bf16.mxu0 0
  %1478 = vmatpush2.bf16.msra.mxu0 0
  %1479 = vmatprep.subr.bf16.mxu0 0
  %1480 = vmatpush2.bf16.msra.mxu0 0
  %1481 = vmatprep.subr.bf16.mxu0 0
  %1482 = vmatpush2.bf16.msra.mxu0 0
  %1483 = vmatprep.mubr.bf16.mxu0 0
  %1484 = vmatmul.mubr.bf16.gmra.mxu0 %v1446
  %v1485 = vpop.f32.mrf.mxu0
  %v1486 = vadd.f32 %v1420, %v1485
  %v1487 = vpop.f32.mrf.mxu0
  %v1488 = vpop.f32.mrf.mxu0
  %v1489 = vadd.f32 %v1423, %v1488
  %v1490 = vpop.f32.mrf.mxu0
  %1491 = vmatprep.mubr.bf16.mxu0 0
  %1492 = vmatmul.mubr.bf16.gmra.mxu0 %v1449
  %v1493 = vpop.f32.mrf.mxu0
  %v1494 = vadd.f32 %v1428, %v1493
  %v1495 = vpop.f32.mrf.mxu0
  %v1496 = vpop.f32.mrf.mxu0
  %v1497 = vpop.f32.mrf.mxu0
  %1498 = vdwg.mxu0
  %v1503 = vunpack.c.l.b16 %v115
  %v1504 = vunpack.c.l.b16 %v116
  %v1505 = vunpack.c.l.b16 %v117
  %v1506 = vunpack.c.l.b16 %v118
  %v1507 = vpack.c.b16 %v1504, %v1503
  %v1508 = vpack.c.b16 %v1506, %v1505
  %v1512 = vsel %vm199, %v128, 0
  %v1514 = vsel %vm199, %v129, 0
  %1516 = vmatprep.subr.bf16.mxu0 0
  %1517 = vmatpush1.bf16.msra.mxu0 0
  %1518 = vmatprep.subr.bf16.mxu0 0
  %1519 = vmatpush1.bf16.msra.mxu0 0
  %1520 = vmatprep.subr.bf16.mxu0 0
  %1521 = vmatpush1.bf16.msra.mxu0 0
  %1522 = vmatprep.subr.bf16.mxu0 0
  %1523 = vmatpush1.bf16.msra.mxu0 0
  %1524 = vmatprep.subr.bf16.mxu0 0
  %1525 = vmatpush1.bf16.msra.mxu0 0
  %1526 = vmatprep.subr.bf16.mxu0 0
  %1527 = vmatpush1.bf16.msra.mxu0 0
  %1528 = vmatprep.subr.bf16.mxu0 0
  %1529 = vmatpush1.bf16.msra.mxu0 %v1508
  %1530 = vmatprep.subr.bf16.mxu0 0
  %1531 = vmatpush1.bf16.msra.mxu0 %v1507
  %1532 = vmatprep.subr.bf16.mxu0 0
  %1533 = vmatpush2.bf16.msra.mxu0 0
  %1534 = vmatprep.subr.bf16.mxu0 0
  %1535 = vmatpush2.bf16.msra.mxu0 0
  %1536 = vmatprep.subr.bf16.mxu0 0
  %1537 = vmatpush2.bf16.msra.mxu0 0
  %1538 = vmatprep.subr.bf16.mxu0 0
  %1539 = vmatpush2.bf16.msra.mxu0 0
  %1540 = vmatprep.subr.bf16.mxu0 0
  %1541 = vmatpush2.bf16.msra.mxu0 0
  %1542 = vmatprep.subr.bf16.mxu0 0
  %1543 = vmatpush2.bf16.msra.mxu0 0
  %1544 = vmatprep.subr.bf16.mxu0 0
  %1545 = vmatpush2.bf16.msra.mxu0 0
  %1546 = vmatprep.subr.bf16.mxu0 0
  %1547 = vmatpush2.bf16.msra.mxu0 0
  %1548 = vmatprep.mubr.bf16.mxu0 0
  %1549 = vmatmul.mubr.bf16.gmra.mxu0 %v1512
  %v1550 = vpop.f32.mrf.mxu0
  %v1551 = vadd.f32 0.0, %v1550
  %v1552 = vpop.f32.mrf.mxu0
  %v1553 = vpop.f32.mrf.mxu0
  %v1554 = vadd.f32 0.0, %v1553
  %v1555 = vpop.f32.mrf.mxu0
  %1556 = vmatprep.mubr.bf16.mxu0 0
  %1557 = vmatmul.mubr.bf16.gmra.mxu0 %v1514
  %v1558 = vpop.f32.mrf.mxu0
  %v1559 = vadd.f32 0.0, %v1558
  %v1560 = vpop.f32.mrf.mxu0
  %v1561 = vpop.f32.mrf.mxu0
  %v1562 = vpop.f32.mrf.mxu0
  %1563 = vdwg.mxu0
  %v1564 = vadd.f32 %v1486, %v1551
  %v1565 = vadd.f32 %v1489, %v1554
  %v1566 = vadd.f32 %v1494, %v1559
  %v1567 = vlaneseq
  %v1568 = vshrl.u32 %v1567, 7
  %v1569 = vsub.s32 7, %v1568
  %v1570 = vrot.slane %v53, %v1569
  %v1571 = vadd.f32 %v1564, %v1570
  %v1572 = vadd.f32 %v1565, %v1570
  %v1573 = vadd.f32 %v1566, %v1570
  %v1574 = vmax.f32 %v1571, 0.0
  %v1575 = vmax.f32 %v1572, 0.0
  %v1576 = vmax.f32 %v1573, 0.0
  %v1577 = vpack.c.bf16 %v1575, %v1574
  %v1578 = vpack.c.bf16 %v1576, %v1576
  %v1583 = vunpack.c.l.b16 %v119
  %v1584 = vunpack.c.l.b16 %v120
  %v1585 = vunpack.c.l.b16 %v121
  %v1586 = vunpack.c.l.b16 %v122
  %v1587 = vpack.c.b16 %v1584, %v1583
  %v1588 = vpack.c.b16 %v1586, %v1585
  %v1592 = vsel %vm199, %v1577, 0
  %v1595 = vsel %vm199, %v1578, 0
  %1597 = vmatprep.subr.bf16.mxu0 0
  %1598 = vmatpush1.bf16.msra.mxu0 0
  %1599 = vmatprep.subr.bf16.mxu0 0
  %1600 = vmatpush1.bf16.msra.mxu0 0
  %1601 = vmatprep.subr.bf16.mxu0 0
  %1602 = vmatpush1.bf16.msra.mxu0 0
  %1603 = vmatprep.subr.bf16.mxu0 0
  %1604 = vmatpush1.bf16.msra.mxu0 0
  %1605 = vmatprep.subr.bf16.mxu0 0
  %1606 = vmatpush1.bf16.msra.mxu0 0
  %1607 = vmatprep.subr.bf16.mxu0 0
  %1608 = vmatpush1.bf16.msra.mxu0 0
  %1609 = vmatprep.subr.bf16.mxu0 0
  %1610 = vmatpush1.bf16.msra.mxu0 %v1588
  %1611 = vmatprep.subr.bf16.mxu0 0
  %1612 = vmatpush1.bf16.msra.mxu0 %v1587
  %1613 = vmatprep.subr.bf16.mxu0 0
  %1614 = vmatpush2.bf16.msra.mxu0 0
  %1615 = vmatprep.subr.bf16.mxu0 0
  %1616 = vmatpush2.bf16.msra.mxu0 0
  %1617 = vmatprep.subr.bf16.mxu0 0
  %1618 = vmatpush2.bf16.msra.mxu0 0
  %1619 = vmatprep.subr.bf16.mxu0 0
  %1620 = vmatpush2.bf16.msra.mxu0 0
  %1621 = vmatprep.subr.bf16.mxu0 0
  %1622 = vmatpush2.bf16.msra.mxu0 0
  %1623 = vmatprep.subr.bf16.mxu0 0
  %1624 = vmatpush2.bf16.msra.mxu0 0
  %1625 = vmatprep.subr.bf16.mxu0 0
  %1626 = vmatpush2.bf16.msra.mxu0 0
  %1627 = vmatprep.subr.bf16.mxu0 0
  %1628 = vmatpush2.bf16.msra.mxu0 0
  %1629 = vmatprep.mubr.bf16.mxu0 0
  %1630 = vmatmul.mubr.bf16.gmra.mxu0 %v1592
  %v1631 = vpop.f32.mrf.mxu0
  %v1632 = vadd.f32 0.0, %v1631
  %v1633 = vpop.f32.mrf.mxu0
  %v1634 = vpop.f32.mrf.mxu0
  %v1635 = vadd.f32 0.0, %v1634
  %v1636 = vpop.f32.mrf.mxu0
  %1637 = vmatprep.mubr.bf16.mxu0 0
  %1638 = vmatmul.mubr.bf16.gmra.mxu0 %v1595
  %v1639 = vpop.f32.mrf.mxu0
  %v1640 = vadd.f32 0.0, %v1639
  %v1641 = vpop.f32.mrf.mxu0
  %v1642 = vpop.f32.mrf.mxu0
  %v1643 = vpop.f32.mrf.mxu0
  %1644 = vdwg.mxu0
  %v1645 = vadd.f32 %v32, %v1632
  %v1646 = vadd.f32 %v33, %v1635
  %v1647 = vadd.f32 %v34, %v1640
  %v1648 = vlaneseq
  %v1649 = vshrl.u32 %v1648, 7
  %v1650 = vsub.s32 0, %v1649
  %v1651 = vrot.slane %v54, %v1650
  %v1652 = vadd.f32 %v1645, %v1651
  %v1653 = vadd.f32 %v1646, %v1651
  %v1654 = vadd.f32 %v1647, %v1651
  %v1655 = vpack.c.bf16 %v600, %v599
  %v1656 = vpack.c.bf16 %v1069, %v1068
  %v1657 = vpack.c.bf16 %v1070, %v1070
  %v1658 = vpack.c.bf16 %v1361, %v1360
  %v1659 = vpack.c.bf16 %v1362, %v1362
  %v1660 = vpack.c.bf16 %v1653, %v1652
  %v1661 = vpack.c.bf16 %v1654, %v1654
  %v1663 = vsel %vm141, %v1657, 0
  %1665 = vmatprep.subr.bf16.mxu0 0
  %1666 = vmatpush1.bf16.msra.mxu0 0
  %1667 = vmatprep.subr.bf16.mxu0 0
  %1668 = vmatpush1.bf16.msra.mxu0 0
  %1669 = vmatprep.subr.bf16.mxu0 0
  %1670 = vmatpush1.bf16.msra.mxu0 0
  %1671 = vmatprep.subr.bf16.mxu0 0
  %1672 = vmatpush1.bf16.msra.mxu0 0
  %1673 = vmatprep.subr.bf16.mxu0 0
  %1674 = vmatpush1.bf16.msra.mxu0 0
  %1675 = vmatprep.subr.bf16.mxu0 0
  %1676 = vmatpush1.bf16.msra.mxu0 0
  %1677 = vmatprep.subr.bf16.mxu0 0
  %1678 = vmatpush1.bf16.msra.mxu0 %v1663
  %1679 = vmatprep.subr.bf16.mxu0 0
  %1680 = vmatpush1.bf16.msra.mxu0 %v1656
  %1681 = vmatprep.subr.bf16.mxu0 0
  %1682 = vmatpush2.bf16.msra.mxu0 0
  %1683 = vmatprep.subr.bf16.mxu0 0
  %1684 = vmatpush2.bf16.msra.mxu0 0
  %1685 = vmatprep.subr.bf16.mxu0 0
  %1686 = vmatpush2.bf16.msra.mxu0 0
  %1687 = vmatprep.subr.bf16.mxu0 0
  %1688 = vmatpush2.bf16.msra.mxu0 0
  %1689 = vmatprep.subr.bf16.mxu0 0
  %1690 = vmatpush2.bf16.msra.mxu0 0
  %1691 = vmatprep.subr.bf16.mxu0 0
  %1692 = vmatpush2.bf16.msra.mxu0 0
  %1693 = vmatprep.subr.bf16.mxu0 0
  %1694 = vmatpush2.bf16.msra.mxu0 0
  %1695 = vmatprep.subr.bf16.mxu0 0
  %1696 = vmatpush2.bf16.msra.mxu0 0
  %1697 = vmatprep.mubr.bf16.mxu0 0
  %1698 = vmatmul.mubr.bf16.gmra.mxu0 %v139
  %v1699 = vpop.f32.mrf.mxu0
  %v1700 = vadd.f32 0.0, %v1699
  %v1701 = vpop.f32.mrf.mxu0
  %v1702 = vpop.f32.mrf.mxu0
  %v1703 = vadd.f32 0.0, %v1702
  %v1704 = vpop.f32.mrf.mxu0
  %1705 = vdwg.mxu0
  %v1706 = vpack.c.bf16 %v1703, %v1700
  %v1708 = vsel %vm199, %v1706, 0
  %1710 = vmatprep.subr.bf16.mxu0 0
  %1711 = vmatpush1.bf16.msra.mxu0 0
  %1712 = vmatprep.subr.bf16.mxu0 0
  %1713 = vmatpush1.bf16.msra.mxu0 0
  %1714 = vmatprep.subr.bf16.mxu0 0
  %1715 = vmatpush1.bf16.msra.mxu0 0
  %1716 = vmatprep.subr.bf16.mxu0 0
  %1717 = vmatpush1.bf16.msra.mxu0 0
  %1718 = vmatprep.subr.bf16.mxu0 0
  %1719 = vmatpush1.bf16.msra.mxu0 0
  %1720 = vmatprep.subr.bf16.mxu0 0
  %1721 = vmatpush1.bf16.msra.mxu0 0
  %1722 = vmatprep.subr.bf16.mxu0 0
  %1723 = vmatpush1.bf16.msra.mxu0 %v196
  %1724 = vmatprep.subr.bf16.mxu0 0
  %1725 = vmatpush1.bf16.msra.mxu0 %v195
  %1726 = vmatprep.subr.bf16.mxu0 0
  %1727 = vmatpush2.bf16.msra.mxu0 0
  %1728 = vmatprep.subr.bf16.mxu0 0
  %1729 = vmatpush2.bf16.msra.mxu0 0
  %1730 = vmatprep.subr.bf16.mxu0 0
  %1731 = vmatpush2.bf16.msra.mxu0 0
  %1732 = vmatprep.subr.bf16.mxu0 0
  %1733 = vmatpush2.bf16.msra.mxu0 0
  %1734 = vmatprep.subr.bf16.mxu0 0
  %1735 = vmatpush2.bf16.msra.mxu0 0
  %1736 = vmatprep.subr.bf16.mxu0 0
  %1737 = vmatpush2.bf16.msra.mxu0 0
  %1738 = vmatprep.subr.bf16.mxu0 0
  %1739 = vmatpush2.bf16.msra.mxu0 0
  %1740 = vmatprep.subr.bf16.mxu0 0
  %1741 = vmatpush2.bf16.msra.mxu0 0
  %1742 = vmatprep.mubr.bf16.mxu0 0
  %1743 = vmatmul.mubr.bf16.gmra.mxu0 %v1708
  %v1744 = vpop.f32.mrf.mxu0
  %v1745 = vadd.f32 0.0, %v1744
  %v1746 = vpop.f32.mrf.mxu0
  %v1747 = vpop.f32.mrf.mxu0
  %v1748 = vadd.f32 0.0, %v1747
  %v1749 = vpop.f32.mrf.mxu0
  %1750 = vdwg.mxu0
  %v1752 = vsel %vm199, %v1655, 0
  %1754 = vmatprep.subr.bf16.mxu0 0
  %1755 = vmatpush1.bf16.msra.mxu0 0
  %1756 = vmatprep.subr.bf16.mxu0 0
  %1757 = vmatpush1.bf16.msra.mxu0 0
  %1758 = vmatprep.subr.bf16.mxu0 0
  %1759 = vmatpush1.bf16.msra.mxu0 0
  %1760 = vmatprep.subr.bf16.mxu0 0
  %1761 = vmatpush1.bf16.msra.mxu0 0
  %1762 = vmatprep.subr.bf16.mxu0 0
  %1763 = vmatpush1.bf16.msra.mxu0 0
  %1764 = vmatprep.subr.bf16.mxu0 0
  %1765 = vmatpush1.bf16.msra.mxu0 0
  %1766 = vmatprep.subr.bf16.mxu0 0
  %1767 = vmatpush1.bf16.msra.mxu0 %v253
  %1768 = vmatprep.subr.bf16.mxu0 0
  %1769 = vmatpush1.bf16.msra.mxu0 %v252
  %1770 = vmatprep.subr.bf16.mxu0 0
  %1771 = vmatpush2.bf16.msra.mxu0 0
  %1772 = vmatprep.subr.bf16.mxu0 0
  %1773 = vmatpush2.bf16.msra.mxu0 0
  %1774 = vmatprep.subr.bf16.mxu0 0
  %1775 = vmatpush2.bf16.msra.mxu0 0
  %1776 = vmatprep.subr.bf16.mxu0 0
  %1777 = vmatpush2.bf16.msra.mxu0 0
  %1778 = vmatprep.subr.bf16.mxu0 0
  %1779 = vmatpush2.bf16.msra.mxu0 0
  %1780 = vmatprep.subr.bf16.mxu0 0
  %1781 = vmatpush2.bf16.msra.mxu0 0
  %1782 = vmatprep.subr.bf16.mxu0 0
  %1783 = vmatpush2.bf16.msra.mxu0 0
  %1784 = vmatprep.subr.bf16.mxu0 0
  %1785 = vmatpush2.bf16.msra.mxu0 0
  %1786 = vmatprep.mubr.bf16.mxu0 0
  %1787 = vmatmul.mubr.bf16.gmra.mxu0 %v1752
  %v1788 = vpop.f32.mrf.mxu0
  %v1789 = vadd.f32 %v1745, %v1788
  %v1790 = vpop.f32.mrf.mxu0
  %v1791 = vpop.f32.mrf.mxu0
  %v1792 = vadd.f32 %v1748, %v1791
  %v1793 = vpop.f32.mrf.mxu0
  %1794 = vdwg.mxu0
  %v1796 = vsel %vm141, %v1659, 0
  %1798 = vmatprep.subr.bf16.mxu0 0
  %1799 = vmatpush1.bf16.msra.mxu0 0
  %1800 = vmatprep.subr.bf16.mxu0 0
  %1801 = vmatpush1.bf16.msra.mxu0 0
  %1802 = vmatprep.subr.bf16.mxu0 0
  %1803 = vmatpush1.bf16.msra.mxu0 0
  %1804 = vmatprep.subr.bf16.mxu0 0
  %1805 = vmatpush1.bf16.msra.mxu0 0
  %1806 = vmatprep.subr.bf16.mxu0 0
  %1807 = vmatpush1.bf16.msra.mxu0 0
  %1808 = vmatprep.subr.bf16.mxu0 0
  %1809 = vmatpush1.bf16.msra.mxu0 0
  %1810 = vmatprep.subr.bf16.mxu0 0
  %1811 = vmatpush1.bf16.msra.mxu0 %v1796
  %1812 = vmatprep.subr.bf16.mxu0 0
  %1813 = vmatpush1.bf16.msra.mxu0 %v1658
  %1814 = vmatprep.subr.bf16.mxu0 0
  %1815 = vmatpush2.bf16.msra.mxu0 0
  %1816 = vmatprep.subr.bf16.mxu0 0
  %1817 = vmatpush2.bf16.msra.mxu0 0
  %1818 = vmatprep.subr.bf16.mxu0 0
  %1819 = vmatpush2.bf16.msra.mxu0 0
  %1820 = vmatprep.subr.bf16.mxu0 0
  %1821 = vmatpush2.bf16.msra.mxu0 0
  %1822 = vmatprep.subr.bf16.mxu0 0
  %1823 = vmatpush2.bf16.msra.mxu0 0
  %1824 = vmatprep.subr.bf16.mxu0 0
  %1825 = vmatpush2.bf16.msra.mxu0 0
  %1826 = vmatprep.subr.bf16.mxu0 0
  %1827 = vmatpush2.bf16.msra.mxu0 0
  %1828 = vmatprep.subr.bf16.mxu0 0
  %1829 = vmatpush2.bf16.msra.mxu0 0
  %1830 = vmatprep.mubr.bf16.mxu0 0
  %1831 = vmatmul.mubr.bf16.gmra.mxu0 %v309
  %v1832 = vpop.f32.mrf.mxu0
  %v1833 = vadd.f32 0.0, %v1832
  %v1834 = vpop.f32.mrf.mxu0
  %v1835 = vpop.f32.mrf.mxu0
  %v1836 = vadd.f32 0.0, %v1835
  %v1837 = vpop.f32.mrf.mxu0
  %1838 = vdwg.mxu0
  %v1839 = vpack.c.bf16 %v1836, %v1833
  %v1841 = vsel %vm199, %v1839, 0
  %1843 = vmatprep.subr.bf16.mxu0 0
  %1844 = vmatpush1.bf16.msra.mxu0 0
  %1845 = vmatprep.subr.bf16.mxu0 0
  %1846 = vmatpush1.bf16.msra.mxu0 0
  %1847 = vmatprep.subr.bf16.mxu0 0
  %1848 = vmatpush1.bf16.msra.mxu0 0
  %1849 = vmatprep.subr.bf16.mxu0 0
  %1850 = vmatpush1.bf16.msra.mxu0 0
  %1851 = vmatprep.subr.bf16.mxu0 0
  %1852 = vmatpush1.bf16.msra.mxu0 0
  %1853 = vmatprep.subr.bf16.mxu0 0
  %1854 = vmatpush1.bf16.msra.mxu0 0
  %1855 = vmatprep.subr.bf16.mxu0 0
  %1856 = vmatpush1.bf16.msra.mxu0 %v365
  %1857 = vmatprep.subr.bf16.mxu0 0
  %1858 = vmatpush1.bf16.msra.mxu0 %v364
  %1859 = vmatprep.subr.bf16.mxu0 0
  %1860 = vmatpush2.bf16.msra.mxu0 0
  %1861 = vmatprep.subr.bf16.mxu0 0
  %1862 = vmatpush2.bf16.msra.mxu0 0
  %1863 = vmatprep.subr.bf16.mxu0 0
  %1864 = vmatpush2.bf16.msra.mxu0 0
  %1865 = vmatprep.subr.bf16.mxu0 0
  %1866 = vmatpush2.bf16.msra.mxu0 0
  %1867 = vmatprep.subr.bf16.mxu0 0
  %1868 = vmatpush2.bf16.msra.mxu0 0
  %1869 = vmatprep.subr.bf16.mxu0 0
  %1870 = vmatpush2.bf16.msra.mxu0 0
  %1871 = vmatprep.subr.bf16.mxu0 0
  %1872 = vmatpush2.bf16.msra.mxu0 0
  %1873 = vmatprep.subr.bf16.mxu0 0
  %1874 = vmatpush2.bf16.msra.mxu0 0
  %1875 = vmatprep.mubr.bf16.mxu0 0
  %1876 = vmatmul.mubr.bf16.gmra.mxu0 %v1841
  %v1877 = vpop.f32.mrf.mxu0
  %v1878 = vadd.f32 0.0, %v1877
  %v1879 = vpop.f32.mrf.mxu0
  %v1880 = vpop.f32.mrf.mxu0
  %v1881 = vadd.f32 0.0, %v1880
  %v1882 = vpop.f32.mrf.mxu0
  %1883 = vdwg.mxu0
  %v1884 = vadd.f32 %v1789, %v1878
  %v1885 = vadd.f32 %v1792, %v1881
  %v1887 = vsel %vm141, %v1661, 0
  %1889 = vmatprep.subr.bf16.mxu0 0
  %1890 = vmatpush1.bf16.msra.mxu0 0
  %1891 = vmatprep.subr.bf16.mxu0 0
  %1892 = vmatpush1.bf16.msra.mxu0 0
  %1893 = vmatprep.subr.bf16.mxu0 0
  %1894 = vmatpush1.bf16.msra.mxu0 0
  %1895 = vmatprep.subr.bf16.mxu0 0
  %1896 = vmatpush1.bf16.msra.mxu0 0
  %1897 = vmatprep.subr.bf16.mxu0 0
  %1898 = vmatpush1.bf16.msra.mxu0 0
  %1899 = vmatprep.subr.bf16.mxu0 0
  %1900 = vmatpush1.bf16.msra.mxu0 0
  %1901 = vmatprep.subr.bf16.mxu0 0
  %1902 = vmatpush1.bf16.msra.mxu0 %v1887
  %1903 = vmatprep.subr.bf16.mxu0 0
  %1904 = vmatpush1.bf16.msra.mxu0 %v1660
  %1905 = vmatprep.subr.bf16.mxu0 0
  %1906 = vmatpush2.bf16.msra.mxu0 0
  %1907 = vmatprep.subr.bf16.mxu0 0
  %1908 = vmatpush2.bf16.msra.mxu0 0
  %1909 = vmatprep.subr.bf16.mxu0 0
  %1910 = vmatpush2.bf16.msra.mxu0 0
  %1911 = vmatprep.subr.bf16.mxu0 0
  %1912 = vmatpush2.bf16.msra.mxu0 0
  %1913 = vmatprep.subr.bf16.mxu0 0
  %1914 = vmatpush2.bf16.msra.mxu0 0
  %1915 = vmatprep.subr.bf16.mxu0 0
  %1916 = vmatpush2.bf16.msra.mxu0 0
  %1917 = vmatprep.subr.bf16.mxu0 0
  %1918 = vmatpush2.bf16.msra.mxu0 0
  %1919 = vmatprep.subr.bf16.mxu0 0
  %1920 = vmatpush2.bf16.msra.mxu0 0
  %1921 = vmatprep.mubr.bf16.mxu0 0
  %1922 = vmatmul.mubr.bf16.gmra.mxu0 %v423
  %v1923 = vpop.f32.mrf.mxu0
  %v1924 = vadd.f32 0.0, %v1923
  %v1925 = vpop.f32.mrf.mxu0
  %v1926 = vpop.f32.mrf.mxu0
  %v1927 = vadd.f32 0.0, %v1926
  %v1928 = vpop.f32.mrf.mxu0
  %1929 = vdwg.mxu0
  %v1930 = vpack.c.bf16 %v1927, %v1924
  %v1932 = vsel %vm199, %v1930, 0
  %1934 = vmatprep.subr.bf16.mxu0 0
  %1935 = vmatpush1.bf16.msra.mxu0 0
  %1936 = vmatprep.subr.bf16.mxu0 0
  %1937 = vmatpush1.bf16.msra.mxu0 0
  %1938 = vmatprep.subr.bf16.mxu0 0
  %1939 = vmatpush1.bf16.msra.mxu0 0
  %1940 = vmatprep.subr.bf16.mxu0 0
  %1941 = vmatpush1.bf16.msra.mxu0 0
  %1942 = vmatprep.subr.bf16.mxu0 0
  %1943 = vmatpush1.bf16.msra.mxu0 0
  %1944 = vmatprep.subr.bf16.mxu0 0
  %1945 = vmatpush1.bf16.msra.mxu0 0
  %1946 = vmatprep.subr.bf16.mxu0 0
  %1947 = vmatpush1.bf16.msra.mxu0 %v479
  %1948 = vmatprep.subr.bf16.mxu0 0
  %1949 = vmatpush1.bf16.msra.mxu0 %v478
  %1950 = vmatprep.subr.bf16.mxu0 0
  %1951 = vmatpush2.bf16.msra.mxu0 0
  %1952 = vmatprep.subr.bf16.mxu0 0
  %1953 = vmatpush2.bf16.msra.mxu0 0
  %1954 = vmatprep.subr.bf16.mxu0 0
  %1955 = vmatpush2.bf16.msra.mxu0 0
  %1956 = vmatprep.subr.bf16.mxu0 0
  %1957 = vmatpush2.bf16.msra.mxu0 0
  %1958 = vmatprep.subr.bf16.mxu0 0
  %1959 = vmatpush2.bf16.msra.mxu0 0
  %1960 = vmatprep.subr.bf16.mxu0 0
  %1961 = vmatpush2.bf16.msra.mxu0 0
  %1962 = vmatprep.subr.bf16.mxu0 0
  %1963 = vmatpush2.bf16.msra.mxu0 0
  %1964 = vmatprep.subr.bf16.mxu0 0
  %1965 = vmatpush2.bf16.msra.mxu0 0
  %1966 = vmatprep.mubr.bf16.mxu0 0
  %1967 = vmatmul.mubr.bf16.gmra.mxu0 %v1932
  %v1968 = vpop.f32.mrf.mxu0
  %v1969 = vadd.f32 0.0, %v1968
  %v1970 = vpop.f32.mrf.mxu0
  %v1971 = vpop.f32.mrf.mxu0
  %v1972 = vadd.f32 0.0, %v1971
  %v1973 = vpop.f32.mrf.mxu0
  %1974 = vdwg.mxu0
  %v1975 = vadd.f32 %v1884, %v1969
  %v1976 = vadd.f32 %v1885, %v1972
  %v1977 = vadd.f32 %v1975, %v531
  %v1978 = vadd.f32 %v1976, %v531
  %v1979 = vmax.f32 %v1977, 0.0
  %v1980 = vmax.f32 %v1978, 0.0
  %v1981 = vpack.c.bf16 %v1980, %v1979
  %v1983 = vsel %vm199, %v1981, 0
  %1985 = vmatprep.subr.bf16.mxu0 0
  %1986 = vmatpush1.bf16.msra.mxu0 0
  %1987 = vmatprep.subr.bf16.mxu0 0
  %1988 = vmatpush1.bf16.msra.mxu0 0
  %1989 = vmatprep.subr.bf16.mxu0 0
  %1990 = vmatpush1.bf16.msra.mxu0 0
  %1991 = vmatprep.subr.bf16.mxu0 0
  %1992 = vmatpush1.bf16.msra.mxu0 0
  %1993 = vmatprep.subr.bf16.mxu0 0
  %1994 = vmatpush1.bf16.msra.mxu0 0
  %1995 = vmatprep.subr.bf16.mxu0 0
  %1996 = vmatpush1.bf16.msra.mxu0 0
  %1997 = vmatprep.subr.bf16.mxu0 0
  %1998 = vmatpush1.bf16.msra.mxu0 %v546
  %1999 = vmatprep.subr.bf16.mxu0 0
  %2000 = vmatpush1.bf16.msra.mxu0 %v545
  %2001 = vmatprep.subr.bf16.mxu0 0
  %2002 = vmatpush2.bf16.msra.mxu0 0
  %2003 = vmatprep.subr.bf16.mxu0 0
  %2004 = vmatpush2.bf16.msra.mxu0 0
  %2005 = vmatprep.subr.bf16.mxu0 0
  %2006 = vmatpush2.bf16.msra.mxu0 0
  %2007 = vmatprep.subr.bf16.mxu0 0
  %2008 = vmatpush2.bf16.msra.mxu0 0
  %2009 = vmatprep.subr.bf16.mxu0 0
  %2010 = vmatpush2.bf16.msra.mxu0 0
  %2011 = vmatprep.subr.bf16.mxu0 0
  %2012 = vmatpush2.bf16.msra.mxu0 0
  %2013 = vmatprep.subr.bf16.mxu0 0
  %2014 = vmatpush2.bf16.msra.mxu0 0
  %2015 = vmatprep.subr.bf16.mxu0 0
  %2016 = vmatpush2.bf16.msra.mxu0 0
  %2017 = vmatprep.mubr.bf16.mxu0 0
  %2018 = vmatmul.mubr.bf16.gmra.mxu0 %v1983
  %v2019 = vpop.f32.mrf.mxu0
  %v2020 = vadd.f32 0.0, %v2019
  %v2021 = vpop.f32.mrf.mxu0
  %v2022 = vpop.f32.mrf.mxu0
  %v2023 = vadd.f32 0.0, %v2022
  %v2024 = vpop.f32.mrf.mxu0
  %2025 = vdwg.mxu0
  %v2026 = vadd.f32 %v599, %v2020
  %v2027 = vadd.f32 %v600, %v2023
  %v2028 = vadd.f32 %v2026, %v598
  %v2029 = vadd.f32 %v2027, %v598
  %2030 = vmatprep.subr.bf16.mxu0 0
  %2031 = vmatpush1.bf16.msra.mxu0 0
  %2032 = vmatprep.subr.bf16.mxu0 0
  %2033 = vmatpush1.bf16.msra.mxu0 0
  %2034 = vmatprep.subr.bf16.mxu0 0
  %2035 = vmatpush1.bf16.msra.mxu0 0
  %2036 = vmatprep.subr.bf16.mxu0 0
  %2037 = vmatpush1.bf16.msra.mxu0 0
  %2038 = vmatprep.subr.bf16.mxu0 0
  %2039 = vmatpush1.bf16.msra.mxu0 0
  %2040 = vmatprep.subr.bf16.mxu0 0
  %2041 = vmatpush1.bf16.msra.mxu0 0
  %2042 = vmatprep.subr.bf16.mxu0 0
  %2043 = vmatpush1.bf16.msra.mxu0 0
  %2044 = vmatprep.subr.bf16.mxu0 0
  %2045 = vmatpush1.bf16.msra.mxu0 %v1655
  %2046 = vmatprep.subr.bf16.mxu0 0
  %2047 = vmatpush2.bf16.msra.mxu0 0
  %2048 = vmatprep.subr.bf16.mxu0 0
  %2049 = vmatpush2.bf16.msra.mxu0 0
  %2050 = vmatprep.subr.bf16.mxu0 0
  %2051 = vmatpush2.bf16.msra.mxu0 0
  %2052 = vmatprep.subr.bf16.mxu0 0
  %2053 = vmatpush2.bf16.msra.mxu0 0
  %2054 = vmatprep.subr.bf16.mxu0 0
  %2055 = vmatpush2.bf16.msra.mxu0 0
  %2056 = vmatprep.subr.bf16.mxu0 0
  %2057 = vmatpush2.bf16.msra.mxu0 0
  %2058 = vmatprep.subr.bf16.mxu0 0
  %2059 = vmatpush2.bf16.msra.mxu0 0
  %2060 = vmatprep.subr.bf16.mxu0 0
  %2061 = vmatpush2.bf16.msra.mxu0 0
  %2062 = vmatprep.mubr.bf16.mxu0 0
  %2063 = vmatmul.mubr.bf16.gmra.mxu0 %v648
  %v2064 = vpop.f32.mrf.mxu0
  %v2065 = vadd.f32 0.0, %v2064
  %v2066 = vpop.f32.mrf.mxu0
  %v2067 = vpop.f32.mrf.mxu0
  %v2068 = vadd.f32 0.0, %v2067
  %v2069 = vpop.f32.mrf.mxu0
  %2070 = vmatprep.mubr.bf16.mxu0 0
  %2071 = vmatmul.mubr.bf16.gmra.mxu0 %v651
  %v2072 = vpop.f32.mrf.mxu0
  %v2073 = vadd.f32 0.0, %v2072
  %v2074 = vpop.f32.mrf.mxu0
  %v2075 = vpop.f32.mrf.mxu0
  %v2076 = vadd.f32 0.0, %v2075
  %v2077 = vpop.f32.mrf.mxu0
  %2078 = vmatprep.mubr.bf16.mxu0 0
  %2079 = vmatmul.mubr.bf16.gmra.mxu0 %v654
  %v2080 = vpop.f32.mrf.mxu0
  %v2081 = vadd.f32 0.0, %v2080
  %v2082 = vpop.f32.mrf.mxu0
  %v2083 = vpop.f32.mrf.mxu0
  %v2084 = vadd.f32 0.0, %v2083
  %v2085 = vpop.f32.mrf.mxu0
  %2086 = vmatprep.mubr.bf16.mxu0 0
  %2087 = vmatmul.mubr.bf16.gmra.mxu0 %v657
  %v2088 = vpop.f32.mrf.mxu0
  %v2089 = vadd.f32 0.0, %v2088
  %v2090 = vpop.f32.mrf.mxu0
  %v2091 = vpop.f32.mrf.mxu0
  %v2092 = vadd.f32 0.0, %v2091
  %v2093 = vpop.f32.mrf.mxu0
  %2094 = vmatprep.mubr.bf16.mxu0 0
  %2095 = vmatmul.mubr.bf16.gmra.mxu0 %v660
  %v2096 = vpop.f32.mrf.mxu0
  %v2097 = vadd.f32 0.0, %v2096
  %v2098 = vpop.f32.mrf.mxu0
  %v2099 = vpop.f32.mrf.mxu0
  %v2100 = vadd.f32 0.0, %v2099
  %v2101 = vpop.f32.mrf.mxu0
  %2102 = vmatprep.mubr.bf16.mxu0 0
  %2103 = vmatmul.mubr.bf16.gmra.mxu0 %v663
  %v2104 = vpop.f32.mrf.mxu0
  %v2105 = vadd.f32 0.0, %v2104
  %v2106 = vpop.f32.mrf.mxu0
  %v2107 = vpop.f32.mrf.mxu0
  %v2108 = vadd.f32 0.0, %v2107
  %v2109 = vpop.f32.mrf.mxu0
  %2110 = vmatprep.mubr.bf16.mxu0 0
  %2111 = vmatmul.mubr.bf16.gmra.mxu0 %v666
  %v2112 = vpop.f32.mrf.mxu0
  %v2113 = vadd.f32 0.0, %v2112
  %v2114 = vpop.f32.mrf.mxu0
  %v2115 = vpop.f32.mrf.mxu0
  %v2116 = vadd.f32 0.0, %v2115
  %v2117 = vpop.f32.mrf.mxu0
  %2118 = vmatprep.mubr.bf16.mxu0 0
  %2119 = vmatmul.mubr.bf16.gmra.mxu0 %v669
  %v2120 = vpop.f32.mrf.mxu0
  %v2121 = vadd.f32 0.0, %v2120
  %v2122 = vpop.f32.mrf.mxu0
  %v2123 = vpop.f32.mrf.mxu0
  %v2124 = vadd.f32 0.0, %v2123
  %v2125 = vpop.f32.mrf.mxu0
  %2126 = vmatprep.mubr.bf16.mxu0 0
  %2127 = vmatmul.mubr.bf16.gmra.mxu0 %v672
  %v2128 = vpop.f32.mrf.mxu0
  %v2129 = vadd.f32 0.0, %v2128
  %v2130 = vpop.f32.mrf.mxu0
  %v2131 = vpop.f32.mrf.mxu0
  %v2132 = vadd.f32 0.0, %v2131
  %v2133 = vpop.f32.mrf.mxu0
  %2134 = vdwg.mxu0
  %v2135 = vpack.c.bf16 %v2068, %v2065
  %v2136 = vpack.c.bf16 %v2073, %v2073
  %v2137 = vpack.c.bf16 %v2081, %v2076
  %v2138 = vpack.c.bf16 %v2084, %v2084
  %v2140 = vsel %vm199, %v2137, 0
  %v2143 = vsel %vm199, %v2138, 0
  %2145 = vmatprep.subr.bf16.mxu0 0
  %2146 = vmatpush1.bf16.msra.mxu0 0
  %2147 = vmatprep.subr.bf16.mxu0 0
  %2148 = vmatpush1.bf16.msra.mxu0 0
  %2149 = vmatprep.subr.bf16.mxu0 0
  %2150 = vmatpush1.bf16.msra.mxu0 0
  %2151 = vmatprep.subr.bf16.mxu0 0
  %2152 = vmatpush1.bf16.msra.mxu0 0
  %2153 = vmatprep.subr.bf16.mxu0 0
  %2154 = vmatpush1.bf16.msra.mxu0 0
  %2155 = vmatprep.subr.bf16.mxu0 0
  %2156 = vmatpush1.bf16.msra.mxu0 0
  %2157 = vmatprep.subr.bf16.mxu0 0
  %2158 = vmatpush1.bf16.msra.mxu0 %v792
  %2159 = vmatprep.subr.bf16.mxu0 0
  %2160 = vmatpush1.bf16.msra.mxu0 %v791
  %2161 = vmatprep.subr.bf16.mxu0 0
  %2162 = vmatpush2.bf16.msra.mxu0 0
  %2163 = vmatprep.subr.bf16.mxu0 0
  %2164 = vmatpush2.bf16.msra.mxu0 0
  %2165 = vmatprep.subr.bf16.mxu0 0
  %2166 = vmatpush2.bf16.msra.mxu0 0
  %2167 = vmatprep.subr.bf16.mxu0 0
  %2168 = vmatpush2.bf16.msra.mxu0 0
  %2169 = vmatprep.subr.bf16.mxu0 0
  %2170 = vmatpush2.bf16.msra.mxu0 0
  %2171 = vmatprep.subr.bf16.mxu0 0
  %2172 = vmatpush2.bf16.msra.mxu0 0
  %2173 = vmatprep.subr.bf16.mxu0 0
  %2174 = vmatpush2.bf16.msra.mxu0 0
  %2175 = vmatprep.subr.bf16.mxu0 0
  %2176 = vmatpush2.bf16.msra.mxu0 0
  %2177 = vmatprep.mubr.bf16.mxu0 0
  %2178 = vmatmul.mubr.bf16.gmra.mxu0 %v2140
  %v2179 = vpop.f32.mrf.mxu0
  %v2180 = vadd.f32 0.0, %v2179
  %v2181 = vpop.f32.mrf.mxu0
  %v2182 = vpop.f32.mrf.mxu0
  %v2183 = vadd.f32 0.0, %v2182
  %v2184 = vpop.f32.mrf.mxu0
  %2185 = vmatprep.mubr.bf16.mxu0 0
  %2186 = vmatmul.mubr.bf16.gmra.mxu0 %v2143
  %v2187 = vpop.f32.mrf.mxu0
  %v2188 = vadd.f32 0.0, %v2187
  %v2189 = vpop.f32.mrf.mxu0
  %v2190 = vpop.f32.mrf.mxu0
  %v2191 = vpop.f32.mrf.mxu0
  %2192 = vdwg.mxu0
  %v2194 = vsel %vm199, %v2135, 0
  %v2197 = vsel %vm199, %v2136, 0
  %2199 = vmatprep.subr.bf16.mxu0 0
  %2200 = vmatpush1.bf16.msra.mxu0 0
  %2201 = vmatprep.subr.bf16.mxu0 0
  %2202 = vmatpush1.bf16.msra.mxu0 0
  %2203 = vmatprep.subr.bf16.mxu0 0
  %2204 = vmatpush1.bf16.msra.mxu0 0
  %2205 = vmatprep.subr.bf16.mxu0 0
  %2206 = vmatpush1.bf16.msra.mxu0 0
  %2207 = vmatprep.subr.bf16.mxu0 0
  %2208 = vmatpush1.bf16.msra.mxu0 0
  %2209 = vmatprep.subr.bf16.mxu0 0
  %2210 = vmatpush1.bf16.msra.mxu0 0
  %2211 = vmatprep.subr.bf16.mxu0 0
  %2212 = vmatpush1.bf16.msra.mxu0 %v858
  %2213 = vmatprep.subr.bf16.mxu0 0
  %2214 = vmatpush1.bf16.msra.mxu0 %v857
  %2215 = vmatprep.subr.bf16.mxu0 0
  %2216 = vmatpush2.bf16.msra.mxu0 0
  %2217 = vmatprep.subr.bf16.mxu0 0
  %2218 = vmatpush2.bf16.msra.mxu0 0
  %2219 = vmatprep.subr.bf16.mxu0 0
  %2220 = vmatpush2.bf16.msra.mxu0 0
  %2221 = vmatprep.subr.bf16.mxu0 0
  %2222 = vmatpush2.bf16.msra.mxu0 0
  %2223 = vmatprep.subr.bf16.mxu0 0
  %2224 = vmatpush2.bf16.msra.mxu0 0
  %2225 = vmatprep.subr.bf16.mxu0 0
  %2226 = vmatpush2.bf16.msra.mxu0 0
  %2227 = vmatprep.subr.bf16.mxu0 0
  %2228 = vmatpush2.bf16.msra.mxu0 0
  %2229 = vmatprep.subr.bf16.mxu0 0
  %2230 = vmatpush2.bf16.msra.mxu0 0
  %2231 = vmatprep.mubr.bf16.mxu0 0
  %2232 = vmatmul.mubr.bf16.gmra.mxu0 %v2194
  %v2233 = vpop.f32.mrf.mxu0
  %v2234 = vadd.f32 %v2180, %v2233
  %v2235 = vpop.f32.mrf.mxu0
  %v2236 = vpop.f32.mrf.mxu0
  %v2237 = vadd.f32 %v2183, %v2236
  %v2238 = vpop.f32.mrf.mxu0
  %2239 = vmatprep.mubr.bf16.mxu0 0
  %2240 = vmatmul.mubr.bf16.gmra.mxu0 %v2197
  %v2241 = vpop.f32.mrf.mxu0
  %v2242 = vadd.f32 %v2188, %v2241
  %v2243 = vpop.f32.mrf.mxu0
  %v2244 = vpop.f32.mrf.mxu0
  %v2245 = vpop.f32.mrf.mxu0
  %2246 = vdwg.mxu0
  %v2248 = vsel %vm199, %v1656, 0
  %v2250 = vsel %vm199, %v1657, 0
  %2252 = vmatprep.subr.bf16.mxu0 0
  %2253 = vmatpush1.bf16.msra.mxu0 0
  %2254 = vmatprep.subr.bf16.mxu0 0
  %2255 = vmatpush1.bf16.msra.mxu0 0
  %2256 = vmatprep.subr.bf16.mxu0 0
  %2257 = vmatpush1.bf16.msra.mxu0 0
  %2258 = vmatprep.subr.bf16.mxu0 0
  %2259 = vmatpush1.bf16.msra.mxu0 0
  %2260 = vmatprep.subr.bf16.mxu0 0
  %2261 = vmatpush1.bf16.msra.mxu0 0
  %2262 = vmatprep.subr.bf16.mxu0 0
  %2263 = vmatpush1.bf16.msra.mxu0 0
  %2264 = vmatprep.subr.bf16.mxu0 0
  %2265 = vmatpush1.bf16.msra.mxu0 %v924
  %2266 = vmatprep.subr.bf16.mxu0 0
  %2267 = vmatpush1.bf16.msra.mxu0 %v923
  %2268 = vmatprep.subr.bf16.mxu0 0
  %2269 = vmatpush2.bf16.msra.mxu0 0
  %2270 = vmatprep.subr.bf16.mxu0 0
  %2271 = vmatpush2.bf16.msra.mxu0 0
  %2272 = vmatprep.subr.bf16.mxu0 0
  %2273 = vmatpush2.bf16.msra.mxu0 0
  %2274 = vmatprep.subr.bf16.mxu0 0
  %2275 = vmatpush2.bf16.msra.mxu0 0
  %2276 = vmatprep.subr.bf16.mxu0 0
  %2277 = vmatpush2.bf16.msra.mxu0 0
  %2278 = vmatprep.subr.bf16.mxu0 0
  %2279 = vmatpush2.bf16.msra.mxu0 0
  %2280 = vmatprep.subr.bf16.mxu0 0
  %2281 = vmatpush2.bf16.msra.mxu0 0
  %2282 = vmatprep.subr.bf16.mxu0 0
  %2283 = vmatpush2.bf16.msra.mxu0 0
  %2284 = vmatprep.mubr.bf16.mxu0 0
  %2285 = vmatmul.mubr.bf16.gmra.mxu0 %v2248
  %v2286 = vpop.f32.mrf.mxu0
  %v2287 = vadd.f32 0.0, %v2286
  %v2288 = vpop.f32.mrf.mxu0
  %v2289 = vpop.f32.mrf.mxu0
  %v2290 = vadd.f32 0.0, %v2289
  %v2291 = vpop.f32.mrf.mxu0
  %2292 = vmatprep.mubr.bf16.mxu0 0
  %2293 = vmatmul.mubr.bf16.gmra.mxu0 %v2250
  %v2294 = vpop.f32.mrf.mxu0
  %v2295 = vadd.f32 0.0, %v2294
  %v2296 = vpop.f32.mrf.mxu0
  %v2297 = vpop.f32.mrf.mxu0
  %v2298 = vpop.f32.mrf.mxu0
  %2299 = vdwg.mxu0
  %v2300 = vadd.f32 %v2234, %v2287
  %v2301 = vadd.f32 %v2237, %v2290
  %v2302 = vadd.f32 %v2242, %v2295
  %v2303 = vadd.f32 %v2300, %v986
  %v2304 = vadd.f32 %v2301, %v986
  %v2305 = vadd.f32 %v2302, %v986
  %v2306 = vmax.f32 %v2303, 0.0
  %v2307 = vmax.f32 %v2304, 0.0
  %v2308 = vmax.f32 %v2305, 0.0
  %v2309 = vpack.c.bf16 %v2307, %v2306
  %v2310 = vpack.c.bf16 %v2308, %v2308
  %v2312 = vsel %vm199, %v2309, 0
  %v2315 = vsel %vm199, %v2310, 0
  %2317 = vmatprep.subr.bf16.mxu0 0
  %2318 = vmatpush1.bf16.msra.mxu0 0
  %2319 = vmatprep.subr.bf16.mxu0 0
  %2320 = vmatpush1.bf16.msra.mxu0 0
  %2321 = vmatprep.subr.bf16.mxu0 0
  %2322 = vmatpush1.bf16.msra.mxu0 0
  %2323 = vmatprep.subr.bf16.mxu0 0
  %2324 = vmatpush1.bf16.msra.mxu0 0
  %2325 = vmatprep.subr.bf16.mxu0 0
  %2326 = vmatpush1.bf16.msra.mxu0 0
  %2327 = vmatprep.subr.bf16.mxu0 0
  %2328 = vmatpush1.bf16.msra.mxu0 0
  %2329 = vmatprep.subr.bf16.mxu0 0
  %2330 = vmatpush1.bf16.msra.mxu0 %v1004
  %2331 = vmatprep.subr.bf16.mxu0 0
  %2332 = vmatpush1.bf16.msra.mxu0 %v1003
  %2333 = vmatprep.subr.bf16.mxu0 0
  %2334 = vmatpush2.bf16.msra.mxu0 0
  %2335 = vmatprep.subr.bf16.mxu0 0
  %2336 = vmatpush2.bf16.msra.mxu0 0
  %2337 = vmatprep.subr.bf16.mxu0 0
  %2338 = vmatpush2.bf16.msra.mxu0 0
  %2339 = vmatprep.subr.bf16.mxu0 0
  %2340 = vmatpush2.bf16.msra.mxu0 0
  %2341 = vmatprep.subr.bf16.mxu0 0
  %2342 = vmatpush2.bf16.msra.mxu0 0
  %2343 = vmatprep.subr.bf16.mxu0 0
  %2344 = vmatpush2.bf16.msra.mxu0 0
  %2345 = vmatprep.subr.bf16.mxu0 0
  %2346 = vmatpush2.bf16.msra.mxu0 0
  %2347 = vmatprep.subr.bf16.mxu0 0
  %2348 = vmatpush2.bf16.msra.mxu0 0
  %2349 = vmatprep.mubr.bf16.mxu0 0
  %2350 = vmatmul.mubr.bf16.gmra.mxu0 %v2312
  %v2351 = vpop.f32.mrf.mxu0
  %v2352 = vadd.f32 0.0, %v2351
  %v2353 = vpop.f32.mrf.mxu0
  %v2354 = vpop.f32.mrf.mxu0
  %v2355 = vadd.f32 0.0, %v2354
  %v2356 = vpop.f32.mrf.mxu0
  %2357 = vmatprep.mubr.bf16.mxu0 0
  %2358 = vmatmul.mubr.bf16.gmra.mxu0 %v2315
  %v2359 = vpop.f32.mrf.mxu0
  %v2360 = vadd.f32 0.0, %v2359
  %v2361 = vpop.f32.mrf.mxu0
  %v2362 = vpop.f32.mrf.mxu0
  %v2363 = vpop.f32.mrf.mxu0
  %2364 = vdwg.mxu0
  %v2365 = vadd.f32 %v1068, %v2352
  %v2366 = vadd.f32 %v1069, %v2355
  %v2367 = vadd.f32 %v1070, %v2360
  %v2368 = vadd.f32 %v2365, %v1067
  %v2369 = vadd.f32 %v2366, %v1067
  %v2370 = vadd.f32 %v2367, %v1067
  %v2371 = vpack.c.bf16 %v2092, %v2089
  %v2372 = vpack.c.bf16 %v2097, %v2097
  %v2373 = vpack.c.bf16 %v2105, %v2100
  %v2374 = vpack.c.bf16 %v2108, %v2108
  %v2376 = vsel %vm199, %v2373, 0
  %v2379 = vsel %vm199, %v2374, 0
  %2381 = vmatprep.subr.bf16.mxu0 0
  %2382 = vmatpush1.bf16.msra.mxu0 0
  %2383 = vmatprep.subr.bf16.mxu0 0
  %2384 = vmatpush1.bf16.msra.mxu0 0
  %2385 = vmatprep.subr.bf16.mxu0 0
  %2386 = vmatpush1.bf16.msra.mxu0 0
  %2387 = vmatprep.subr.bf16.mxu0 0
  %2388 = vmatpush1.bf16.msra.mxu0 0
  %2389 = vmatprep.subr.bf16.mxu0 0
  %2390 = vmatpush1.bf16.msra.mxu0 0
  %2391 = vmatprep.subr.bf16.mxu0 0
  %2392 = vmatpush1.bf16.msra.mxu0 0
  %2393 = vmatprep.subr.bf16.mxu0 0
  %2394 = vmatpush1.bf16.msra.mxu0 %v1084
  %2395 = vmatprep.subr.bf16.mxu0 0
  %2396 = vmatpush1.bf16.msra.mxu0 %v1083
  %2397 = vmatprep.subr.bf16.mxu0 0
  %2398 = vmatpush2.bf16.msra.mxu0 0
  %2399 = vmatprep.subr.bf16.mxu0 0
  %2400 = vmatpush2.bf16.msra.mxu0 0
  %2401 = vmatprep.subr.bf16.mxu0 0
  %2402 = vmatpush2.bf16.msra.mxu0 0
  %2403 = vmatprep.subr.bf16.mxu0 0
  %2404 = vmatpush2.bf16.msra.mxu0 0
  %2405 = vmatprep.subr.bf16.mxu0 0
  %2406 = vmatpush2.bf16.msra.mxu0 0
  %2407 = vmatprep.subr.bf16.mxu0 0
  %2408 = vmatpush2.bf16.msra.mxu0 0
  %2409 = vmatprep.subr.bf16.mxu0 0
  %2410 = vmatpush2.bf16.msra.mxu0 0
  %2411 = vmatprep.subr.bf16.mxu0 0
  %2412 = vmatpush2.bf16.msra.mxu0 0
  %2413 = vmatprep.mubr.bf16.mxu0 0
  %2414 = vmatmul.mubr.bf16.gmra.mxu0 %v2376
  %v2415 = vpop.f32.mrf.mxu0
  %v2416 = vadd.f32 0.0, %v2415
  %v2417 = vpop.f32.mrf.mxu0
  %v2418 = vpop.f32.mrf.mxu0
  %v2419 = vadd.f32 0.0, %v2418
  %v2420 = vpop.f32.mrf.mxu0
  %2421 = vmatprep.mubr.bf16.mxu0 0
  %2422 = vmatmul.mubr.bf16.gmra.mxu0 %v2379
  %v2423 = vpop.f32.mrf.mxu0
  %v2424 = vadd.f32 0.0, %v2423
  %v2425 = vpop.f32.mrf.mxu0
  %v2426 = vpop.f32.mrf.mxu0
  %v2427 = vpop.f32.mrf.mxu0
  %2428 = vdwg.mxu0
  %v2430 = vsel %vm199, %v2371, 0
  %v2433 = vsel %vm199, %v2372, 0
  %2435 = vmatprep.subr.bf16.mxu0 0
  %2436 = vmatpush1.bf16.msra.mxu0 0
  %2437 = vmatprep.subr.bf16.mxu0 0
  %2438 = vmatpush1.bf16.msra.mxu0 0
  %2439 = vmatprep.subr.bf16.mxu0 0
  %2440 = vmatpush1.bf16.msra.mxu0 0
  %2441 = vmatprep.subr.bf16.mxu0 0
  %2442 = vmatpush1.bf16.msra.mxu0 0
  %2443 = vmatprep.subr.bf16.mxu0 0
  %2444 = vmatpush1.bf16.msra.mxu0 0
  %2445 = vmatprep.subr.bf16.mxu0 0
  %2446 = vmatpush1.bf16.msra.mxu0 0
  %2447 = vmatprep.subr.bf16.mxu0 0
  %2448 = vmatpush1.bf16.msra.mxu0 %v1150
  %2449 = vmatprep.subr.bf16.mxu0 0
  %2450 = vmatpush1.bf16.msra.mxu0 %v1149
  %2451 = vmatprep.subr.bf16.mxu0 0
  %2452 = vmatpush2.bf16.msra.mxu0 0
  %2453 = vmatprep.subr.bf16.mxu0 0
  %2454 = vmatpush2.bf16.msra.mxu0 0
  %2455 = vmatprep.subr.bf16.mxu0 0
  %2456 = vmatpush2.bf16.msra.mxu0 0
  %2457 = vmatprep.subr.bf16.mxu0 0
  %2458 = vmatpush2.bf16.msra.mxu0 0
  %2459 = vmatprep.subr.bf16.mxu0 0
  %2460 = vmatpush2.bf16.msra.mxu0 0
  %2461 = vmatprep.subr.bf16.mxu0 0
  %2462 = vmatpush2.bf16.msra.mxu0 0
  %2463 = vmatprep.subr.bf16.mxu0 0
  %2464 = vmatpush2.bf16.msra.mxu0 0
  %2465 = vmatprep.subr.bf16.mxu0 0
  %2466 = vmatpush2.bf16.msra.mxu0 0
  %2467 = vmatprep.mubr.bf16.mxu0 0
  %2468 = vmatmul.mubr.bf16.gmra.mxu0 %v2430
  %v2469 = vpop.f32.mrf.mxu0
  %v2470 = vadd.f32 %v2416, %v2469
  %v2471 = vpop.f32.mrf.mxu0
  %v2472 = vpop.f32.mrf.mxu0
  %v2473 = vadd.f32 %v2419, %v2472
  %v2474 = vpop.f32.mrf.mxu0
  %2475 = vmatprep.mubr.bf16.mxu0 0
  %2476 = vmatmul.mubr.bf16.gmra.mxu0 %v2433
  %v2477 = vpop.f32.mrf.mxu0
  %v2478 = vadd.f32 %v2424, %v2477
  %v2479 = vpop.f32.mrf.mxu0
  %v2480 = vpop.f32.mrf.mxu0
  %v2481 = vpop.f32.mrf.mxu0
  %2482 = vdwg.mxu0
  %v2484 = vsel %vm199, %v1658, 0
  %v2486 = vsel %vm199, %v1659, 0
  %2488 = vmatprep.subr.bf16.mxu0 0
  %2489 = vmatpush1.bf16.msra.mxu0 0
  %2490 = vmatprep.subr.bf16.mxu0 0
  %2491 = vmatpush1.bf16.msra.mxu0 0
  %2492 = vmatprep.subr.bf16.mxu0 0
  %2493 = vmatpush1.bf16.msra.mxu0 0
  %2494 = vmatprep.subr.bf16.mxu0 0
  %2495 = vmatpush1.bf16.msra.mxu0 0
  %2496 = vmatprep.subr.bf16.mxu0 0
  %2497 = vmatpush1.bf16.msra.mxu0 0
  %2498 = vmatprep.subr.bf16.mxu0 0
  %2499 = vmatpush1.bf16.msra.mxu0 0
  %2500 = vmatprep.subr.bf16.mxu0 0
  %2501 = vmatpush1.bf16.msra.mxu0 %v1216
  %2502 = vmatprep.subr.bf16.mxu0 0
  %2503 = vmatpush1.bf16.msra.mxu0 %v1215
  %2504 = vmatprep.subr.bf16.mxu0 0
  %2505 = vmatpush2.bf16.msra.mxu0 0
  %2506 = vmatprep.subr.bf16.mxu0 0
  %2507 = vmatpush2.bf16.msra.mxu0 0
  %2508 = vmatprep.subr.bf16.mxu0 0
  %2509 = vmatpush2.bf16.msra.mxu0 0
  %2510 = vmatprep.subr.bf16.mxu0 0
  %2511 = vmatpush2.bf16.msra.mxu0 0
  %2512 = vmatprep.subr.bf16.mxu0 0
  %2513 = vmatpush2.bf16.msra.mxu0 0
  %2514 = vmatprep.subr.bf16.mxu0 0
  %2515 = vmatpush2.bf16.msra.mxu0 0
  %2516 = vmatprep.subr.bf16.mxu0 0
  %2517 = vmatpush2.bf16.msra.mxu0 0
  %2518 = vmatprep.subr.bf16.mxu0 0
  %2519 = vmatpush2.bf16.msra.mxu0 0
  %2520 = vmatprep.mubr.bf16.mxu0 0
  %2521 = vmatmul.mubr.bf16.gmra.mxu0 %v2484
  %v2522 = vpop.f32.mrf.mxu0
  %v2523 = vadd.f32 0.0, %v2522
  %v2524 = vpop.f32.mrf.mxu0
  %v2525 = vpop.f32.mrf.mxu0
  %v2526 = vadd.f32 0.0, %v2525
  %v2527 = vpop.f32.mrf.mxu0
  %2528 = vmatprep.mubr.bf16.mxu0 0
  %2529 = vmatmul.mubr.bf16.gmra.mxu0 %v2486
  %v2530 = vpop.f32.mrf.mxu0
  %v2531 = vadd.f32 0.0, %v2530
  %v2532 = vpop.f32.mrf.mxu0
  %v2533 = vpop.f32.mrf.mxu0
  %v2534 = vpop.f32.mrf.mxu0
  %2535 = vdwg.mxu0
  %v2536 = vadd.f32 %v2470, %v2523
  %v2537 = vadd.f32 %v2473, %v2526
  %v2538 = vadd.f32 %v2478, %v2531
  %v2539 = vadd.f32 %v2536, %v1278
  %v2540 = vadd.f32 %v2537, %v1278
  %v2541 = vadd.f32 %v2538, %v1278
  %v2542 = vmax.f32 %v2539, 0.0
  %v2543 = vmax.f32 %v2540, 0.0
  %v2544 = vmax.f32 %v2541, 0.0
  %v2545 = vpack.c.bf16 %v2543, %v2542
  %v2546 = vpack.c.bf16 %v2544, %v2544
  %v2548 = vsel %vm199, %v2545, 0
  %v2551 = vsel %vm199, %v2546, 0
  %2553 = vmatprep.subr.bf16.mxu0 0
  %2554 = vmatpush1.bf16.msra.mxu0 0
  %2555 = vmatprep.subr.bf16.mxu0 0
  %2556 = vmatpush1.bf16.msra.mxu0 0
  %2557 = vmatprep.subr.bf16.mxu0 0
  %2558 = vmatpush1.bf16.msra.mxu0 0
  %2559 = vmatprep.subr.bf16.mxu0 0
  %2560 = vmatpush1.bf16.msra.mxu0 0
  %2561 = vmatprep.subr.bf16.mxu0 0
  %2562 = vmatpush1.bf16.msra.mxu0 0
  %2563 = vmatprep.subr.bf16.mxu0 0
  %2564 = vmatpush1.bf16.msra.mxu0 0
  %2565 = vmatprep.subr.bf16.mxu0 0
  %2566 = vmatpush1.bf16.msra.mxu0 %v1296
  %2567 = vmatprep.subr.bf16.mxu0 0
  %2568 = vmatpush1.bf16.msra.mxu0 %v1295
  %2569 = vmatprep.subr.bf16.mxu0 0
  %2570 = vmatpush2.bf16.msra.mxu0 0
  %2571 = vmatprep.subr.bf16.mxu0 0
  %2572 = vmatpush2.bf16.msra.mxu0 0
  %2573 = vmatprep.subr.bf16.mxu0 0
  %2574 = vmatpush2.bf16.msra.mxu0 0
  %2575 = vmatprep.subr.bf16.mxu0 0
  %2576 = vmatpush2.bf16.msra.mxu0 0
  %2577 = vmatprep.subr.bf16.mxu0 0
  %2578 = vmatpush2.bf16.msra.mxu0 0
  %2579 = vmatprep.subr.bf16.mxu0 0
  %2580 = vmatpush2.bf16.msra.mxu0 0
  %2581 = vmatprep.subr.bf16.mxu0 0
  %2582 = vmatpush2.bf16.msra.mxu0 0
  %2583 = vmatprep.subr.bf16.mxu0 0
  %2584 = vmatpush2.bf16.msra.mxu0 0
  %2585 = vmatprep.mubr.bf16.mxu0 0
  %2586 = vmatmul.mubr.bf16.gmra.mxu0 %v2548
  %v2587 = vpop.f32.mrf.mxu0
  %v2588 = vadd.f32 0.0, %v2587
  %v2589 = vpop.f32.mrf.mxu0
  %v2590 = vpop.f32.mrf.mxu0
  %v2591 = vadd.f32 0.0, %v2590
  %v2592 = vpop.f32.mrf.mxu0
  %2593 = vmatprep.mubr.bf16.mxu0 0
  %2594 = vmatmul.mubr.bf16.gmra.mxu0 %v2551
  %v2595 = vpop.f32.mrf.mxu0
  %v2596 = vadd.f32 0.0, %v2595
  %v2597 = vpop.f32.mrf.mxu0
  %v2598 = vpop.f32.mrf.mxu0
  %v2599 = vpop.f32.mrf.mxu0
  %2600 = vdwg.mxu0
  %v2601 = vadd.f32 %v1360, %v2588
  %v2602 = vadd.f32 %v1361, %v2591
  %v2603 = vadd.f32 %v1362, %v2596
  %v2604 = vadd.f32 %v2601, %v1359
  %v2605 = vadd.f32 %v2602, %v1359
  %v2606 = vadd.f32 %v2603, %v1359
  %v2607 = vpack.c.bf16 %v2116, %v2113
  %v2608 = vpack.c.bf16 %v2121, %v2121
  %v2609 = vpack.c.bf16 %v2129, %v2124
  %v2610 = vpack.c.bf16 %v2132, %v2132
  %v2612 = vsel %vm199, %v2609, 0
  %v2615 = vsel %vm199, %v2610, 0
  %2617 = vmatprep.subr.bf16.mxu0 0
  %2618 = vmatpush1.bf16.msra.mxu0 0
  %2619 = vmatprep.subr.bf16.mxu0 0
  %2620 = vmatpush1.bf16.msra.mxu0 0
  %2621 = vmatprep.subr.bf16.mxu0 0
  %2622 = vmatpush1.bf16.msra.mxu0 0
  %2623 = vmatprep.subr.bf16.mxu0 0
  %2624 = vmatpush1.bf16.msra.mxu0 0
  %2625 = vmatprep.subr.bf16.mxu0 0
  %2626 = vmatpush1.bf16.msra.mxu0 0
  %2627 = vmatprep.subr.bf16.mxu0 0
  %2628 = vmatpush1.bf16.msra.mxu0 0
  %2629 = vmatprep.subr.bf16.mxu0 0
  %2630 = vmatpush1.bf16.msra.mxu0 %v1376
  %2631 = vmatprep.subr.bf16.mxu0 0
  %2632 = vmatpush1.bf16.msra.mxu0 %v1375
  %2633 = vmatprep.subr.bf16.mxu0 0
  %2634 = vmatpush2.bf16.msra.mxu0 0
  %2635 = vmatprep.subr.bf16.mxu0 0
  %2636 = vmatpush2.bf16.msra.mxu0 0
  %2637 = vmatprep.subr.bf16.mxu0 0
  %2638 = vmatpush2.bf16.msra.mxu0 0
  %2639 = vmatprep.subr.bf16.mxu0 0
  %2640 = vmatpush2.bf16.msra.mxu0 0
  %2641 = vmatprep.subr.bf16.mxu0 0
  %2642 = vmatpush2.bf16.msra.mxu0 0
  %2643 = vmatprep.subr.bf16.mxu0 0
  %2644 = vmatpush2.bf16.msra.mxu0 0
  %2645 = vmatprep.subr.bf16.mxu0 0
  %2646 = vmatpush2.bf16.msra.mxu0 0
  %2647 = vmatprep.subr.bf16.mxu0 0
  %2648 = vmatpush2.bf16.msra.mxu0 0
  %2649 = vmatprep.mubr.bf16.mxu0 0
  %2650 = vmatmul.mubr.bf16.gmra.mxu0 %v2612
  %v2651 = vpop.f32.mrf.mxu0
  %v2652 = vadd.f32 0.0, %v2651
  %v2653 = vpop.f32.mrf.mxu0
  %v2654 = vpop.f32.mrf.mxu0
  %v2655 = vadd.f32 0.0, %v2654
  %v2656 = vpop.f32.mrf.mxu0
  %2657 = vmatprep.mubr.bf16.mxu0 0
  %2658 = vmatmul.mubr.bf16.gmra.mxu0 %v2615
  %v2659 = vpop.f32.mrf.mxu0
  %v2660 = vadd.f32 0.0, %v2659
  %v2661 = vpop.f32.mrf.mxu0
  %v2662 = vpop.f32.mrf.mxu0
  %v2663 = vpop.f32.mrf.mxu0
  %2664 = vdwg.mxu0
  %v2666 = vsel %vm199, %v2607, 0
  %v2669 = vsel %vm199, %v2608, 0
  %2671 = vmatprep.subr.bf16.mxu0 0
  %2672 = vmatpush1.bf16.msra.mxu0 0
  %2673 = vmatprep.subr.bf16.mxu0 0
  %2674 = vmatpush1.bf16.msra.mxu0 0
  %2675 = vmatprep.subr.bf16.mxu0 0
  %2676 = vmatpush1.bf16.msra.mxu0 0
  %2677 = vmatprep.subr.bf16.mxu0 0
  %2678 = vmatpush1.bf16.msra.mxu0 0
  %2679 = vmatprep.subr.bf16.mxu0 0
  %2680 = vmatpush1.bf16.msra.mxu0 0
  %2681 = vmatprep.subr.bf16.mxu0 0
  %2682 = vmatpush1.bf16.msra.mxu0 0
  %2683 = vmatprep.subr.bf16.mxu0 0
  %2684 = vmatpush1.bf16.msra.mxu0 %v1442
  %2685 = vmatprep.subr.bf16.mxu0 0
  %2686 = vmatpush1.bf16.msra.mxu0 %v1441
  %2687 = vmatprep.subr.bf16.mxu0 0
  %2688 = vmatpush2.bf16.msra.mxu0 0
  %2689 = vmatprep.subr.bf16.mxu0 0
  %2690 = vmatpush2.bf16.msra.mxu0 0
  %2691 = vmatprep.subr.bf16.mxu0 0
  %2692 = vmatpush2.bf16.msra.mxu0 0
  %2693 = vmatprep.subr.bf16.mxu0 0
  %2694 = vmatpush2.bf16.msra.mxu0 0
  %2695 = vmatprep.subr.bf16.mxu0 0
  %2696 = vmatpush2.bf16.msra.mxu0 0
  %2697 = vmatprep.subr.bf16.mxu0 0
  %2698 = vmatpush2.bf16.msra.mxu0 0
  %2699 = vmatprep.subr.bf16.mxu0 0
  %2700 = vmatpush2.bf16.msra.mxu0 0
  %2701 = vmatprep.subr.bf16.mxu0 0
  %2702 = vmatpush2.bf16.msra.mxu0 0
  %2703 = vmatprep.mubr.bf16.mxu0 0
  %2704 = vmatmul.mubr.bf16.gmra.mxu0 %v2666
  %v2705 = vpop.f32.mrf.mxu0
  %v2706 = vadd.f32 %v2652, %v2705
  %v2707 = vpop.f32.mrf.mxu0
  %v2708 = vpop.f32.mrf.mxu0
  %v2709 = vadd.f32 %v2655, %v2708
  %v2710 = vpop.f32.mrf.mxu0
  %2711 = vmatprep.mubr.bf16.mxu0 0
  %2712 = vmatmul.mubr.bf16.gmra.mxu0 %v2669
  %v2713 = vpop.f32.mrf.mxu0
  %v2714 = vadd.f32 %v2660, %v2713
  %v2715 = vpop.f32.mrf.mxu0
  %v2716 = vpop.f32.mrf.mxu0
  %v2717 = vpop.f32.mrf.mxu0
  %2718 = vdwg.mxu0
  %v2720 = vsel %vm199, %v1660, 0
  %v2722 = vsel %vm199, %v1661, 0
  %2724 = vmatprep.subr.bf16.mxu0 0
  %2725 = vmatpush1.bf16.msra.mxu0 0
  %2726 = vmatprep.subr.bf16.mxu0 0
  %2727 = vmatpush1.bf16.msra.mxu0 0
  %2728 = vmatprep.subr.bf16.mxu0 0
  %2729 = vmatpush1.bf16.msra.mxu0 0
  %2730 = vmatprep.subr.bf16.mxu0 0
  %2731 = vmatpush1.bf16.msra.mxu0 0
  %2732 = vmatprep.subr.bf16.mxu0 0
  %2733 = vmatpush1.bf16.msra.mxu0 0
  %2734 = vmatprep.subr.bf16.mxu0 0
  %2735 = vmatpush1.bf16.msra.mxu0 0
  %2736 = vmatprep.subr.bf16.mxu0 0
  %2737 = vmatpush1.bf16.msra.mxu0 %v1508
  %2738 = vmatprep.subr.bf16.mxu0 0
  %2739 = vmatpush1.bf16.msra.mxu0 %v1507
  %2740 = vmatprep.subr.bf16.mxu0 0
  %2741 = vmatpush2.bf16.msra.mxu0 0
  %2742 = vmatprep.subr.bf16.mxu0 0
  %2743 = vmatpush2.bf16.msra.mxu0 0
  %2744 = vmatprep.subr.bf16.mxu0 0
  %2745 = vmatpush2.bf16.msra.mxu0 0
  %2746 = vmatprep.subr.bf16.mxu0 0
  %2747 = vmatpush2.bf16.msra.mxu0 0
  %2748 = vmatprep.subr.bf16.mxu0 0
  %2749 = vmatpush2.bf16.msra.mxu0 0
  %2750 = vmatprep.subr.bf16.mxu0 0
  %2751 = vmatpush2.bf16.msra.mxu0 0
  %2752 = vmatprep.subr.bf16.mxu0 0
  %2753 = vmatpush2.bf16.msra.mxu0 0
  %2754 = vmatprep.subr.bf16.mxu0 0
  %2755 = vmatpush2.bf16.msra.mxu0 0
  %2756 = vmatprep.mubr.bf16.mxu0 0
  %2757 = vmatmul.mubr.bf16.gmra.mxu0 %v2720
  %v2758 = vpop.f32.mrf.mxu0
  %v2759 = vadd.f32 0.0, %v2758
  %v2760 = vpop.f32.mrf.mxu0
  %v2761 = vpop.f32.mrf.mxu0
  %v2762 = vadd.f32 0.0, %v2761
  %v2763 = vpop.f32.mrf.mxu0
  %2764 = vmatprep.mubr.bf16.mxu0 0
  %2765 = vmatmul.mubr.bf16.gmra.mxu0 %v2722
  %v2766 = vpop.f32.mrf.mxu0
  %v2767 = vadd.f32 0.0, %v2766
  %v2768 = vpop.f32.mrf.mxu0
  %v2769 = vpop.f32.mrf.mxu0
  %v2770 = vpop.f32.mrf.mxu0
  %2771 = vdwg.mxu0
  %v2772 = vadd.f32 %v2706, %v2759
  %v2773 = vadd.f32 %v2709, %v2762
  %v2774 = vadd.f32 %v2714, %v2767
  %v2775 = vadd.f32 %v2772, %v1570
  %v2776 = vadd.f32 %v2773, %v1570
  %v2777 = vadd.f32 %v2774, %v1570
  %v2778 = vmax.f32 %v2775, 0.0
  %v2779 = vmax.f32 %v2776, 0.0
  %v2780 = vmax.f32 %v2777, 0.0
  %v2781 = vpack.c.bf16 %v2779, %v2778
  %v2782 = vpack.c.bf16 %v2780, %v2780
  %v2784 = vsel %vm199, %v2781, 0
  %v2787 = vsel %vm199, %v2782, 0
  %2789 = vmatprep.subr.bf16.mxu0 0
  %2790 = vmatpush1.bf16.msra.mxu0 0
  %2791 = vmatprep.subr.bf16.mxu0 0
  %2792 = vmatpush1.bf16.msra.mxu0 0
  %2793 = vmatprep.subr.bf16.mxu0 0
  %2794 = vmatpush1.bf16.msra.mxu0 0
  %2795 = vmatprep.subr.bf16.mxu0 0
  %2796 = vmatpush1.bf16.msra.mxu0 0
  %2797 = vmatprep.subr.bf16.mxu0 0
  %2798 = vmatpush1.bf16.msra.mxu0 0
  %2799 = vmatprep.subr.bf16.mxu0 0
  %2800 = vmatpush1.bf16.msra.mxu0 0
  %2801 = vmatprep.subr.bf16.mxu0 0
  %2802 = vmatpush1.bf16.msra.mxu0 %v1588
  %2803 = vmatprep.subr.bf16.mxu0 0
  %2804 = vmatpush1.bf16.msra.mxu0 %v1587
  %2805 = vmatprep.subr.bf16.mxu0 0
  %2806 = vmatpush2.bf16.msra.mxu0 0
  %2807 = vmatprep.subr.bf16.mxu0 0
  %2808 = vmatpush2.bf16.msra.mxu0 0
  %2809 = vmatprep.subr.bf16.mxu0 0
  %2810 = vmatpush2.bf16.msra.mxu0 0
  %2811 = vmatprep.subr.bf16.mxu0 0
  %2812 = vmatpush2.bf16.msra.mxu0 0
  %2813 = vmatprep.subr.bf16.mxu0 0
  %2814 = vmatpush2.bf16.msra.mxu0 0
  %2815 = vmatprep.subr.bf16.mxu0 0
  %2816 = vmatpush2.bf16.msra.mxu0 0
  %2817 = vmatprep.subr.bf16.mxu0 0
  %2818 = vmatpush2.bf16.msra.mxu0 0
  %2819 = vmatprep.subr.bf16.mxu0 0
  %2820 = vmatpush2.bf16.msra.mxu0 0
  %2821 = vmatprep.mubr.bf16.mxu0 0
  %2822 = vmatmul.mubr.bf16.gmra.mxu0 %v2784
  %v2823 = vpop.f32.mrf.mxu0
  %v2824 = vadd.f32 0.0, %v2823
  %v2825 = vpop.f32.mrf.mxu0
  %v2826 = vpop.f32.mrf.mxu0
  %v2827 = vadd.f32 0.0, %v2826
  %v2828 = vpop.f32.mrf.mxu0
  %2829 = vmatprep.mubr.bf16.mxu0 0
  %2830 = vmatmul.mubr.bf16.gmra.mxu0 %v2787
  %v2831 = vpop.f32.mrf.mxu0
  %v2832 = vadd.f32 0.0, %v2831
  %v2833 = vpop.f32.mrf.mxu0
  %v2834 = vpop.f32.mrf.mxu0
  %v2835 = vpop.f32.mrf.mxu0
  %2836 = vdwg.mxu0
  %v2837 = vadd.f32 %v1652, %v2824
  %v2838 = vadd.f32 %v1653, %v2827
  %v2839 = vadd.f32 %v1654, %v2832
  %v2840 = vadd.f32 %v2837, %v1651
  %v2841 = vadd.f32 %v2838, %v1651
  %v2842 = vadd.f32 %v2839, %v1651
  %2846 = vrot.lane.b32.xlu0 %v2604, 32
  %v2847 = vpop.permute.xlu0 %2846
  %2848 = vrot.lane.b32.xlu0 %v2605, 32
  %v2849 = vpop.permute.xlu0 %2848
  %2850 = vrot.lane.b32.xlu0 %v2606, 32
  %v2851 = vpop.permute.xlu0 %2850
  %2858 = vrot.lane.b32.xlu0 %v2840, 64
  %v2859 = vpop.permute.xlu0 %2858
  %2860 = vrot.lane.b32.xlu0 %v2841, 64
  %v2861 = vpop.permute.xlu0 %2860
  %2862 = vrot.lane.b32.xlu0 %v2842, 64
  %v2863 = vpop.permute.xlu0 %2862
  %2870 = vrot.lane.b32.xlu0 %v2028, 96
  %v2871 = vpop.permute.xlu0 %2870
  %2872 = vrot.lane.b32.xlu0 %v2029, 96
  %v2873 = vpop.permute.xlu0 %2872
  %2874 = vrot.lane.b32.xlu0 0.0, 96
  %v2875 = vpop.permute.xlu0 %2874
  %v2879 = vsel %vm199, %v2368, %v2847
  %v2880 = vsel %vm199, %v2369, %v2849
  %v2881 = vsel %vm199, %v2370, %v2851
  %vm2882 = vcmask 523264
  %v2883 = vsel %vm2882, %v2879, %v2859
  %v2884 = vsel %vm2882, %v2880, %v2861
  %v2885 = vsel %vm2882, %v2881, %v2863
  %vm2886 = vcmask 785408
  %v2887 = vsel %vm2886, %v2883, %v2871
  %v2888 = vsel %vm2886, %v2884, %v2873
  %v2889 = vsel %vm2886, %v2885, %v2875
  %2890 = vst [vmem:[%s6] sm:$0xff] %v2887
  %2891 = vst [vmem:[%s6 + $0x8] sm:$0xff] %v2888
  %2892 = vst [vmem:[%s6 + $0x10] sm:$0xff] %v2889
  %v2893 = vpack.c.bf16 %v2029, %v2028
  %2894 = vmatprep.subr.bf16.mxu0 0
  %2895 = vmatpush1.bf16.msra.mxu0 0
  %2896 = vmatprep.subr.bf16.mxu0 0
  %2897 = vmatpush1.bf16.msra.mxu0 0
  %2898 = vmatprep.subr.bf16.mxu0 0
  %2899 = vmatpush1.bf16.msra.mxu0 0
  %2900 = vmatprep.subr.bf16.mxu0 0
  %2901 = vmatpush1.bf16.msra.mxu0 0
  %2902 = vmatprep.subr.bf16.mxu0 0
  %2903 = vmatpush1.bf16.msra.mxu0 0
  %2904 = vmatprep.subr.bf16.mxu0 0
  %2905 = vmatpush1.bf16.msra.mxu0 0
  %2906 = vmatprep.subr.bf16.mxu0 0
  %2907 = vmatpush1.bf16.msra.mxu0 0
  %2908 = vmatprep.subr.bf16.mxu0 0
  %2909 = vmatpush1.bf16.msra.mxu0 %v2893
  %2910 = vmatprep.subr.bf16.mxu0 0
  %2911 = vmatpush2.bf16.msra.mxu0 0
  %2912 = vmatprep.subr.bf16.mxu0 0
  %2913 = vmatpush2.bf16.msra.mxu0 0
  %2914 = vmatprep.subr.bf16.mxu0 0
  %2915 = vmatpush2.bf16.msra.mxu0 0
  %2916 = vmatprep.subr.bf16.mxu0 0
  %2917 = vmatpush2.bf16.msra.mxu0 0
  %2918 = vmatprep.subr.bf16.mxu0 0
  %2919 = vmatpush2.bf16.msra.mxu0 0
  %2920 = vmatprep.subr.bf16.mxu0 0
  %2921 = vmatpush2.bf16.msra.mxu0 0
  %2922 = vmatprep.subr.bf16.mxu0 0
  %2923 = vmatpush2.bf16.msra.mxu0 0
  %2924 = vmatprep.subr.bf16.mxu0 0
  %2925 = vmatpush2.bf16.msra.mxu0 0
  %2926 = vmatprep.mubr.bf16.mxu0 0
  %2927 = vmatmul.mubr.bf16.gmra.mxu0 %v648
  %v2928 = vpop.f32.mrf.mxu0
  %v2929 = vadd.f32 0.0, %v2928
  %v2930 = vpop.f32.mrf.mxu0
  %v2931 = vpop.f32.mrf.mxu0
  %v2932 = vadd.f32 0.0, %v2931
  %v2933 = vpop.f32.mrf.mxu0
  %2934 = vmatprep.mubr.bf16.mxu0 0
  %2935 = vmatmul.mubr.bf16.gmra.mxu0 %v651
  %v2936 = vpop.f32.mrf.mxu0
  %v2937 = vadd.f32 0.0, %v2936
  %v2938 = vpop.f32.mrf.mxu0
  %v2939 = vpop.f32.mrf.mxu0
  %v2940 = vadd.f32 0.0, %v2939
  %v2941 = vpop.f32.mrf.mxu0
  %2942 = vmatprep.mubr.bf16.mxu0 0
  %2943 = vmatmul.mubr.bf16.gmra.mxu0 %v654
  %v2944 = vpop.f32.mrf.mxu0
  %v2945 = vadd.f32 0.0, %v2944
  %v2946 = vpop.f32.mrf.mxu0
  %v2947 = vpop.f32.mrf.mxu0
  %v2948 = vadd.f32 0.0, %v2947
  %v2949 = vpop.f32.mrf.mxu0
  %2950 = vmatprep.mubr.bf16.mxu0 0
  %2951 = vmatmul.mubr.bf16.gmra.mxu0 %v657
  %v2952 = vpop.f32.mrf.mxu0
  %v2953 = vpop.f32.mrf.mxu0
  %v2954 = vpop.f32.mrf.mxu0
  %v2955 = vpop.f32.mrf.mxu0
  %2956 = vmatprep.mubr.bf16.mxu0 0
  %2957 = vmatmul.mubr.bf16.gmra.mxu0 %v660
  %v2958 = vpop.f32.mrf.mxu0
  %v2959 = vpop.f32.mrf.mxu0
  %v2960 = vpop.f32.mrf.mxu0
  %v2961 = vpop.f32.mrf.mxu0
  %2962 = vmatprep.mubr.bf16.mxu0 0
  %2963 = vmatmul.mubr.bf16.gmra.mxu0 %v663
  %v2964 = vpop.f32.mrf.mxu0
  %v2965 = vpop.f32.mrf.mxu0
  %v2966 = vpop.f32.mrf.mxu0
  %v2967 = vpop.f32.mrf.mxu0
  %2968 = vmatprep.mubr.bf16.mxu0 0
  %2969 = vmatmul.mubr.bf16.gmra.mxu0 %v666
  %v2970 = vpop.f32.mrf.mxu0
  %v2971 = vadd.f32 0.0, %v2970
  %v2972 = vpop.f32.mrf.mxu0
  %v2973 = vpop.f32.mrf.mxu0
  %v2974 = vadd.f32 0.0, %v2973
  %v2975 = vpop.f32.mrf.mxu0
  %2976 = vmatprep.mubr.bf16.mxu0 0
  %2977 = vmatmul.mubr.bf16.gmra.mxu0 %v669
  %v2978 = vpop.f32.mrf.mxu0
  %v2979 = vadd.f32 0.0, %v2978
  %v2980 = vpop.f32.mrf.mxu0
  %v2981 = vpop.f32.mrf.mxu0
  %v2982 = vadd.f32 0.0, %v2981
  %v2983 = vpop.f32.mrf.mxu0
  %2984 = vmatprep.mubr.bf16.mxu0 0
  %2985 = vmatmul.mubr.bf16.gmra.mxu0 %v672
  %v2986 = vpop.f32.mrf.mxu0
  %v2987 = vadd.f32 0.0, %v2986
  %v2988 = vpop.f32.mrf.mxu0
  %v2989 = vpop.f32.mrf.mxu0
  %v2990 = vadd.f32 0.0, %v2989
  %v2991 = vpop.f32.mrf.mxu0
  %2992 = vdwg.mxu0
  %v2993 = vpack.c.bf16 %v2932, %v2929
  %v2994 = vpack.c.bf16 %v2971, %v2937
  %v2995 = vpack.c.bf16 %v2979, %v2974
  %v2996 = vpack.c.bf16 %v2945, %v2940
  %v2997 = vpack.c.bf16 %v2982, %v2948
  %v2998 = vpack.c.bf16 %v2990, %v2987
  %v2999 = vpack.c.bf16 0.0, 0.0
  %v3000 = vpack.c.bf16 %v2369, %v2368
  %v3001 = vpack.c.bf16 %v2840, %v2370
  %v3002 = vpack.c.bf16 %v2842, %v2841
  %v3003 = vld [vmem:[%s4] sm:$0xf]
  %v3004 = vld [vmem:[%s4 + $0x4] sm:$0xf]
  %v3005 = vld [vmem:[%s4 + $0x8] sm:$0xf]
  %v3006 = vld [vmem:[%s4 + $0xc] sm:$0xf]
  %v3007 = vld [vmem:[%s4 + $0x10] sm:$0xf]
  %v3008 = vld [vmem:[%s4 + $0x14] sm:$0xf]
  %v3009 = vld [vmem:[%s4 + $0x18] sm:$0xf]
  %v3010 = vld [vmem:[%s4 + $0x1c] sm:$0xf]
  %v3015 = vunpack.c.l.b16 %v3007
  %v3016 = vunpack.c.l.b16 %v3008
  %v3017 = vunpack.c.l.b16 %v3009
  %v3018 = vunpack.c.l.b16 %v3010
  %v3019 = vpack.c.b16 %v3016, %v3015
  %v3020 = vpack.c.b16 %v3018, %v3017
  %v3024 = vsel %vm199, %v2996, 0
  %v3027 = vsel %vm199, %v2997, 0
  %v3030 = vsel %vm199, %v2998, 0
  %v3033 = vsel %vm199, %v2999, 0
  %3035 = vmatprep.subr.bf16.mxu0 0
  %3036 = vmatpush1.bf16.msra.mxu0 0
  %3037 = vmatprep.subr.bf16.mxu0 0
  %3038 = vmatpush1.bf16.msra.mxu0 0
  %3039 = vmatprep.subr.bf16.mxu0 0
  %3040 = vmatpush1.bf16.msra.mxu0 0
  %3041 = vmatprep.subr.bf16.mxu0 0
  %3042 = vmatpush1.bf16.msra.mxu0 0
  %3043 = vmatprep.subr.bf16.mxu0 0
  %3044 = vmatpush1.bf16.msra.mxu0 0
  %3045 = vmatprep.subr.bf16.mxu0 0
  %3046 = vmatpush1.bf16.msra.mxu0 0
  %3047 = vmatprep.subr.bf16.mxu0 0
  %3048 = vmatpush1.bf16.msra.mxu0 %v3020
  %3049 = vmatprep.subr.bf16.mxu0 0
  %3050 = vmatpush1.bf16.msra.mxu0 %v3019
  %3051 = vmatprep.subr.bf16.mxu0 0
  %3052 = vmatpush2.bf16.msra.mxu0 0
  %3053 = vmatprep.subr.bf16.mxu0 0
  %3054 = vmatpush2.bf16.msra.mxu0 0
  %3055 = vmatprep.subr.bf16.mxu0 0
  %3056 = vmatpush2.bf16.msra.mxu0 0
  %3057 = vmatprep.subr.bf16.mxu0 0
  %3058 = vmatpush2.bf16.msra.mxu0 0
  %3059 = vmatprep.subr.bf16.mxu0 0
  %3060 = vmatpush2.bf16.msra.mxu0 0
  %3061 = vmatprep.subr.bf16.mxu0 0
  %3062 = vmatpush2.bf16.msra.mxu0 0
  %3063 = vmatprep.subr.bf16.mxu0 0
  %3064 = vmatpush2.bf16.msra.mxu0 0
  %3065 = vmatprep.subr.bf16.mxu0 0
  %3066 = vmatpush2.bf16.msra.mxu0 0
  %3067 = vmatprep.mubr.bf16.mxu0 0
  %3068 = vmatmul.mubr.bf16.gmra.mxu0 %v3024
  %v3069 = vpop.f32.mrf.mxu0
  %v3070 = vadd.f32 0.0, %v3069
  %v3071 = vpop.f32.mrf.mxu0
  %v3072 = vpop.f32.mrf.mxu0
  %v3073 = vadd.f32 0.0, %v3072
  %v3074 = vpop.f32.mrf.mxu0
  %3075 = vmatprep.mubr.bf16.mxu0 0
  %3076 = vmatmul.mubr.bf16.gmra.mxu0 %v3027
  %v3077 = vpop.f32.mrf.mxu0
  %v3078 = vadd.f32 0.0, %v3077
  %v3079 = vpop.f32.mrf.mxu0
  %v3080 = vpop.f32.mrf.mxu0
  %v3081 = vadd.f32 0.0, %v3080
  %v3082 = vpop.f32.mrf.mxu0
  %3083 = vmatprep.mubr.bf16.mxu0 0
  %3084 = vmatmul.mubr.bf16.gmra.mxu0 %v3030
  %v3085 = vpop.f32.mrf.mxu0
  %v3086 = vadd.f32 0.0, %v3085
  %v3087 = vpop.f32.mrf.mxu0
  %v3088 = vpop.f32.mrf.mxu0
  %v3089 = vadd.f32 0.0, %v3088
  %v3090 = vpop.f32.mrf.mxu0
  %3091 = vmatprep.mubr.bf16.mxu0 0
  %3092 = vmatmul.mubr.bf16.gmra.mxu0 %v3033
  %v3093 = vpop.f32.mrf.mxu0
  %v3094 = vadd.f32 0.0, %v3093
  %v3095 = vpop.f32.mrf.mxu0
  %v3096 = vpop.f32.mrf.mxu0
  %v3097 = vadd.f32 0.0, %v3096
  %v3098 = vpop.f32.mrf.mxu0
  %3099 = vdwg.mxu0
  %v3104 = vunpack.c.l.b16 %v3003
  %v3105 = vunpack.c.l.b16 %v3004
  %v3106 = vunpack.c.l.b16 %v3005
  %v3107 = vunpack.c.l.b16 %v3006
  %v3108 = vpack.c.b16 %v3105, %v3104
  %v3109 = vpack.c.b16 %v3107, %v3106
  %v3113 = vsel %vm199, %v2993, 0
  %v3116 = vsel %vm199, %v2994, 0
  %v3119 = vsel %vm199, %v2995, 0
  %v3122 = vsel %vm199, %v2893, 0
  %3124 = vmatprep.subr.bf16.mxu0 0
  %3125 = vmatpush1.bf16.msra.mxu0 0
  %3126 = vmatprep.subr.bf16.mxu0 0
  %3127 = vmatpush1.bf16.msra.mxu0 0
  %3128 = vmatprep.subr.bf16.mxu0 0
  %3129 = vmatpush1.bf16.msra.mxu0 0
  %3130 = vmatprep.subr.bf16.mxu0 0
  %3131 = vmatpush1.bf16.msra.mxu0 0
  %3132 = vmatprep.subr.bf16.mxu0 0
  %3133 = vmatpush1.bf16.msra.mxu0 0
  %3134 = vmatprep.subr.bf16.mxu0 0
  %3135 = vmatpush1.bf16.msra.mxu0 0
  %3136 = vmatprep.subr.bf16.mxu0 0
  %3137 = vmatpush1.bf16.msra.mxu0 %v3109
  %3138 = vmatprep.subr.bf16.mxu0 0
  %3139 = vmatpush1.bf16.msra.mxu0 %v3108
  %3140 = vmatprep.subr.bf16.mxu0 0
  %3141 = vmatpush2.bf16.msra.mxu0 0
  %3142 = vmatprep.subr.bf16.mxu0 0
  %3143 = vmatpush2.bf16.msra.mxu0 0
  %3144 = vmatprep.subr.bf16.mxu0 0
  %3145 = vmatpush2.bf16.msra.mxu0 0
  %3146 = vmatprep.subr.bf16.mxu0 0
  %3147 = vmatpush2.bf16.msra.mxu0 0
  %3148 = vmatprep.subr.bf16.mxu0 0
  %3149 = vmatpush2.bf16.msra.mxu0 0
  %3150 = vmatprep.subr.bf16.mxu0 0
  %3151 = vmatpush2.bf16.msra.mxu0 0
  %3152 = vmatprep.subr.bf16.mxu0 0
  %3153 = vmatpush2.bf16.msra.mxu0 0
  %3154 = vmatprep.subr.bf16.mxu0 0
  %3155 = vmatpush2.bf16.msra.mxu0 0
  %3156 = vmatprep.mubr.bf16.mxu0 0
  %3157 = vmatmul.mubr.bf16.gmra.mxu0 %v3113
  %v3158 = vpop.f32.mrf.mxu0
  %v3159 = vadd.f32 %v3070, %v3158
  %v3160 = vpop.f32.mrf.mxu0
  %v3161 = vpop.f32.mrf.mxu0
  %v3162 = vadd.f32 %v3073, %v3161
  %v3163 = vpop.f32.mrf.mxu0
  %3164 = vmatprep.mubr.bf16.mxu0 0
  %3165 = vmatmul.mubr.bf16.gmra.mxu0 %v3116
  %v3166 = vpop.f32.mrf.mxu0
  %v3167 = vadd.f32 %v3078, %v3166
  %v3168 = vpop.f32.mrf.mxu0
  %v3169 = vpop.f32.mrf.mxu0
  %v3170 = vadd.f32 %v3081, %v3169
  %v3171 = vpop.f32.mrf.mxu0
  %3172 = vmatprep.mubr.bf16.mxu0 0
  %3173 = vmatmul.mubr.bf16.gmra.mxu0 %v3119
  %v3174 = vpop.f32.mrf.mxu0
  %v3175 = vadd.f32 %v3086, %v3174
  %v3176 = vpop.f32.mrf.mxu0
  %v3177 = vpop.f32.mrf.mxu0
  %v3178 = vadd.f32 %v3089, %v3177
  %v3179 = vpop.f32.mrf.mxu0
  %3180 = vmatprep.mubr.bf16.mxu0 0
  %3181 = vmatmul.mubr.bf16.gmra.mxu0 %v3122
  %v3182 = vpop.f32.mrf.mxu0
  %v3183 = vadd.f32 %v3094, %v3182
  %v3184 = vpop.f32.mrf.mxu0
  %v3185 = vpop.f32.mrf.mxu0
  %v3186 = vadd.f32 %v3097, %v3185
  %v3187 = vpop.f32.mrf.mxu0
  %3188 = vdwg.mxu0
  %v3189 = vld [vmem:[%s4 + $0x20] sm:$0xf]
  %v3190 = vld [vmem:[%s4 + $0x24] sm:$0xf]
  %v3191 = vld [vmem:[%s4 + $0x28] sm:$0xf]
  %v3192 = vld [vmem:[%s4 + $0x2c] sm:$0xf]
  %v3197 = vunpack.c.l.b16 %v3189
  %v3198 = vunpack.c.l.b16 %v3190
  %v3199 = vunpack.c.l.b16 %v3191
  %v3200 = vunpack.c.l.b16 %v3192
  %v3201 = vpack.c.b16 %v3198, %v3197
  %v3202 = vpack.c.b16 %v3200, %v3199
  %v3206 = vsel %vm199, %v3000, 0
  %v3209 = vsel %vm199, %v3001, 0
  %v3212 = vsel %vm199, %v3002, 0
  %3214 = vmatprep.subr.bf16.mxu0 0
  %3215 = vmatpush1.bf16.msra.mxu0 0
  %3216 = vmatprep.subr.bf16.mxu0 0
  %3217 = vmatpush1.bf16.msra.mxu0 0
  %3218 = vmatprep.subr.bf16.mxu0 0
  %3219 = vmatpush1.bf16.msra.mxu0 0
  %3220 = vmatprep.subr.bf16.mxu0 0
  %3221 = vmatpush1.bf16.msra.mxu0 0
  %3222 = vmatprep.subr.bf16.mxu0 0
  %3223 = vmatpush1.bf16.msra.mxu0 0
  %3224 = vmatprep.subr.bf16.mxu0 0
  %3225 = vmatpush1.bf16.msra.mxu0 0
  %3226 = vmatprep.subr.bf16.mxu0 0
  %3227 = vmatpush1.bf16.msra.mxu0 %v3202
  %3228 = vmatprep.subr.bf16.mxu0 0
  %3229 = vmatpush1.bf16.msra.mxu0 %v3201
  %3230 = vmatprep.subr.bf16.mxu0 0
  %3231 = vmatpush2.bf16.msra.mxu0 0
  %3232 = vmatprep.subr.bf16.mxu0 0
  %3233 = vmatpush2.bf16.msra.mxu0 0
  %3234 = vmatprep.subr.bf16.mxu0 0
  %3235 = vmatpush2.bf16.msra.mxu0 0
  %3236 = vmatprep.subr.bf16.mxu0 0
  %3237 = vmatpush2.bf16.msra.mxu0 0
  %3238 = vmatprep.subr.bf16.mxu0 0
  %3239 = vmatpush2.bf16.msra.mxu0 0
  %3240 = vmatprep.subr.bf16.mxu0 0
  %3241 = vmatpush2.bf16.msra.mxu0 0
  %3242 = vmatprep.subr.bf16.mxu0 0
  %3243 = vmatpush2.bf16.msra.mxu0 0
  %3244 = vmatprep.subr.bf16.mxu0 0
  %3245 = vmatpush2.bf16.msra.mxu0 0
  %3246 = vmatprep.mubr.bf16.mxu0 0
  %3247 = vmatmul.mubr.bf16.gmra.mxu0 %v3206
  %v3248 = vpop.f32.mrf.mxu0
  %v3249 = vadd.f32 0.0, %v3248
  %v3250 = vpop.f32.mrf.mxu0
  %v3251 = vpop.f32.mrf.mxu0
  %v3252 = vadd.f32 0.0, %v3251
  %v3253 = vpop.f32.mrf.mxu0
  %3254 = vmatprep.mubr.bf16.mxu0 0
  %3255 = vmatmul.mubr.bf16.gmra.mxu0 %v3209
  %v3256 = vpop.f32.mrf.mxu0
  %v3257 = vadd.f32 0.0, %v3256
  %v3258 = vpop.f32.mrf.mxu0
  %v3259 = vpop.f32.mrf.mxu0
  %v3260 = vadd.f32 0.0, %v3259
  %v3261 = vpop.f32.mrf.mxu0
  %3262 = vmatprep.mubr.bf16.mxu0 0
  %3263 = vmatmul.mubr.bf16.gmra.mxu0 %v3212
  %v3264 = vpop.f32.mrf.mxu0
  %v3265 = vadd.f32 0.0, %v3264
  %v3266 = vpop.f32.mrf.mxu0
  %v3267 = vpop.f32.mrf.mxu0
  %v3268 = vadd.f32 0.0, %v3267
  %v3269 = vpop.f32.mrf.mxu0
  %3270 = vmatprep.mubr.bf16.mxu0 0
  %3271 = vmatmul.mubr.bf16.gmra.mxu0 %v3033
  %v3272 = vpop.f32.mrf.mxu0
  %v3273 = vadd.f32 0.0, %v3272
  %v3274 = vpop.f32.mrf.mxu0
  %v3275 = vpop.f32.mrf.mxu0
  %v3276 = vadd.f32 0.0, %v3275
  %v3277 = vpop.f32.mrf.mxu0
  %3278 = vdwg.mxu0
  %v3279 = vadd.f32 %v3159, %v3249
  %v3280 = vadd.f32 %v3162, %v3252
  %v3281 = vadd.f32 %v3167, %v3257
  %v3282 = vadd.f32 %v3170, %v3260
  %v3283 = vadd.f32 %v3175, %v3265
  %v3284 = vadd.f32 %v3178, %v3268
  %v3285 = vadd.f32 %v3183, %v3273
  %v3286 = vadd.f32 %v3186, %v3276
  %v3287 = vlaneseq
  %v3288 = vshrl.u32 %v3287, 7
  %v3289 = vsub.s32 0, %v3288
  %v3290 = vrot.slane %v53, %v3289
  %v3291 = vadd.f32 %v3279, %v3290
  %v3292 = vadd.f32 %v3280, %v3290
  %v3293 = vadd.f32 %v3281, %v3290
  %v3294 = vadd.f32 %v3282, %v3290
  %v3295 = vadd.f32 %v3283, %v3290
  %v3296 = vadd.f32 %v3284, %v3290
  %v3297 = vadd.f32 %v3285, %v3290
  %v3298 = vadd.f32 %v3286, %v3290
  %3299 = vst [vmem:[%s6 + $0x18] sm:$0xff] %v3291
  %3300 = vst [vmem:[%s6 + $0x20] sm:$0xff] %v3292
  %3301 = vst [vmem:[%s6 + $0x28] sm:$0xff] %v3293
  %3302 = vst [vmem:[%s6 + $0x30] sm:$0xff] %v3294
  %3303 = vst [vmem:[%s6 + $0x38] sm:$0xff] %v3295
  %3304 = vst [vmem:[%s6 + $0x40] sm:$0xff] %v3296
  %3305 = vst [vmem:[%s6 + $0x48] sm:$0xff] %v3297
  %3306 = vst [vmem:[%s6 + $0x50] sm:$0xff] %v3298
  // Predicated region
  $region26: #{forward.1} parent=0 // pred_check
    _
  $region27: #{forward.1} parent=0 // pred_check_branch
    %3308 = sbr.rel (0) target = $region29
  $region28: #{forward.1} parent=0 // pred_region
    _
  $region29: #{forward.1} parent=0 // pred_fallthru
    _
  // Predicated region
  $region30: #{forward.1} parent=0 // pred_check
    _
  $region31: #{forward.1} parent=0 // pred_check_branch
    %3310 = sbr.rel (0) target = $region33
  $region32: #{forward.1} parent=0 // pred_region
    _
  $region33: #{forward.1} parent=0 // pred_fallthru
    _

</llo_original>
